<compile_context>
chip_gen: v7x
topology: tpu7x:2x2x1
jax: 0.10.0
libtpu: 0.0.40
codegen_flags: <defaults>
</compile_context>

<pallas_src>
import jax
import jax.numpy as jnp
from jax import lax
from jax.experimental import pallas as pl
from jax.experimental.pallas import tpu as pltpu


def gru_autoencoder_kernel(
    x_ref,                 # (B, T, I)   batch-first input
    ewih_ref, ewhh_ref,    # encoder fused weights: (I, 3H), (H, 3H)
    ebih_ref, ebhh_ref,    # encoder fused biases:  (1, 3H), (1, 3H)
    dwih_ref, dwhh_ref,    # decoder fused weights: (H, 3H), (H, 3H)
    dbih_ref, dbhh_ref,    # decoder fused biases:  (1, 3H), (1, 3H)
    fcw_ref, fcb_ref,      # fc: (H, I) pre-transposed, (1, I)
    out_ref,               # (B, T, I)   batch-first reconstruction
    hs_scratch,            # (B, T, H)   VMEM scratch: decoder hidden states
):
    B, T, I = x_ref.shape
    H = ewhh_ref.shape[0]

    def fused_step(gi, h, whh, bhh):
        # gi already contains W_ih x + b_ih (fused gate layout r|z|n).
        gh = jnp.dot(h, whh, preferred_element_type=jnp.float32) + bhh
        r = jax.nn.sigmoid(gi[:, 0:H] + gh[:, 0:H])
        z = jax.nn.sigmoid(gi[:, H:2 * H] + gh[:, H:2 * H])
        n = jnp.tanh(gi[:, 2 * H:3 * H] + r * gh[:, 2 * H:3 * H])
        return (1.0 - z) * n + z * h

    # ---------------- encoder ------------------------------------------------
    # Input projection for every timestep in one matmul (off the serial chain).
    xs = x_ref[...].reshape(B * T, I)
    gi_enc = (
        jnp.dot(xs, ewih_ref[...], preferred_element_type=jnp.float32)
        + ebih_ref[...]
    ).reshape(B, T, 3 * H)

    whh_e = ewhh_ref[...]
    bhh_e = ebhh_ref[...]

    h = jnp.zeros((B, H), jnp.float32)
    for t in range(T):                       # fully unrolled (T static & small)
        h = fused_step(gi_enc[:, t, :], h, whh_e, bhh_e)
    latent = h                               # == hidden[-1] of the encoder

    # ---------------- decoder ------------------------------------------------
    # Decoder input is the latent at every step -> its projection is constant.
    gi_dec = (
        jnp.dot(latent, dwih_ref[...], preferred_element_type=jnp.float32)
        + dbih_ref[...]
    )
    whh_d = dwhh_ref[...]
    bhh_d = dbhh_ref[...]

    h = latent                               # initial decoder hidden = encoder hidden
    for t in range(T):                       # fully unrolled
        h = fused_step(gi_dec, h, whh_d, bhh_d)
        hs_scratch[:, t:t + 1, :] = h[:, None, :]

    # ---------------- output Linear (batched over all timesteps) -------------
    dec_flat = hs_scratch[...].reshape(B * T, H)
    recon = (
        jnp.dot(dec_flat, fcw_ref[...], preferred_element_type=jnp.float32)
        + fcb_ref[...]
    )
    out_ref[...] = recon.reshape(B, T, I)


def _fuse_gru_weights(w_ih, w_hh, b_ih, b_hh):
    """torch layout (3H, F) / (3H,) -> fused kernel layout (F, 3H) / (1, 3H).

    torch stacks the gates as rows [r; z; n]; transposing gives columns [r | z | n],
    which is exactly the fused gate order the kernel slices.
    """
    wih = jnp.asarray(w_ih, jnp.float32).T            # (F_in, 3H)
    whh = jnp.asarray(w_hh, jnp.float32).T            # (H,   3H)
    bih = jnp.asarray(b_ih, jnp.float32).reshape(1, -1)
    bhh = jnp.asarray(b_hh, jnp.float32).reshape(1, -1)
    return wih, whh, bih, bhh


def gru_autoencoder_forward(x, params, hidden_dim):
    """x: (B, T, input_size) batch-first, like the PyTorch module."""
    B, T, I = x.shape
    ewih, ewhh, ebih, ebhh = _fuse_gru_weights(
        params["enc_w_ih"], params["enc_w_hh"], params["enc_b_ih"], params["enc_b_hh"]
    )
    dwih, dwhh, dbih, dbhh = _fuse_gru_weights(
        params["dec_w_ih"], params["dec_w_hh"], params["dec_b_ih"], params["dec_b_hh"]
    )
    fcw = jnp.asarray(params["fc_w"], jnp.float32).T          # (H, I)
    fcb = jnp.asarray(params["fc_b"], jnp.float32).reshape(1, I)

    vmem = pl.BlockSpec(memory_space=pltpu.MemorySpace.VMEM)
    # TODO(synk): for large B/T, add a grid over the batch axis (parallel semantics)
    # and BlockSpec tiling over T instead of keeping everything VMEM-resident.
    out = pl.pallas_call(
        gru_autoencoder_kernel,
        out_shape=jax.ShapeDtypeStruct((B, T, I), jnp.float32),
        in_specs=[vmem] * 11,
        out_specs=vmem,
        scratch_shapes=[pltpu.VMEM((B, T, hidden_dim), jnp.float32)],
    )(x.astype(jnp.float32), ewih, ewhh, ebih, ebhh, dwih, dwhh, dbih, dbhh, fcw, fcb)
    return out


# ---------------- pure-JAX reference (for correctness check) -------------------
def _ref_gru_seq(x_tm, w_ih, w_hh, b_ih, b_hh, h0, H):
    def cell(h, x_t):
        gi = x_t @ w_ih.T + b_ih
        gh = h @ w_hh.T + b_hh
        r = jax.nn.sigmoid(gi[:, :H] + gh[:, :H])
        z = jax.nn.sigmoid(gi[:, H:2 * H] + gh[:, H:2 * H])
        n = jnp.tanh(gi[:, 2 * H:] + r * gh[:, 2 * H:])
        h_new = (1.0 - z) * n + z * h
        return h_new, h_new

    h_last, hs = lax.scan(cell, h0, x_tm)
    return h_last, hs


def gru_autoencoder_reference(x, params, H):
    B, T, I = x.shape
    x_tm = jnp.transpose(x, (1, 0, 2))
    h0 = jnp.zeros((B, H), jnp.float32)
    latent, _ = _ref_gru_seq(
        x_tm, params["enc_w_ih"], params["enc_w_hh"],
        params["enc_b_ih"], params["enc_b_hh"], h0, H
    )
    dec_in = jnp.broadcast_to(latent[None], (T, B, H))
    _, dec_out = _ref_gru_seq(
        dec_in, params["dec_w_ih"], params["dec_w_hh"],
        params["dec_b_ih"], params["dec_b_hh"], latent, H
    )
    recon = dec_out @ params["fc_w"].T + params["fc_b"]  # (T, B, I)
    return jnp.transpose(recon, (1, 0, 2))


if __name__ == "__main__":
    # Module defaults: input_size=28, hidden_dim=128 (3H = 384 keeps gate slices
    # lane-aligned), small batch / sequence for the demo.
    input_size = 28
    hidden_dim = 128
    batch, seq_len = 2, 8

    key = jax.random.PRNGKey(0)
    ks = jax.random.split(key, 12)

    def u(k, shape, scale=0.1):
        return jax.random.uniform(k, shape, jnp.float32, -1.0, 1.0) * scale

    params = {
        # encoder GRU (torch layout: weight_ih (3H, I), weight_hh (3H, H))
        "enc_w_ih": u(ks[0], (3 * hidden_dim, input_size)),
        "enc_w_hh": u(ks[1], (3 * hidden_dim, hidden_dim)),
        "enc_b_ih": u(ks[2], (3 * hidden_dim,)),
        "enc_b_hh": u(ks[3], (3 * hidden_dim,)),
        # decoder GRU (input_size = hidden_dim)
        "dec_w_ih": u(ks[4], (3 * hidden_dim, hidden_dim)),
        "dec_w_hh": u(ks[5], (3 * hidden_dim, hidden_dim)),
        "dec_b_ih": u(ks[6], (3 * hidden_dim,)),
        "dec_b_hh": u(ks[7], (3 * hidden_dim,)),
        # fc: Linear(hidden_dim, input_size)
        "fc_w": u(ks[8], (input_size, hidden_dim)),
        "fc_b": u(ks[9], (input_size,)),
    }

    x = jax.random.normal(ks[10], (batch, seq_len, input_size), jnp.float32)

    fwd = jax.jit(lambda xx: gru_autoencoder_forward(xx, params, hidden_dim))
    out = fwd(x)
    jax.block_until_ready(out)

    ref = gru_autoencoder_reference(x, params, hidden_dim)
    assert out.shape == (batch, seq_len, input_size)
    assert jnp.max(jnp.abs(out - ref)) < 1e-3, "Pallas output mismatch vs JAX reference"

    print("KERNEL_OK")
</pallas_src>

<mosaic_0001>
module attributes {stable_mosaic.version = 11 : i64} {
  func.func @gru_autoencoder_kernel(%arg0: memref<2x8x28xf32, #tpu.memory_space<vmem>>, %arg1: memref<28x384xf32, #tpu.memory_space<vmem>>, %arg2: memref<128x384xf32, #tpu.memory_space<vmem>>, %arg3: memref<1x384xf32, #tpu.memory_space<vmem>>, %arg4: memref<1x384xf32, #tpu.memory_space<vmem>>, %arg5: memref<128x384xf32, #tpu.memory_space<vmem>>, %arg6: memref<128x384xf32, #tpu.memory_space<vmem>>, %arg7: memref<1x384xf32, #tpu.memory_space<vmem>>, %arg8: memref<1x384xf32, #tpu.memory_space<vmem>>, %arg9: memref<128x28xf32, #tpu.memory_space<vmem>>, %arg10: memref<1x28xf32, #tpu.memory_space<vmem>>, %arg11: memref<2x8x28xf32, #tpu.memory_space<vmem>>, %arg12: memref<2x8x128xf32, #tpu.memory_space<vmem>>) attributes {dimension_semantics = [], scalar_prefetch = 0 : i64, scratch_operands = 1 : i64, tpu.core_type = #tpu.core_type<tc>} {
    %c0 = arith.constant 0 : index
    %c0_0 = arith.constant 0 : index
    %c0_1 = arith.constant 0 : index
    %0 = vector.load %arg0[%c0, %c0_0, %c0_1] : memref<2x8x28xf32, #tpu.memory_space<vmem>>, vector<2x8x28xf32>
    %1 = vector.shape_cast %0 : vector<2x8x28xf32> to vector<16x28xf32>
    %c0_2 = arith.constant 0 : index
    %c0_3 = arith.constant 0 : index
    %2 = vector.load %arg1[%c0_2, %c0_3] : memref<28x384xf32, #tpu.memory_space<vmem>>, vector<28x384xf32>
    %cst = arith.constant dense<0.000000e+00> : vector<16x384xf32>
    %3 = tpu.matmul %1, %2, %cst {dimension_numbers = #tpu.dot_dimension_numbers<[1], [0], [0], [1], [0, 0, 1, 1], [], []>} : vector<16x28xf32>, vector<28x384xf32>, vector<16x384xf32> -> vector<16x384xf32>
    %c0_4 = arith.constant 0 : index
    %c0_5 = arith.constant 0 : index
    %4 = vector.load %arg3[%c0_4, %c0_5] : memref<1x384xf32, #tpu.memory_space<vmem>>, vector<1x384xf32>
    %5 = vector.broadcast %4 : vector<1x384xf32> to vector<16x384xf32>
    %6 = arith.addf %3, %5 : vector<16x384xf32>
    %7 = vector.shape_cast %6 : vector<16x384xf32> to vector<2x8x384xf32>
    %c0_6 = arith.constant 0 : index
    %c0_7 = arith.constant 0 : index
    %8 = vector.load %arg2[%c0_6, %c0_7] : memref<128x384xf32, #tpu.memory_space<vmem>>, vector<128x384xf32>
    %c0_8 = arith.constant 0 : index
    %c0_9 = arith.constant 0 : index
    %9 = vector.load %arg4[%c0_8, %c0_9] : memref<1x384xf32, #tpu.memory_space<vmem>>, vector<1x384xf32>
    %cst_10 = arith.constant 0.000000e+00 : f32
    %10 = vector.broadcast %cst_10 : f32 to vector<2x128xf32>
    %11 = vector.extract_strided_slice %7 {offsets = [0, 0, 0], sizes = [2, 1, 384], strides = [1, 1, 1]} : vector<2x8x384xf32> to vector<2x1x384xf32>
    %12 = vector.shape_cast %11 : vector<2x1x384xf32> to vector<2x384xf32>
    %cst_11 = arith.constant dense<0.000000e+00> : vector<2x384xf32>
    %13 = tpu.matmul %10, %8, %cst_11 {dimension_numbers = #tpu.dot_dimension_numbers<[1], [0], [0], [1], [0, 0, 1, 1], [], []>} : vector<2x128xf32>, vector<128x384xf32>, vector<2x384xf32> -> vector<2x384xf32>
    %14 = vector.broadcast %9 : vector<1x384xf32> to vector<2x384xf32>
    %15 = arith.addf %13, %14 : vector<2x384xf32>
    %16 = vector.extract_strided_slice %12 {offsets = [0, 0], sizes = [2, 128], strides = [1, 1]} : vector<2x384xf32> to vector<2x128xf32>
    %17 = vector.extract_strided_slice %15 {offsets = [0, 0], sizes = [2, 128], strides = [1, 1]} : vector<2x384xf32> to vector<2x128xf32>
    %18 = arith.addf %16, %17 : vector<2x128xf32>
    %19 = arith.negf %18 : vector<2x128xf32>
    %20 = math.exp %19 : vector<2x128xf32>
    %cst_12 = arith.constant 1.000000e+00 : f32
    %21 = vector.broadcast %cst_12 : f32 to vector<2x128xf32>
    %22 = arith.addf %21, %20 : vector<2x128xf32>
    %23 = arith.divf %21, %22 : vector<2x128xf32>
    %24 = vector.extract_strided_slice %12 {offsets = [0, 128], sizes = [2, 128], strides = [1, 1]} : vector<2x384xf32> to vector<2x128xf32>
    %25 = vector.extract_strided_slice %15 {offsets = [0, 128], sizes = [2, 128], strides = [1, 1]} : vector<2x384xf32> to vector<2x128xf32>
    %26 = arith.addf %24, %25 : vector<2x128xf32>
    %27 = arith.negf %26 : vector<2x128xf32>
    %28 = math.exp %27 : vector<2x128xf32>
    %cst_13 = arith.constant 1.000000e+00 : f32
    %29 = vector.broadcast %cst_13 : f32 to vector<2x128xf32>
    %30 = arith.addf %29, %28 : vector<2x128xf32>
    %31 = arith.divf %29, %30 : vector<2x128xf32>
    %32 = vector.extract_strided_slice %12 {offsets = [0, 256], sizes = [2, 128], strides = [1, 1]} : vector<2x384xf32> to vector<2x128xf32>
    %33 = vector.extract_strided_slice %15 {offsets = [0, 256], sizes = [2, 128], strides = [1, 1]} : vector<2x384xf32> to vector<2x128xf32>
    %34 = arith.mulf %23, %33 : vector<2x128xf32>
    %35 = arith.addf %32, %34 : vector<2x128xf32>
    %36 = math.tanh %35 : vector<2x128xf32>
    %cst_14 = arith.constant 1.000000e+00 : f32
    %37 = vector.broadcast %cst_14 : f32 to vector<2x128xf32>
    %38 = arith.subf %37, %31 : vector<2x128xf32>
    %39 = arith.mulf %38, %36 : vector<2x128xf32>
    %40 = arith.mulf %31, %10 : vector<2x128xf32>
    %41 = arith.addf %39, %40 : vector<2x128xf32>
    %42 = vector.extract_strided_slice %7 {offsets = [0, 1, 0], sizes = [2, 1, 384], strides = [1, 1, 1]} : vector<2x8x384xf32> to vector<2x1x384xf32>
    %43 = vector.shape_cast %42 : vector<2x1x384xf32> to vector<2x384xf32>
    %cst_15 = arith.constant dense<0.000000e+00> : vector<2x384xf32>
    %44 = tpu.matmul %41, %8, %cst_15 {dimension_numbers = #tpu.dot_dimension_numbers<[1], [0], [0], [1], [0, 0, 1, 1], [], []>} : vector<2x128xf32>, vector<128x384xf32>, vector<2x384xf32> -> vector<2x384xf32>
    %45 = vector.broadcast %9 : vector<1x384xf32> to vector<2x384xf32>
    %46 = arith.addf %44, %45 : vector<2x384xf32>
    %47 = vector.extract_strided_slice %43 {offsets = [0, 0], sizes = [2, 128], strides = [1, 1]} : vector<2x384xf32> to vector<2x128xf32>
    %48 = vector.extract_strided_slice %46 {offsets = [0, 0], sizes = [2, 128], strides = [1, 1]} : vector<2x384xf32> to vector<2x128xf32>
    %49 = arith.addf %47, %48 : vector<2x128xf32>
    %50 = arith.negf %49 : vector<2x128xf32>
    %51 = math.exp %50 : vector<2x128xf32>
    %cst_16 = arith.constant 1.000000e+00 : f32
    %52 = vector.broadcast %cst_16 : f32 to vector<2x128xf32>
    %53 = arith.addf %52, %51 : vector<2x128xf32>
    %54 = arith.divf %52, %53 : vector<2x128xf32>
    %55 = vector.extract_strided_slice %43 {offsets = [0, 128], sizes = [2, 128], strides = [1, 1]} : vector<2x384xf32> to vector<2x128xf32>
    %56 = vector.extract_strided_slice %46 {offsets = [0, 128], sizes = [2, 128], strides = [1, 1]} : vector<2x384xf32> to vector<2x128xf32>
    %57 = arith.addf %55, %56 : vector<2x128xf32>
    %58 = arith.negf %57 : vector<2x128xf32>
    %59 = math.exp %58 : vector<2x128xf32>
    %cst_17 = arith.constant 1.000000e+00 : f32
    %60 = vector.broadcast %cst_17 : f32 to vector<2x128xf32>
    %61 = arith.addf %60, %59 : vector<2x128xf32>
    %62 = arith.divf %60, %61 : vector<2x128xf32>
    %63 = vector.extract_strided_slice %43 {offsets = [0, 256], sizes = [2, 128], strides = [1, 1]} : vector<2x384xf32> to vector<2x128xf32>
    %64 = vector.extract_strided_slice %46 {offsets = [0, 256], sizes = [2, 128], strides = [1, 1]} : vector<2x384xf32> to vector<2x128xf32>
    %65 = arith.mulf %54, %64 : vector<2x128xf32>
    %66 = arith.addf %63, %65 : vector<2x128xf32>
    %67 = math.tanh %66 : vector<2x128xf32>
    %cst_18 = arith.constant 1.000000e+00 : f32
    %68 = vector.broadcast %cst_18 : f32 to vector<2x128xf32>
    %69 = arith.subf %68, %62 : vector<2x128xf32>
    %70 = arith.mulf %69, %67 : vector<2x128xf32>
    %71 = arith.mulf %62, %41 : vector<2x128xf32>
    %72 = arith.addf %70, %71 : vector<2x128xf32>
    %73 = vector.extract_strided_slice %7 {offsets = [0, 2, 0], sizes = [2, 1, 384], strides = [1, 1, 1]} : vector<2x8x384xf32> to vector<2x1x384xf32>
    %74 = vector.shape_cast %73 : vector<2x1x384xf32> to vector<2x384xf32>
    %cst_19 = arith.constant dense<0.000000e+00> : vector<2x384xf32>
    %75 = tpu.matmul %72, %8, %cst_19 {dimension_numbers = #tpu.dot_dimension_numbers<[1], [0], [0], [1], [0, 0, 1, 1], [], []>} : vector<2x128xf32>, vector<128x384xf32>, vector<2x384xf32> -> vector<2x384xf32>
    %76 = vector.broadcast %9 : vector<1x384xf32> to vector<2x384xf32>
    %77 = arith.addf %75, %76 : vector<2x384xf32>
    %78 = vector.extract_strided_slice %74 {offsets = [0, 0], sizes = [2, 128], strides = [1, 1]} : vector<2x384xf32> to vector<2x128xf32>
    %79 = vector.extract_strided_slice %77 {offsets = [0, 0], sizes = [2, 128], strides = [1, 1]} : vector<2x384xf32> to vector<2x128xf32>
    %80 = arith.addf %78, %79 : vector<2x128xf32>
    %81 = arith.negf %80 : vector<2x128xf32>
    %82 = math.exp %81 : vector<2x128xf32>
    %cst_20 = arith.constant 1.000000e+00 : f32
    %83 = vector.broadcast %cst_20 : f32 to vector<2x128xf32>
    %84 = arith.addf %83, %82 : vector<2x128xf32>
    %85 = arith.divf %83, %84 : vector<2x128xf32>
    %86 = vector.extract_strided_slice %74 {offsets = [0, 128], sizes = [2, 128], strides = [1, 1]} : vector<2x384xf32> to vector<2x128xf32>
    %87 = vector.extract_strided_slice %77 {offsets = [0, 128], sizes = [2, 128], strides = [1, 1]} : vector<2x384xf32> to vector<2x128xf32>
    %88 = arith.addf %86, %87 : vector<2x128xf32>
    %89 = arith.negf %88 : vector<2x128xf32>
    %90 = math.exp %89 : vector<2x128xf32>
    %cst_21 = arith.constant 1.000000e+00 : f32
    %91 = vector.broadcast %cst_21 : f32 to vector<2x128xf32>
    %92 = arith.addf %91, %90 : vector<2x128xf32>
    %93 = arith.divf %91, %92 : vector<2x128xf32>
    %94 = vector.extract_strided_slice %74 {offsets = [0, 256], sizes = [2, 128], strides = [1, 1]} : vector<2x384xf32> to vector<2x128xf32>
    %95 = vector.extract_strided_slice %77 {offsets = [0, 256], sizes = [2, 128], strides = [1, 1]} : vector<2x384xf32> to vector<2x128xf32>
    %96 = arith.mulf %85, %95 : vector<2x128xf32>
    %97 = arith.addf %94, %96 : vector<2x128xf32>
    %98 = math.tanh %97 : vector<2x128xf32>
    %cst_22 = arith.constant 1.000000e+00 : f32
    %99 = vector.broadcast %cst_22 : f32 to vector<2x128xf32>
    %100 = arith.subf %99, %93 : vector<2x128xf32>
    %101 = arith.mulf %100, %98 : vector<2x128xf32>
    %102 = arith.mulf %93, %72 : vector<2x128xf32>
    %103 = arith.addf %101, %102 : vector<2x128xf32>
    %104 = vector.extract_strided_slice %7 {offsets = [0, 3, 0], sizes = [2, 1, 384], strides = [1, 1, 1]} : vector<2x8x384xf32> to vector<2x1x384xf32>
    %105 = vector.shape_cast %104 : vector<2x1x384xf32> to vector<2x384xf32>
    %cst_23 = arith.constant dense<0.000000e+00> : vector<2x384xf32>
    %106 = tpu.matmul %103, %8, %cst_23 {dimension_numbers = #tpu.dot_dimension_numbers<[1], [0], [0], [1], [0, 0, 1, 1], [], []>} : vector<2x128xf32>, vector<128x384xf32>, vector<2x384xf32> -> vector<2x384xf32>
    %107 = vector.broadcast %9 : vector<1x384xf32> to vector<2x384xf32>
    %108 = arith.addf %106, %107 : vector<2x384xf32>
    %109 = vector.extract_strided_slice %105 {offsets = [0, 0], sizes = [2, 128], strides = [1, 1]} : vector<2x384xf32> to vector<2x128xf32>
    %110 = vector.extract_strided_slice %108 {offsets = [0, 0], sizes = [2, 128], strides = [1, 1]} : vector<2x384xf32> to vector<2x128xf32>
    %111 = arith.addf %109, %110 : vector<2x128xf32>
    %112 = arith.negf %111 : vector<2x128xf32>
    %113 = math.exp %112 : vector<2x128xf32>
    %cst_24 = arith.constant 1.000000e+00 : f32
    %114 = vector.broadcast %cst_24 : f32 to vector<2x128xf32>
    %115 = arith.addf %114, %113 : vector<2x128xf32>
    %116 = arith.divf %114, %115 : vector<2x128xf32>
    %117 = vector.extract_strided_slice %105 {offsets = [0, 128], sizes = [2, 128], strides = [1, 1]} : vector<2x384xf32> to vector<2x128xf32>
    %118 = vector.extract_strided_slice %108 {offsets = [0, 128], sizes = [2, 128], strides = [1, 1]} : vector<2x384xf32> to vector<2x128xf32>
    %119 = arith.addf %117, %118 : vector<2x128xf32>
    %120 = arith.negf %119 : vector<2x128xf32>
    %121 = math.exp %120 : vector<2x128xf32>
    %cst_25 = arith.constant 1.000000e+00 : f32
    %122 = vector.broadcast %cst_25 : f32 to vector<2x128xf32>
    %123 = arith.addf %122, %121 : vector<2x128xf32>
    %124 = arith.divf %122, %123 : vector<2x128xf32>
    %125 = vector.extract_strided_slice %105 {offsets = [0, 256], sizes = [2, 128], strides = [1, 1]} : vector<2x384xf32> to vector<2x128xf32>
    %126 = vector.extract_strided_slice %108 {offsets = [0, 256], sizes = [2, 128], strides = [1, 1]} : vector<2x384xf32> to vector<2x128xf32>
    %127 = arith.mulf %116, %126 : vector<2x128xf32>
    %128 = arith.addf %125, %127 : vector<2x128xf32>
    %129 = math.tanh %128 : vector<2x128xf32>
    %cst_26 = arith.constant 1.000000e+00 : f32
    %130 = vector.broadcast %cst_26 : f32 to vector<2x128xf32>
    %131 = arith.subf %130, %124 : vector<2x128xf32>
    %132 = arith.mulf %131, %129 : vector<2x128xf32>
    %133 = arith.mulf %124, %103 : vector<2x128xf32>
    %134 = arith.addf %132, %133 : vector<2x128xf32>
    %135 = vector.extract_strided_slice %7 {offsets = [0, 4, 0], sizes = [2, 1, 384], strides = [1, 1, 1]} : vector<2x8x384xf32> to vector<2x1x384xf32>
    %136 = vector.shape_cast %135 : vector<2x1x384xf32> to vector<2x384xf32>
    %cst_27 = arith.constant dense<0.000000e+00> : vector<2x384xf32>
    %137 = tpu.matmul %134, %8, %cst_27 {dimension_numbers = #tpu.dot_dimension_numbers<[1], [0], [0], [1], [0, 0, 1, 1], [], []>} : vector<2x128xf32>, vector<128x384xf32>, vector<2x384xf32> -> vector<2x384xf32>
    %138 = vector.broadcast %9 : vector<1x384xf32> to vector<2x384xf32>
    %139 = arith.addf %137, %138 : vector<2x384xf32>
    %140 = vector.extract_strided_slice %136 {offsets = [0, 0], sizes = [2, 128], strides = [1, 1]} : vector<2x384xf32> to vector<2x128xf32>
    %141 = vector.extract_strided_slice %139 {offsets = [0, 0], sizes = [2, 128], strides = [1, 1]} : vector<2x384xf32> to vector<2x128xf32>
    %142 = arith.addf %140, %141 : vector<2x128xf32>
    %143 = arith.negf %142 : vector<2x128xf32>
    %144 = math.exp %143 : vector<2x128xf32>
    %cst_28 = arith.constant 1.000000e+00 : f32
    %145 = vector.broadcast %cst_28 : f32 to vector<2x128xf32>
    %146 = arith.addf %145, %144 : vector<2x128xf32>
    %147 = arith.divf %145, %146 : vector<2x128xf32>
    %148 = vector.extract_strided_slice %136 {offsets = [0, 128], sizes = [2, 128], strides = [1, 1]} : vector<2x384xf32> to vector<2x128xf32>
    %149 = vector.extract_strided_slice %139 {offsets = [0, 128], sizes = [2, 128], strides = [1, 1]} : vector<2x384xf32> to vector<2x128xf32>
    %150 = arith.addf %148, %149 : vector<2x128xf32>
    %151 = arith.negf %150 : vector<2x128xf32>
    %152 = math.exp %151 : vector<2x128xf32>
    %cst_29 = arith.constant 1.000000e+00 : f32
    %153 = vector.broadcast %cst_29 : f32 to vector<2x128xf32>
    %154 = arith.addf %153, %152 : vector<2x128xf32>
    %155 = arith.divf %153, %154 : vector<2x128xf32>
    %156 = vector.extract_strided_slice %136 {offsets = [0, 256], sizes = [2, 128], strides = [1, 1]} : vector<2x384xf32> to vector<2x128xf32>
    %157 = vector.extract_strided_slice %139 {offsets = [0, 256], sizes = [2, 128], strides = [1, 1]} : vector<2x384xf32> to vector<2x128xf32>
    %158 = arith.mulf %147, %157 : vector<2x128xf32>
    %159 = arith.addf %156, %158 : vector<2x128xf32>
    %160 = math.tanh %159 : vector<2x128xf32>
    %cst_30 = arith.constant 1.000000e+00 : f32
    %161 = vector.broadcast %cst_30 : f32 to vector<2x128xf32>
    %162 = arith.subf %161, %155 : vector<2x128xf32>
    %163 = arith.mulf %162, %160 : vector<2x128xf32>
    %164 = arith.mulf %155, %134 : vector<2x128xf32>
    %165 = arith.addf %163, %164 : vector<2x128xf32>
    %166 = vector.extract_strided_slice %7 {offsets = [0, 5, 0], sizes = [2, 1, 384], strides = [1, 1, 1]} : vector<2x8x384xf32> to vector<2x1x384xf32>
    %167 = vector.shape_cast %166 : vector<2x1x384xf32> to vector<2x384xf32>
    %cst_31 = arith.constant dense<0.000000e+00> : vector<2x384xf32>
    %168 = tpu.matmul %165, %8, %cst_31 {dimension_numbers = #tpu.dot_dimension_numbers<[1], [0], [0], [1], [0, 0, 1, 1], [], []>} : vector<2x128xf32>, vector<128x384xf32>, vector<2x384xf32> -> vector<2x384xf32>
    %169 = vector.broadcast %9 : vector<1x384xf32> to vector<2x384xf32>
    %170 = arith.addf %168, %169 : vector<2x384xf32>
    %171 = vector.extract_strided_slice %167 {offsets = [0, 0], sizes = [2, 128], strides = [1, 1]} : vector<2x384xf32> to vector<2x128xf32>
    %172 = vector.extract_strided_slice %170 {offsets = [0, 0], sizes = [2, 128], strides = [1, 1]} : vector<2x384xf32> to vector<2x128xf32>
    %173 = arith.addf %171, %172 : vector<2x128xf32>
    %174 = arith.negf %173 : vector<2x128xf32>
    %175 = math.exp %174 : vector<2x128xf32>
    %cst_32 = arith.constant 1.000000e+00 : f32
    %176 = vector.broadcast %cst_32 : f32 to vector<2x128xf32>
    %177 = arith.addf %176, %175 : vector<2x128xf32>
    %178 = arith.divf %176, %177 : vector<2x128xf32>
    %179 = vector.extract_strided_slice %167 {offsets = [0, 128], sizes = [2, 128], strides = [1, 1]} : vector<2x384xf32> to vector<2x128xf32>
    %180 = vector.extract_strided_slice %170 {offsets = [0, 128], sizes = [2, 128], strides = [1, 1]} : vector<2x384xf32> to vector<2x128xf32>
    %181 = arith.addf %179, %180 : vector<2x128xf32>
    %182 = arith.negf %181 : vector<2x128xf32>
    %183 = math.exp %182 : vector<2x128xf32>
    %cst_33 = arith.constant 1.000000e+00 : f32
    %184 = vector.broadcast %cst_33 : f32 to vector<2x128xf32>
    %185 = arith.addf %184, %183 : vector<2x128xf32>
    %186 = arith.divf %184, %185 : vector<2x128xf32>
    %187 = vector.extract_strided_slice %167 {offsets = [0, 256], sizes = [2, 128], strides = [1, 1]} : vector<2x384xf32> to vector<2x128xf32>
    %188 = vector.extract_strided_slice %170 {offsets = [0, 256], sizes = [2, 128], strides = [1, 1]} : vector<2x384xf32> to vector<2x128xf32>
    %189 = arith.mulf %178, %188 : vector<2x128xf32>
    %190 = arith.addf %187, %189 : vector<2x128xf32>
    %191 = math.tanh %190 : vector<2x128xf32>
    %cst_34 = arith.constant 1.000000e+00 : f32
    %192 = vector.broadcast %cst_34 : f32 to vector<2x128xf32>
    %193 = arith.subf %192, %186 : vector<2x128xf32>
    %194 = arith.mulf %193, %191 : vector<2x128xf32>
    %195 = arith.mulf %186, %165 : vector<2x128xf32>
    %196 = arith.addf %194, %195 : vector<2x128xf32>
    %197 = vector.extract_strided_slice %7 {offsets = [0, 6, 0], sizes = [2, 1, 384], strides = [1, 1, 1]} : vector<2x8x384xf32> to vector<2x1x384xf32>
    %198 = vector.shape_cast %197 : vector<2x1x384xf32> to vector<2x384xf32>
    %cst_35 = arith.constant dense<0.000000e+00> : vector<2x384xf32>
    %199 = tpu.matmul %196, %8, %cst_35 {dimension_numbers = #tpu.dot_dimension_numbers<[1], [0], [0], [1], [0, 0, 1, 1], [], []>} : vector<2x128xf32>, vector<128x384xf32>, vector<2x384xf32> -> vector<2x384xf32>
    %200 = vector.broadcast %9 : vector<1x384xf32> to vector<2x384xf32>
    %201 = arith.addf %199, %200 : vector<2x384xf32>
    %202 = vector.extract_strided_slice %198 {offsets = [0, 0], sizes = [2, 128], strides = [1, 1]} : vector<2x384xf32> to vector<2x128xf32>
    %203 = vector.extract_strided_slice %201 {offsets = [0, 0], sizes = [2, 128], strides = [1, 1]} : vector<2x384xf32> to vector<2x128xf32>
    %204 = arith.addf %202, %203 : vector<2x128xf32>
    %205 = arith.negf %204 : vector<2x128xf32>
    %206 = math.exp %205 : vector<2x128xf32>
    %cst_36 = arith.constant 1.000000e+00 : f32
    %207 = vector.broadcast %cst_36 : f32 to vector<2x128xf32>
    %208 = arith.addf %207, %206 : vector<2x128xf32>
    %209 = arith.divf %207, %208 : vector<2x128xf32>
    %210 = vector.extract_strided_slice %198 {offsets = [0, 128], sizes = [2, 128], strides = [1, 1]} : vector<2x384xf32> to vector<2x128xf32>
    %211 = vector.extract_strided_slice %201 {offsets = [0, 128], sizes = [2, 128], strides = [1, 1]} : vector<2x384xf32> to vector<2x128xf32>
    %212 = arith.addf %210, %211 : vector<2x128xf32>
    %213 = arith.negf %212 : vector<2x128xf32>
    %214 = math.exp %213 : vector<2x128xf32>
    %cst_37 = arith.constant 1.000000e+00 : f32
    %215 = vector.broadcast %cst_37 : f32 to vector<2x128xf32>
    %216 = arith.addf %215, %214 : vector<2x128xf32>
    %217 = arith.divf %215, %216 : vector<2x128xf32>
    %218 = vector.extract_strided_slice %198 {offsets = [0, 256], sizes = [2, 128], strides = [1, 1]} : vector<2x384xf32> to vector<2x128xf32>
    %219 = vector.extract_strided_slice %201 {offsets = [0, 256], sizes = [2, 128], strides = [1, 1]} : vector<2x384xf32> to vector<2x128xf32>
    %220 = arith.mulf %209, %219 : vector<2x128xf32>
    %221 = arith.addf %218, %220 : vector<2x128xf32>
    %222 = math.tanh %221 : vector<2x128xf32>
    %cst_38 = arith.constant 1.000000e+00 : f32
    %223 = vector.broadcast %cst_38 : f32 to vector<2x128xf32>
    %224 = arith.subf %223, %217 : vector<2x128xf32>
    %225 = arith.mulf %224, %222 : vector<2x128xf32>
    %226 = arith.mulf %217, %196 : vector<2x128xf32>
    %227 = arith.addf %225, %226 : vector<2x128xf32>
    %228 = vector.extract_strided_slice %7 {offsets = [0, 7, 0], sizes = [2, 1, 384], strides = [1, 1, 1]} : vector<2x8x384xf32> to vector<2x1x384xf32>
    %229 = vector.shape_cast %228 : vector<2x1x384xf32> to vector<2x384xf32>
    %cst_39 = arith.constant dense<0.000000e+00> : vector<2x384xf32>
    %230 = tpu.matmul %227, %8, %cst_39 {dimension_numbers = #tpu.dot_dimension_numbers<[1], [0], [0], [1], [0, 0, 1, 1], [], []>} : vector<2x128xf32>, vector<128x384xf32>, vector<2x384xf32> -> vector<2x384xf32>
    %231 = vector.broadcast %9 : vector<1x384xf32> to vector<2x384xf32>
    %232 = arith.addf %230, %231 : vector<2x384xf32>
    %233 = vector.extract_strided_slice %229 {offsets = [0, 0], sizes = [2, 128], strides = [1, 1]} : vector<2x384xf32> to vector<2x128xf32>
    %234 = vector.extract_strided_slice %232 {offsets = [0, 0], sizes = [2, 128], strides = [1, 1]} : vector<2x384xf32> to vector<2x128xf32>
    %235 = arith.addf %233, %234 : vector<2x128xf32>
    %236 = arith.negf %235 : vector<2x128xf32>
    %237 = math.exp %236 : vector<2x128xf32>
    %cst_40 = arith.constant 1.000000e+00 : f32
    %238 = vector.broadcast %cst_40 : f32 to vector<2x128xf32>
    %239 = arith.addf %238, %237 : vector<2x128xf32>
    %240 = arith.divf %238, %239 : vector<2x128xf32>
    %241 = vector.extract_strided_slice %229 {offsets = [0, 128], sizes = [2, 128], strides = [1, 1]} : vector<2x384xf32> to vector<2x128xf32>
    %242 = vector.extract_strided_slice %232 {offsets = [0, 128], sizes = [2, 128], strides = [1, 1]} : vector<2x384xf32> to vector<2x128xf32>
    %243 = arith.addf %241, %242 : vector<2x128xf32>
    %244 = arith.negf %243 : vector<2x128xf32>
    %245 = math.exp %244 : vector<2x128xf32>
    %cst_41 = arith.constant 1.000000e+00 : f32
    %246 = vector.broadcast %cst_41 : f32 to vector<2x128xf32>
    %247 = arith.addf %246, %245 : vector<2x128xf32>
    %248 = arith.divf %246, %247 : vector<2x128xf32>
    %249 = vector.extract_strided_slice %229 {offsets = [0, 256], sizes = [2, 128], strides = [1, 1]} : vector<2x384xf32> to vector<2x128xf32>
    %250 = vector.extract_strided_slice %232 {offsets = [0, 256], sizes = [2, 128], strides = [1, 1]} : vector<2x384xf32> to vector<2x128xf32>
    %251 = arith.mulf %240, %250 : vector<2x128xf32>
    %252 = arith.addf %249, %251 : vector<2x128xf32>
    %253 = math.tanh %252 : vector<2x128xf32>
    %cst_42 = arith.constant 1.000000e+00 : f32
    %254 = vector.broadcast %cst_42 : f32 to vector<2x128xf32>
    %255 = arith.subf %254, %248 : vector<2x128xf32>
    %256 = arith.mulf %255, %253 : vector<2x128xf32>
    %257 = arith.mulf %248, %227 : vector<2x128xf32>
    %258 = arith.addf %256, %257 : vector<2x128xf32>
    %c0_43 = arith.constant 0 : index
    %c0_44 = arith.constant 0 : index
    %259 = vector.load %arg5[%c0_43, %c0_44] : memref<128x384xf32, #tpu.memory_space<vmem>>, vector<128x384xf32>
    %cst_45 = arith.constant dense<0.000000e+00> : vector<2x384xf32>
    %260 = tpu.matmul %258, %259, %cst_45 {dimension_numbers = #tpu.dot_dimension_numbers<[1], [0], [0], [1], [0, 0, 1, 1], [], []>} : vector<2x128xf32>, vector<128x384xf32>, vector<2x384xf32> -> vector<2x384xf32>
    %c0_46 = arith.constant 0 : index
    %c0_47 = arith.constant 0 : index
    %261 = vector.load %arg7[%c0_46, %c0_47] : memref<1x384xf32, #tpu.memory_space<vmem>>, vector<1x384xf32>
    %262 = vector.broadcast %261 : vector<1x384xf32> to vector<2x384xf32>
    %263 = arith.addf %260, %262 : vector<2x384xf32>
    %c0_48 = arith.constant 0 : index
    %c0_49 = arith.constant 0 : index
    %264 = vector.load %arg6[%c0_48, %c0_49] : memref<128x384xf32, #tpu.memory_space<vmem>>, vector<128x384xf32>
    %c0_50 = arith.constant 0 : index
    %c0_51 = arith.constant 0 : index
    %265 = vector.load %arg8[%c0_50, %c0_51] : memref<1x384xf32, #tpu.memory_space<vmem>>, vector<1x384xf32>
    %cst_52 = arith.constant dense<0.000000e+00> : vector<2x384xf32>
    %266 = tpu.matmul %258, %264, %cst_52 {dimension_numbers = #tpu.dot_dimension_numbers<[1], [0], [0], [1], [0, 0, 1, 1], [], []>} : vector<2x128xf32>, vector<128x384xf32>, vector<2x384xf32> -> vector<2x384xf32>
    %267 = vector.broadcast %265 : vector<1x384xf32> to vector<2x384xf32>
    %268 = arith.addf %266, %267 : vector<2x384xf32>
    %269 = vector.extract_strided_slice %263 {offsets = [0, 0], sizes = [2, 128], strides = [1, 1]} : vector<2x384xf32> to vector<2x128xf32>
    %270 = vector.extract_strided_slice %268 {offsets = [0, 0], sizes = [2, 128], strides = [1, 1]} : vector<2x384xf32> to vector<2x128xf32>
    %271 = arith.addf %269, %270 : vector<2x128xf32>
    %272 = arith.negf %271 : vector<2x128xf32>
    %273 = math.exp %272 : vector<2x128xf32>
    %cst_53 = arith.constant 1.000000e+00 : f32
    %274 = vector.broadcast %cst_53 : f32 to vector<2x128xf32>
    %275 = arith.addf %274, %273 : vector<2x128xf32>
    %276 = arith.divf %274, %275 : vector<2x128xf32>
    %277 = vector.extract_strided_slice %263 {offsets = [0, 128], sizes = [2, 128], strides = [1, 1]} : vector<2x384xf32> to vector<2x128xf32>
    %278 = vector.extract_strided_slice %268 {offsets = [0, 128], sizes = [2, 128], strides = [1, 1]} : vector<2x384xf32> to vector<2x128xf32>
    %279 = arith.addf %277, %278 : vector<2x128xf32>
    %280 = arith.negf %279 : vector<2x128xf32>
    %281 = math.exp %280 : vector<2x128xf32>
    %cst_54 = arith.constant 1.000000e+00 : f32
    %282 = vector.broadcast %cst_54 : f32 to vector<2x128xf32>
    %283 = arith.addf %282, %281 : vector<2x128xf32>
    %284 = arith.divf %282, %283 : vector<2x128xf32>
    %285 = vector.extract_strided_slice %263 {offsets = [0, 256], sizes = [2, 128], strides = [1, 1]} : vector<2x384xf32> to vector<2x128xf32>
    %286 = vector.extract_strided_slice %268 {offsets = [0, 256], sizes = [2, 128], strides = [1, 1]} : vector<2x384xf32> to vector<2x128xf32>
    %287 = arith.mulf %276, %286 : vector<2x128xf32>
    %288 = arith.addf %285, %287 : vector<2x128xf32>
    %289 = math.tanh %288 : vector<2x128xf32>
    %cst_55 = arith.constant 1.000000e+00 : f32
    %290 = vector.broadcast %cst_55 : f32 to vector<2x128xf32>
    %291 = arith.subf %290, %284 : vector<2x128xf32>
    %292 = arith.mulf %291, %289 : vector<2x128xf32>
    %293 = arith.mulf %284, %258 : vector<2x128xf32>
    %294 = arith.addf %292, %293 : vector<2x128xf32>
    %295 = vector.shape_cast %294 : vector<2x128xf32> to vector<2x1x128xf32>
    %c0_56 = arith.constant 0 : index
    %c0_57 = arith.constant 0 : index
    %c0_58 = arith.constant 0 : index
    %296 = vector.load %arg12[%c0_56, %c0_57, %c0_58] : memref<2x8x128xf32, #tpu.memory_space<vmem>>, vector<2x1x128xf32>
    tpu.vector_store %arg12[%c0_56, %c0_57, %c0_58], %295 {strides = array<i32>} : memref<2x8x128xf32, #tpu.memory_space<vmem>>, vector<2x1x128xf32>,
    %cst_59 = arith.constant dense<0.000000e+00> : vector<2x384xf32>
    %297 = tpu.matmul %294, %264, %cst_59 {dimension_numbers = #tpu.dot_dimension_numbers<[1], [0], [0], [1], [0, 0, 1, 1], [], []>} : vector<2x128xf32>, vector<128x384xf32>, vector<2x384xf32> -> vector<2x384xf32>
    %298 = vector.broadcast %265 : vector<1x384xf32> to vector<2x384xf32>
    %299 = arith.addf %297, %298 : vector<2x384xf32>
    %300 = vector.extract_strided_slice %263 {offsets = [0, 0], sizes = [2, 128], strides = [1, 1]} : vector<2x384xf32> to vector<2x128xf32>
    %301 = vector.extract_strided_slice %299 {offsets = [0, 0], sizes = [2, 128], strides = [1, 1]} : vector<2x384xf32> to vector<2x128xf32>
    %302 = arith.addf %300, %301 : vector<2x128xf32>
    %303 = arith.negf %302 : vector<2x128xf32>
    %304 = math.exp %303 : vector<2x128xf32>
    %cst_60 = arith.constant 1.000000e+00 : f32
    %305 = vector.broadcast %cst_60 : f32 to vector<2x128xf32>
    %306 = arith.addf %305, %304 : vector<2x128xf32>
    %307 = arith.divf %305, %306 : vector<2x128xf32>
    %308 = vector.extract_strided_slice %263 {offsets = [0, 128], sizes = [2, 128], strides = [1, 1]} : vector<2x384xf32> to vector<2x128xf32>
    %309 = vector.extract_strided_slice %299 {offsets = [0, 128], sizes = [2, 128], strides = [1, 1]} : vector<2x384xf32> to vector<2x128xf32>
    %310 = arith.addf %308, %309 : vector<2x128xf32>
    %311 = arith.negf %310 : vector<2x128xf32>
    %312 = math.exp %311 : vector<2x128xf32>
    %cst_61 = arith.constant 1.000000e+00 : f32
    %313 = vector.broadcast %cst_61 : f32 to vector<2x128xf32>
    %314 = arith.addf %313, %312 : vector<2x128xf32>
    %315 = arith.divf %313, %314 : vector<2x128xf32>
    %316 = vector.extract_strided_slice %263 {offsets = [0, 256], sizes = [2, 128], strides = [1, 1]} : vector<2x384xf32> to vector<2x128xf32>
    %317 = vector.extract_strided_slice %299 {offsets = [0, 256], sizes = [2, 128], strides = [1, 1]} : vector<2x384xf32> to vector<2x128xf32>
    %318 = arith.mulf %307, %317 : vector<2x128xf32>
    %319 = arith.addf %316, %318 : vector<2x128xf32>
    %320 = math.tanh %319 : vector<2x128xf32>
    %cst_62 = arith.constant 1.000000e+00 : f32
    %321 = vector.broadcast %cst_62 : f32 to vector<2x128xf32>
    %322 = arith.subf %321, %315 : vector<2x128xf32>
    %323 = arith.mulf %322, %320 : vector<2x128xf32>
    %324 = arith.mulf %315, %294 : vector<2x128xf32>
    %325 = arith.addf %323, %324 : vector<2x128xf32>
    %326 = vector.shape_cast %325 : vector<2x128xf32> to vector<2x1x128xf32>
    %c0_63 = arith.constant 0 : index
    %c1 = arith.constant 1 : index
    %c0_64 = arith.constant 0 : index
    %327 = vector.load %arg12[%c0_63, %c1, %c0_64] : memref<2x8x128xf32, #tpu.memory_space<vmem>>, vector<2x1x128xf32>
    tpu.vector_store %arg12[%c0_63, %c1, %c0_64], %326 {strides = array<i32>} : memref<2x8x128xf32, #tpu.memory_space<vmem>>, vector<2x1x128xf32>,
    %cst_65 = arith.constant dense<0.000000e+00> : vector<2x384xf32>
    %328 = tpu.matmul %325, %264, %cst_65 {dimension_numbers = #tpu.dot_dimension_numbers<[1], [0], [0], [1], [0, 0, 1, 1], [], []>} : vector<2x128xf32>, vector<128x384xf32>, vector<2x384xf32> -> vector<2x384xf32>
    %329 = vector.broadcast %265 : vector<1x384xf32> to vector<2x384xf32>
    %330 = arith.addf %328, %329 : vector<2x384xf32>
    %331 = vector.extract_strided_slice %263 {offsets = [0, 0], sizes = [2, 128], strides = [1, 1]} : vector<2x384xf32> to vector<2x128xf32>
    %332 = vector.extract_strided_slice %330 {offsets = [0, 0], sizes = [2, 128], strides = [1, 1]} : vector<2x384xf32> to vector<2x128xf32>
    %333 = arith.addf %331, %332 : vector<2x128xf32>
    %334 = arith.negf %333 : vector<2x128xf32>
    %335 = math.exp %334 : vector<2x128xf32>
    %cst_66 = arith.constant 1.000000e+00 : f32
    %336 = vector.broadcast %cst_66 : f32 to vector<2x128xf32>
    %337 = arith.addf %336, %335 : vector<2x128xf32>
    %338 = arith.divf %336, %337 : vector<2x128xf32>
    %339 = vector.extract_strided_slice %263 {offsets = [0, 128], sizes = [2, 128], strides = [1, 1]} : vector<2x384xf32> to vector<2x128xf32>
    %340 = vector.extract_strided_slice %330 {offsets = [0, 128], sizes = [2, 128], strides = [1, 1]} : vector<2x384xf32> to vector<2x128xf32>
    %341 = arith.addf %339, %340 : vector<2x128xf32>
    %342 = arith.negf %341 : vector<2x128xf32>
    %343 = math.exp %342 : vector<2x128xf32>
    %cst_67 = arith.constant 1.000000e+00 : f32
    %344 = vector.broadcast %cst_67 : f32 to vector<2x128xf32>
    %345 = arith.addf %344, %343 : vector<2x128xf32>
    %346 = arith.divf %344, %345 : vector<2x128xf32>
    %347 = vector.extract_strided_slice %263 {offsets = [0, 256], sizes = [2, 128], strides = [1, 1]} : vector<2x384xf32> to vector<2x128xf32>
    %348 = vector.extract_strided_slice %330 {offsets = [0, 256], sizes = [2, 128], strides = [1, 1]} : vector<2x384xf32> to vector<2x128xf32>
    %349 = arith.mulf %338, %348 : vector<2x128xf32>
    %350 = arith.addf %347, %349 : vector<2x128xf32>
    %351 = math.tanh %350 : vector<2x128xf32>
    %cst_68 = arith.constant 1.000000e+00 : f32
    %352 = vector.broadcast %cst_68 : f32 to vector<2x128xf32>
    %353 = arith.subf %352, %346 : vector<2x128xf32>
    %354 = arith.mulf %353, %351 : vector<2x128xf32>
    %355 = arith.mulf %346, %325 : vector<2x128xf32>
    %356 = arith.addf %354, %355 : vector<2x128xf32>
    %357 = vector.shape_cast %356 : vector<2x128xf32> to vector<2x1x128xf32>
    %c0_69 = arith.constant 0 : index
    %c2 = arith.constant 2 : index
    %c0_70 = arith.constant 0 : index
    %358 = vector.load %arg12[%c0_69, %c2, %c0_70] : memref<2x8x128xf32, #tpu.memory_space<vmem>>, vector<2x1x128xf32>
    tpu.vector_store %arg12[%c0_69, %c2, %c0_70], %357 {strides = array<i32>} : memref<2x8x128xf32, #tpu.memory_space<vmem>>, vector<2x1x128xf32>,
    %cst_71 = arith.constant dense<0.000000e+00> : vector<2x384xf32>
    %359 = tpu.matmul %356, %264, %cst_71 {dimension_numbers = #tpu.dot_dimension_numbers<[1], [0], [0], [1], [0, 0, 1, 1], [], []>} : vector<2x128xf32>, vector<128x384xf32>, vector<2x384xf32> -> vector<2x384xf32>
    %360 = vector.broadcast %265 : vector<1x384xf32> to vector<2x384xf32>
    %361 = arith.addf %359, %360 : vector<2x384xf32>
    %362 = vector.extract_strided_slice %263 {offsets = [0, 0], sizes = [2, 128], strides = [1, 1]} : vector<2x384xf32> to vector<2x128xf32>
    %363 = vector.extract_strided_slice %361 {offsets = [0, 0], sizes = [2, 128], strides = [1, 1]} : vector<2x384xf32> to vector<2x128xf32>
    %364 = arith.addf %362, %363 : vector<2x128xf32>
    %365 = arith.negf %364 : vector<2x128xf32>
    %366 = math.exp %365 : vector<2x128xf32>
    %cst_72 = arith.constant 1.000000e+00 : f32
    %367 = vector.broadcast %cst_72 : f32 to vector<2x128xf32>
    %368 = arith.addf %367, %366 : vector<2x128xf32>
    %369 = arith.divf %367, %368 : vector<2x128xf32>
    %370 = vector.extract_strided_slice %263 {offsets = [0, 128], sizes = [2, 128], strides = [1, 1]} : vector<2x384xf32> to vector<2x128xf32>
    %371 = vector.extract_strided_slice %361 {offsets = [0, 128], sizes = [2, 128], strides = [1, 1]} : vector<2x384xf32> to vector<2x128xf32>
    %372 = arith.addf %370, %371 : vector<2x128xf32>
    %373 = arith.negf %372 : vector<2x128xf32>
    %374 = math.exp %373 : vector<2x128xf32>
    %cst_73 = arith.constant 1.000000e+00 : f32
    %375 = vector.broadcast %cst_73 : f32 to vector<2x128xf32>
    %376 = arith.addf %375, %374 : vector<2x128xf32>
    %377 = arith.divf %375, %376 : vector<2x128xf32>
    %378 = vector.extract_strided_slice %263 {offsets = [0, 256], sizes = [2, 128], strides = [1, 1]} : vector<2x384xf32> to vector<2x128xf32>
    %379 = vector.extract_strided_slice %361 {offsets = [0, 256], sizes = [2, 128], strides = [1, 1]} : vector<2x384xf32> to vector<2x128xf32>
    %380 = arith.mulf %369, %379 : vector<2x128xf32>
    %381 = arith.addf %378, %380 : vector<2x128xf32>
    %382 = math.tanh %381 : vector<2x128xf32>
    %cst_74 = arith.constant 1.000000e+00 : f32
    %383 = vector.broadcast %cst_74 : f32 to vector<2x128xf32>
    %384 = arith.subf %383, %377 : vector<2x128xf32>
    %385 = arith.mulf %384, %382 : vector<2x128xf32>
    %386 = arith.mulf %377, %356 : vector<2x128xf32>
    %387 = arith.addf %385, %386 : vector<2x128xf32>
    %388 = vector.shape_cast %387 : vector<2x128xf32> to vector<2x1x128xf32>
    %c0_75 = arith.constant 0 : index
    %c3 = arith.constant 3 : index
    %c0_76 = arith.constant 0 : index
    %389 = vector.load %arg12[%c0_75, %c3, %c0_76] : memref<2x8x128xf32, #tpu.memory_space<vmem>>, vector<2x1x128xf32>
    tpu.vector_store %arg12[%c0_75, %c3, %c0_76], %388 {strides = array<i32>} : memref<2x8x128xf32, #tpu.memory_space<vmem>>, vector<2x1x128xf32>,
    %cst_77 = arith.constant dense<0.000000e+00> : vector<2x384xf32>
    %390 = tpu.matmul %387, %264, %cst_77 {dimension_numbers = #tpu.dot_dimension_numbers<[1], [0], [0], [1], [0, 0, 1, 1], [], []>} : vector<2x128xf32>, vector<128x384xf32>, vector<2x384xf32> -> vector<2x384xf32>
    %391 = vector.broadcast %265 : vector<1x384xf32> to vector<2x384xf32>
    %392 = arith.addf %390, %391 : vector<2x384xf32>
    %393 = vector.extract_strided_slice %263 {offsets = [0, 0], sizes = [2, 128], strides = [1, 1]} : vector<2x384xf32> to vector<2x128xf32>
    %394 = vector.extract_strided_slice %392 {offsets = [0, 0], sizes = [2, 128], strides = [1, 1]} : vector<2x384xf32> to vector<2x128xf32>
    %395 = arith.addf %393, %394 : vector<2x128xf32>
    %396 = arith.negf %395 : vector<2x128xf32>
    %397 = math.exp %396 : vector<2x128xf32>
    %cst_78 = arith.constant 1.000000e+00 : f32
    %398 = vector.broadcast %cst_78 : f32 to vector<2x128xf32>
    %399 = arith.addf %398, %397 : vector<2x128xf32>
    %400 = arith.divf %398, %399 : vector<2x128xf32>
    %401 = vector.extract_strided_slice %263 {offsets = [0, 128], sizes = [2, 128], strides = [1, 1]} : vector<2x384xf32> to vector<2x128xf32>
    %402 = vector.extract_strided_slice %392 {offsets = [0, 128], sizes = [2, 128], strides = [1, 1]} : vector<2x384xf32> to vector<2x128xf32>
    %403 = arith.addf %401, %402 : vector<2x128xf32>
    %404 = arith.negf %403 : vector<2x128xf32>
    %405 = math.exp %404 : vector<2x128xf32>
    %cst_79 = arith.constant 1.000000e+00 : f32
    %406 = vector.broadcast %cst_79 : f32 to vector<2x128xf32>
    %407 = arith.addf %406, %405 : vector<2x128xf32>
    %408 = arith.divf %406, %407 : vector<2x128xf32>
    %409 = vector.extract_strided_slice %263 {offsets = [0, 256], sizes = [2, 128], strides = [1, 1]} : vector<2x384xf32> to vector<2x128xf32>
    %410 = vector.extract_strided_slice %392 {offsets = [0, 256], sizes = [2, 128], strides = [1, 1]} : vector<2x384xf32> to vector<2x128xf32>
    %411 = arith.mulf %400, %410 : vector<2x128xf32>
    %412 = arith.addf %409, %411 : vector<2x128xf32>
    %413 = math.tanh %412 : vector<2x128xf32>
    %cst_80 = arith.constant 1.000000e+00 : f32
    %414 = vector.broadcast %cst_80 : f32 to vector<2x128xf32>
    %415 = arith.subf %414, %408 : vector<2x128xf32>
    %416 = arith.mulf %415, %413 : vector<2x128xf32>
    %417 = arith.mulf %408, %387 : vector<2x128xf32>
    %418 = arith.addf %416, %417 : vector<2x128xf32>
    %419 = vector.shape_cast %418 : vector<2x128xf32> to vector<2x1x128xf32>
    %c0_81 = arith.constant 0 : index
    %c4 = arith.constant 4 : index
    %c0_82 = arith.constant 0 : index
    %420 = vector.load %arg12[%c0_81, %c4, %c0_82] : memref<2x8x128xf32, #tpu.memory_space<vmem>>, vector<2x1x128xf32>
    tpu.vector_store %arg12[%c0_81, %c4, %c0_82], %419 {strides = array<i32>} : memref<2x8x128xf32, #tpu.memory_space<vmem>>, vector<2x1x128xf32>,
    %cst_83 = arith.constant dense<0.000000e+00> : vector<2x384xf32>
    %421 = tpu.matmul %418, %264, %cst_83 {dimension_numbers = #tpu.dot_dimension_numbers<[1], [0], [0], [1], [0, 0, 1, 1], [], []>} : vector<2x128xf32>, vector<128x384xf32>, vector<2x384xf32> -> vector<2x384xf32>
    %422 = vector.broadcast %265 : vector<1x384xf32> to vector<2x384xf32>
    %423 = arith.addf %421, %422 : vector<2x384xf32>
    %424 = vector.extract_strided_slice %263 {offsets = [0, 0], sizes = [2, 128], strides = [1, 1]} : vector<2x384xf32> to vector<2x128xf32>
    %425 = vector.extract_strided_slice %423 {offsets = [0, 0], sizes = [2, 128], strides = [1, 1]} : vector<2x384xf32> to vector<2x128xf32>
    %426 = arith.addf %424, %425 : vector<2x128xf32>
    %427 = arith.negf %426 : vector<2x128xf32>
    %428 = math.exp %427 : vector<2x128xf32>
    %cst_84 = arith.constant 1.000000e+00 : f32
    %429 = vector.broadcast %cst_84 : f32 to vector<2x128xf32>
    %430 = arith.addf %429, %428 : vector<2x128xf32>
    %431 = arith.divf %429, %430 : vector<2x128xf32>
    %432 = vector.extract_strided_slice %263 {offsets = [0, 128], sizes = [2, 128], strides = [1, 1]} : vector<2x384xf32> to vector<2x128xf32>
    %433 = vector.extract_strided_slice %423 {offsets = [0, 128], sizes = [2, 128], strides = [1, 1]} : vector<2x384xf32> to vector<2x128xf32>
    %434 = arith.addf %432, %433 : vector<2x128xf32>
    %435 = arith.negf %434 : vector<2x128xf32>
    %436 = math.exp %435 : vector<2x128xf32>
    %cst_85 = arith.constant 1.000000e+00 : f32
    %437 = vector.broadcast %cst_85 : f32 to vector<2x128xf32>
    %438 = arith.addf %437, %436 : vector<2x128xf32>
    %439 = arith.divf %437, %438 : vector<2x128xf32>
    %440 = vector.extract_strided_slice %263 {offsets = [0, 256], sizes = [2, 128], strides = [1, 1]} : vector<2x384xf32> to vector<2x128xf32>
    %441 = vector.extract_strided_slice %423 {offsets = [0, 256], sizes = [2, 128], strides = [1, 1]} : vector<2x384xf32> to vector<2x128xf32>
    %442 = arith.mulf %431, %441 : vector<2x128xf32>
    %443 = arith.addf %440, %442 : vector<2x128xf32>
    %444 = math.tanh %443 : vector<2x128xf32>
    %cst_86 = arith.constant 1.000000e+00 : f32
    %445 = vector.broadcast %cst_86 : f32 to vector<2x128xf32>
    %446 = arith.subf %445, %439 : vector<2x128xf32>
    %447 = arith.mulf %446, %444 : vector<2x128xf32>
    %448 = arith.mulf %439, %418 : vector<2x128xf32>
    %449 = arith.addf %447, %448 : vector<2x128xf32>
    %450 = vector.shape_cast %449 : vector<2x128xf32> to vector<2x1x128xf32>
    %c0_87 = arith.constant 0 : index
    %c5 = arith.constant 5 : index
    %c0_88 = arith.constant 0 : index
    %451 = vector.load %arg12[%c0_87, %c5, %c0_88] : memref<2x8x128xf32, #tpu.memory_space<vmem>>, vector<2x1x128xf32>
    tpu.vector_store %arg12[%c0_87, %c5, %c0_88], %450 {strides = array<i32>} : memref<2x8x128xf32, #tpu.memory_space<vmem>>, vector<2x1x128xf32>,
    %cst_89 = arith.constant dense<0.000000e+00> : vector<2x384xf32>
    %452 = tpu.matmul %449, %264, %cst_89 {dimension_numbers = #tpu.dot_dimension_numbers<[1], [0], [0], [1], [0, 0, 1, 1], [], []>} : vector<2x128xf32>, vector<128x384xf32>, vector<2x384xf32> -> vector<2x384xf32>
    %453 = vector.broadcast %265 : vector<1x384xf32> to vector<2x384xf32>
    %454 = arith.addf %452, %453 : vector<2x384xf32>
    %455 = vector.extract_strided_slice %263 {offsets = [0, 0], sizes = [2, 128], strides = [1, 1]} : vector<2x384xf32> to vector<2x128xf32>
    %456 = vector.extract_strided_slice %454 {offsets = [0, 0], sizes = [2, 128], strides = [1, 1]} : vector<2x384xf32> to vector<2x128xf32>
    %457 = arith.addf %455, %456 : vector<2x128xf32>
    %458 = arith.negf %457 : vector<2x128xf32>
    %459 = math.exp %458 : vector<2x128xf32>
    %cst_90 = arith.constant 1.000000e+00 : f32
    %460 = vector.broadcast %cst_90 : f32 to vector<2x128xf32>
    %461 = arith.addf %460, %459 : vector<2x128xf32>
    %462 = arith.divf %460, %461 : vector<2x128xf32>
    %463 = vector.extract_strided_slice %263 {offsets = [0, 128], sizes = [2, 128], strides = [1, 1]} : vector<2x384xf32> to vector<2x128xf32>
    %464 = vector.extract_strided_slice %454 {offsets = [0, 128], sizes = [2, 128], strides = [1, 1]} : vector<2x384xf32> to vector<2x128xf32>
    %465 = arith.addf %463, %464 : vector<2x128xf32>
    %466 = arith.negf %465 : vector<2x128xf32>
    %467 = math.exp %466 : vector<2x128xf32>
    %cst_91 = arith.constant 1.000000e+00 : f32
    %468 = vector.broadcast %cst_91 : f32 to vector<2x128xf32>
    %469 = arith.addf %468, %467 : vector<2x128xf32>
    %470 = arith.divf %468, %469 : vector<2x128xf32>
    %471 = vector.extract_strided_slice %263 {offsets = [0, 256], sizes = [2, 128], strides = [1, 1]} : vector<2x384xf32> to vector<2x128xf32>
    %472 = vector.extract_strided_slice %454 {offsets = [0, 256], sizes = [2, 128], strides = [1, 1]} : vector<2x384xf32> to vector<2x128xf32>
    %473 = arith.mulf %462, %472 : vector<2x128xf32>
    %474 = arith.addf %471, %473 : vector<2x128xf32>
    %475 = math.tanh %474 : vector<2x128xf32>
    %cst_92 = arith.constant 1.000000e+00 : f32
    %476 = vector.broadcast %cst_92 : f32 to vector<2x128xf32>
    %477 = arith.subf %476, %470 : vector<2x128xf32>
    %478 = arith.mulf %477, %475 : vector<2x128xf32>
    %479 = arith.mulf %470, %449 : vector<2x128xf32>
    %480 = arith.addf %478, %479 : vector<2x128xf32>
    %481 = vector.shape_cast %480 : vector<2x128xf32> to vector<2x1x128xf32>
    %c0_93 = arith.constant 0 : index
    %c6 = arith.constant 6 : index
    %c0_94 = arith.constant 0 : index
    %482 = vector.load %arg12[%c0_93, %c6, %c0_94] : memref<2x8x128xf32, #tpu.memory_space<vmem>>, vector<2x1x128xf32>
    tpu.vector_store %arg12[%c0_93, %c6, %c0_94], %481 {strides = array<i32>} : memref<2x8x128xf32, #tpu.memory_space<vmem>>, vector<2x1x128xf32>,
    %cst_95 = arith.constant dense<0.000000e+00> : vector<2x384xf32>
    %483 = tpu.matmul %480, %264, %cst_95 {dimension_numbers = #tpu.dot_dimension_numbers<[1], [0], [0], [1], [0, 0, 1, 1], [], []>} : vector<2x128xf32>, vector<128x384xf32>, vector<2x384xf32> -> vector<2x384xf32>
    %484 = vector.broadcast %265 : vector<1x384xf32> to vector<2x384xf32>
    %485 = arith.addf %483, %484 : vector<2x384xf32>
    %486 = vector.extract_strided_slice %263 {offsets = [0, 0], sizes = [2, 128], strides = [1, 1]} : vector<2x384xf32> to vector<2x128xf32>
    %487 = vector.extract_strided_slice %485 {offsets = [0, 0], sizes = [2, 128], strides = [1, 1]} : vector<2x384xf32> to vector<2x128xf32>
    %488 = arith.addf %486, %487 : vector<2x128xf32>
    %489 = arith.negf %488 : vector<2x128xf32>
    %490 = math.exp %489 : vector<2x128xf32>
    %cst_96 = arith.constant 1.000000e+00 : f32
    %491 = vector.broadcast %cst_96 : f32 to vector<2x128xf32>
    %492 = arith.addf %491, %490 : vector<2x128xf32>
    %493 = arith.divf %491, %492 : vector<2x128xf32>
    %494 = vector.extract_strided_slice %263 {offsets = [0, 128], sizes = [2, 128], strides = [1, 1]} : vector<2x384xf32> to vector<2x128xf32>
    %495 = vector.extract_strided_slice %485 {offsets = [0, 128], sizes = [2, 128], strides = [1, 1]} : vector<2x384xf32> to vector<2x128xf32>
    %496 = arith.addf %494, %495 : vector<2x128xf32>
    %497 = arith.negf %496 : vector<2x128xf32>
    %498 = math.exp %497 : vector<2x128xf32>
    %cst_97 = arith.constant 1.000000e+00 : f32
    %499 = vector.broadcast %cst_97 : f32 to vector<2x128xf32>
    %500 = arith.addf %499, %498 : vector<2x128xf32>
    %501 = arith.divf %499, %500 : vector<2x128xf32>
    %502 = vector.extract_strided_slice %263 {offsets = [0, 256], sizes = [2, 128], strides = [1, 1]} : vector<2x384xf32> to vector<2x128xf32>
    %503 = vector.extract_strided_slice %485 {offsets = [0, 256], sizes = [2, 128], strides = [1, 1]} : vector<2x384xf32> to vector<2x128xf32>
    %504 = arith.mulf %493, %503 : vector<2x128xf32>
    %505 = arith.addf %502, %504 : vector<2x128xf32>
    %506 = math.tanh %505 : vector<2x128xf32>
    %cst_98 = arith.constant 1.000000e+00 : f32
    %507 = vector.broadcast %cst_98 : f32 to vector<2x128xf32>
    %508 = arith.subf %507, %501 : vector<2x128xf32>
    %509 = arith.mulf %508, %506 : vector<2x128xf32>
    %510 = arith.mulf %501, %480 : vector<2x128xf32>
    %511 = arith.addf %509, %510 : vector<2x128xf32>
    %512 = vector.shape_cast %511 : vector<2x128xf32> to vector<2x1x128xf32>
    %c0_99 = arith.constant 0 : index
    %c7 = arith.constant 7 : index
    %c0_100 = arith.constant 0 : index
    %513 = vector.load %arg12[%c0_99, %c7, %c0_100] : memref<2x8x128xf32, #tpu.memory_space<vmem>>, vector<2x1x128xf32>
    tpu.vector_store %arg12[%c0_99, %c7, %c0_100], %512 {strides = array<i32>} : memref<2x8x128xf32, #tpu.memory_space<vmem>>, vector<2x1x128xf32>,
    %c0_101 = arith.constant 0 : index
    %c0_102 = arith.constant 0 : index
    %c0_103 = arith.constant 0 : index
    %514 = vector.load %arg12[%c0_101, %c0_102, %c0_103] : memref<2x8x128xf32, #tpu.memory_space<vmem>>, vector<2x8x128xf32>
    %515 = vector.shape_cast %514 : vector<2x8x128xf32> to vector<16x128xf32>
    %c0_104 = arith.constant 0 : index
    %c0_105 = arith.constant 0 : index
    %516 = vector.load %arg9[%c0_104, %c0_105] : memref<128x28xf32, #tpu.memory_space<vmem>>, vector<128x28xf32>
    %cst_106 = arith.constant dense<0.000000e+00> : vector<16x28xf32>
    %517 = tpu.matmul %515, %516, %cst_106 {dimension_numbers = #tpu.dot_dimension_numbers<[1], [0], [0], [1], [0, 0, 1, 1], [], []>} : vector<16x128xf32>, vector<128x28xf32>, vector<16x28xf32> -> vector<16x28xf32>
    %c0_107 = arith.constant 0 : index
    %c0_108 = arith.constant 0 : index
    %518 = vector.load %arg10[%c0_107, %c0_108] : memref<1x28xf32, #tpu.memory_space<vmem>>, vector<1x28xf32>
    %519 = vector.broadcast %518 : vector<1x28xf32> to vector<16x28xf32>
    %520 = arith.addf %517, %519 : vector<16x28xf32>
    %521 = vector.shape_cast %520 : vector<16x28xf32> to vector<2x8x28xf32>
    %c0_109 = arith.constant 0 : index
    %c0_110 = arith.constant 0 : index
    %c0_111 = arith.constant 0 : index
    %522 = vector.load %arg11[%c0_109, %c0_110, %c0_111] : memref<2x8x28xf32, #tpu.memory_space<vmem>>, vector<2x8x28xf32>
    tpu.vector_store %arg11[%c0_109, %c0_110, %c0_111], %521 {strides = array<i32>} : memref<2x8x28xf32, #tpu.memory_space<vmem>>, vector<2x8x28xf32>,
    return
  }
}

</mosaic_0001>

<llo_original>
// kernel: _lambda_.1
$region0: #{_lambda_.1}
  #allocation0 [shape = 'u32[]', space=smem, size = 0x4, offset = 0x4, fixed_abs, tag = 'smem constant byte address 0x4 - core index']
  #allocation1 [shape = 'u32[144,128]{1,0:T(1,128)}', space=vmem, size = 0x12000, scoped, tag = 'internal scratch']
  #allocation2 [shape = 'f32[2,8,128]{2,1,0:T(8,128)}', space=vmem, size = 0x2000, scoped, tag = 'scratch operand']
  %s0 = inlined_call_operand.hbm [shape: f32[2,8,28], index: 0, kind: input, shape index: {}]
  %s1 = inlined_call_operand.hbm [shape: f32[28,384], index: 1, kind: input, shape index: {}]
  %s2 = inlined_call_operand.hbm [shape: f32[128,384], index: 2, kind: input, shape index: {}]
  %s3 = inlined_call_operand.hbm [shape: f32[1,384], index: 3, kind: input, shape index: {}]
  %s4 = inlined_call_operand.vmem [shape: f32[1,384], index: 4, kind: input, shape index: {}]
  %s5 = inlined_call_operand.hbm [shape: f32[128,384], index: 5, kind: input, shape index: {}]
  %s6 = inlined_call_operand.hbm [shape: f32[128,384], index: 6, kind: input, shape index: {}]
  %s7 = inlined_call_operand.vmem [shape: f32[1,384], index: 7, kind: input, shape index: {}]
  %s8 = inlined_call_operand.vmem [shape: f32[1,384], index: 8, kind: input, shape index: {}]
  %s9 = inlined_call_operand.hbm [shape: f32[128,28], index: 9, kind: input, shape index: {}]
  %s10 = inlined_call_operand.vmem [shape: f32[1,28], index: 10, kind: input, shape index: {}]
  %s11 = inlined_call_operand.hbm [shape: f32[2,8,28], index: 11, kind: output, shape index: {}]
  %s12 = sld [smem:[#allocation0]]
  $region82: #{_lambda_.1} parent=0
    _
  %s14 = ssub.s32 1, %s12
  %s15 = scalar_select 0, %s14, %s12
  $region1: #{_lambda_.1} parent=0
    #allocation3 [shape = 'u8[8192]{0}', space=vmem, size = 0x2000, scoped, tag = 'input window, operand 0, single buffered']
    #allocation4 [shape = 's32[1]{0}', space=sflag, size = 0x4, scoped, tag = 'scoped memory for _lambda_.1']
    #allocation5 [shape = 's32[1]{0}', space=sflag, size = 0x4, scoped, tag = 'scoped memory for _lambda_.1']
    #allocation6 [shape = 'u8[49152]{0}', space=vmem, size = 0xc000, scoped, tag = 'input window, operand 1, single buffered']
    #allocation7 [shape = 's32[1]{0}', space=sflag, size = 0x4, scoped, tag = 'scoped memory for _lambda_.1']
    #allocation8 [shape = 'u8[196608]{0}', space=vmem, size = 0x30000, scoped, tag = 'input window, operand 2, single buffered']
    #allocation9 [shape = 'u8[1536]{0}', space=vmem, size = 0x800, scoped, tag = 'input window, operand 3, single buffered']
    #allocation10 [shape = 's32[1]{0}', space=sflag, size = 0x4, scoped, tag = 'scoped memory for _lambda_.1']
    #allocation11 [shape = 'u8[196608]{0}', space=vmem, size = 0x30000, scoped, tag = 'input window, operand 5, single buffered']
    #allocation12 [shape = 'u8[196608]{0}', space=vmem, size = 0x30000, scoped, tag = 'input window, operand 6, single buffered']
    #allocation13 [shape = 's32[1]{0}', space=sflag, size = 0x4, scoped, tag = 'scoped memory for _lambda_.1']
    #allocation14 [shape = 'u8[65536]{0}', space=vmem, size = 0x10000, scoped, tag = 'input window, operand 9, single buffered']
    #allocation15 [shape = 'u8[8192]{0}', space=vmem, size = 0x2000, scoped, tag = 'output window, operand 0, single buffered']
    %16 = vsyncpa [#allocation4], 0
    %17 = vsyncpa [#allocation7], 0
    %18 = vsyncpa [#allocation10], 0
    %19 = vsyncpa [#allocation13], 0
    %20 = vsyncpa [#allocation5], 0
    // Predicated region
    $region2: #{_lambda_.1} parent=1 // pred_check
      _
    $region3: #{_lambda_.1} parent=1 // pred_check_branch
      %22 = sbr.rel (0) target = $region5
    $region4: #{_lambda_.1} parent=1 // pred_region
      %s24 = ssub.s32 256, 256
      %25 = vsyncadd [#allocation4], %s24
      %s26 = sshll.u32 [#allocation3], 4
      %s27 = int_to_ptr.vmem [resolvable:$true] %s26
      %32 = dma.hbm_to_vmem [thread:$0]  %s0, 256, %s27, [#allocation4], 128, 128, 8
    $region5: #{_lambda_.1} parent=1 // pred_fallthru
      _
    // Predicated region
    $region6: #{_lambda_.1} parent=1 // pred_check
      _
    $region7: #{_lambda_.1} parent=1 // pred_check_branch
      %34 = sbr.rel (0) target = $region9
    $region8: #{_lambda_.1} parent=1 // pred_region
      %s36 = ssub.s32 1536, 1536
      %37 = vsyncadd [#allocation7], %s36
      %s38 = sshll.u32 [#allocation6], 4
      %s39 = int_to_ptr.vmem [resolvable:$true] %s38
      %44 = dma.hbm_to_vmem [thread:$0]  %s1, 1536, %s39, [#allocation7], 384, 384, 24
    $region9: #{_lambda_.1} parent=1 // pred_fallthru
      _
    // Predicated region
    $region10: #{_lambda_.1} parent=1 // pred_check
      _
    $region11: #{_lambda_.1} parent=1 // pred_check_branch
      %46 = sbr.rel (0) target = $region13
    $region12: #{_lambda_.1} parent=1 // pred_region
      %s48 = ssub.s32 6144, 6144
      %49 = vsyncadd [#allocation7], %s48
      %s50 = sshll.u32 [#allocation8], 4
      %s51 = int_to_ptr.vmem [resolvable:$true] %s50
      %56 = dma.hbm_to_vmem [thread:$0]  %s2, 6144, %s51, [#allocation7], 384, 384, 24
    $region13: #{_lambda_.1} parent=1 // pred_fallthru
      _
    // Predicated region
    $region14: #{_lambda_.1} parent=1 // pred_check
      _
    $region15: #{_lambda_.1} parent=1 // pred_check_branch
      %58 = sbr.rel (0) target = $region17
    $region16: #{_lambda_.1} parent=1 // pred_region
      %s60 = ssub.s32 48, 48
      %61 = vsyncadd [#allocation10], %s60
      %s63 = sshll.u32 [#allocation9], 4
      %s64 = int_to_ptr.vmem [resolvable:$true] %s63
      %66 = dma.hbm_to_vmem [thread:$0]  %s3, 48, %s64, [#allocation10]
    $region17: #{_lambda_.1} parent=1 // pred_fallthru
      _
    // Predicated region
    $region18: #{_lambda_.1} parent=1 // pred_check
      _
    $region19: #{_lambda_.1} parent=1 // pred_check_branch
      %68 = sbr.rel (0) target = $region21
    $region20: #{_lambda_.1} parent=1 // pred_region
      _
    $region21: #{_lambda_.1} parent=1 // pred_fallthru
      _
    // Predicated region
    $region22: #{_lambda_.1} parent=1 // pred_check
      _
    $region23: #{_lambda_.1} parent=1 // pred_check_branch
      %70 = sbr.rel (0) target = $region25
    $region24: #{_lambda_.1} parent=1 // pred_region
      %s72 = ssub.s32 6144, 6144
      %73 = vsyncadd [#allocation10], %s72
      %s74 = sshll.u32 [#allocation11], 4
      %s75 = int_to_ptr.vmem [resolvable:$true] %s74
      %80 = dma.hbm_to_vmem [thread:$0]  %s5, 6144, %s75, [#allocation10], 384, 384, 24
    $region25: #{_lambda_.1} parent=1 // pred_fallthru
      _
    // Predicated region
    $region26: #{_lambda_.1} parent=1 // pred_check
      _
    $region27: #{_lambda_.1} parent=1 // pred_check_branch
      %82 = sbr.rel (0) target = $region29
    $region28: #{_lambda_.1} parent=1 // pred_region
      %s84 = ssub.s32 6144, 6144
      %85 = vsyncadd [#allocation13], %s84
      %s86 = sshll.u32 [#allocation12], 4
      %s87 = int_to_ptr.vmem [resolvable:$true] %s86
      %92 = dma.hbm_to_vmem [thread:$0]  %s6, 6144, %s87, [#allocation13], 384, 384, 24
    $region29: #{_lambda_.1} parent=1 // pred_fallthru
      _
    // Predicated region
    $region30: #{_lambda_.1} parent=1 // pred_check
      _
    $region31: #{_lambda_.1} parent=1 // pred_check_branch
      %94 = sbr.rel (0) target = $region33
    $region32: #{_lambda_.1} parent=1 // pred_region
      _
    $region33: #{_lambda_.1} parent=1 // pred_fallthru
      _
    // Predicated region
    $region34: #{_lambda_.1} parent=1 // pred_check
      _
    $region35: #{_lambda_.1} parent=1 // pred_check_branch
      %96 = sbr.rel (0) target = $region37
    $region36: #{_lambda_.1} parent=1 // pred_region
      _
    $region37: #{_lambda_.1} parent=1 // pred_fallthru
      _
    // Predicated region
    $region38: #{_lambda_.1} parent=1 // pred_check
      _
    $region39: #{_lambda_.1} parent=1 // pred_check_branch
      %98 = sbr.rel (0) target = $region41
    $region40: #{_lambda_.1} parent=1 // pred_region
      %s100 = ssub.s32 2048, 2048
      %101 = vsyncadd [#allocation13], %s100
      %s102 = sshll.u32 [#allocation14], 4
      %s103 = int_to_ptr.vmem [resolvable:$true] %s102
      %108 = dma.hbm_to_vmem [thread:$0]  %s9, 2048, %s103, [#allocation13], 128, 128, 8
    $region41: #{_lambda_.1} parent=1 // pred_fallthru
      _
    // Predicated region
    $region42: #{_lambda_.1} parent=1 // pred_check
      _
    $region43: #{_lambda_.1} parent=1 // pred_check_branch
      %110 = sbr.rel (0) target = $region45
    $region44: #{_lambda_.1} parent=1 // pred_region
      _
    $region45: #{_lambda_.1} parent=1 // pred_fallthru
      _
    // Predicated region
    $region46: #{_lambda_.1} parent=1 // pred_check
      _
    $region47: #{_lambda_.1} parent=1 // pred_check_branch
      %112 = sbr.rel (0) target = $region49
    $region48: #{_lambda_.1} parent=1 // pred_region
      %113 = dma.done [#allocation4], 256
    $region49: #{_lambda_.1} parent=1 // pred_fallthru
      _
    // Predicated region
    $region50: #{_lambda_.1} parent=1 // pred_check
      _
    $region51: #{_lambda_.1} parent=1 // pred_check_branch
      %115 = sbr.rel (0) target = $region53
    $region52: #{_lambda_.1} parent=1 // pred_region
      %116 = dma.done [#allocation7], 1536
    $region53: #{_lambda_.1} parent=1 // pred_fallthru
      _
    // Predicated region
    $region54: #{_lambda_.1} parent=1 // pred_check
      _
    $region55: #{_lambda_.1} parent=1 // pred_check_branch
      %118 = sbr.rel (0) target = $region57
    $region56: #{_lambda_.1} parent=1 // pred_region
      %119 = dma.done [#allocation7], 6144
    $region57: #{_lambda_.1} parent=1 // pred_fallthru
      _
    // Predicated region
    $region58: #{_lambda_.1} parent=1 // pred_check
      _
    $region59: #{_lambda_.1} parent=1 // pred_check_branch
      %121 = sbr.rel (0) target = $region61
    $region60: #{_lambda_.1} parent=1 // pred_region
      %122 = dma.done [#allocation10], 48
    $region61: #{_lambda_.1} parent=1 // pred_fallthru
      _
    // Predicated region
    $region62: #{_lambda_.1} parent=1 // pred_check
      _
    $region63: #{_lambda_.1} parent=1 // pred_check_branch
      %124 = sbr.rel (0) target = $region65
    $region64: #{_lambda_.1} parent=1 // pred_region
      %125 = dma.done [#allocation10], 6144
    $region65: #{_lambda_.1} parent=1 // pred_fallthru
      _
    // Predicated region
    $region66: #{_lambda_.1} parent=1 // pred_check
      _
    $region67: #{_lambda_.1} parent=1 // pred_check_branch
      %127 = sbr.rel (0) target = $region69
    $region68: #{_lambda_.1} parent=1 // pred_region
      %128 = dma.done [#allocation13], 6144
    $region69: #{_lambda_.1} parent=1 // pred_fallthru
      _
    // Predicated region
    $region70: #{_lambda_.1} parent=1 // pred_check
      _
    $region71: #{_lambda_.1} parent=1 // pred_check_branch
      %130 = sbr.rel (0) target = $region73
    $region72: #{_lambda_.1} parent=1 // pred_region
      %131 = dma.done [#allocation13], 2048
    $region73: #{_lambda_.1} parent=1 // pred_fallthru
      _
    %v132 = vld [vmem:[#allocation3] sm:$0xff]
    %v133 = vld [vmem:[#allocation3 + $0x8] sm:$0xff]
    %v134 = vld [vmem:[#allocation6] sm:$0xff]
    %v135 = vld [vmem:[#allocation6 + $0x8] sm:$0xff]
    %v136 = vld [vmem:[#allocation6 + $0x10] sm:$0xff]
    %v137 = vld [vmem:[#allocation6 + $0x18] sm:$0xff]
    %v138 = vld [vmem:[#allocation6 + $0x20] sm:$0xff]
    %v139 = vld [vmem:[#allocation6 + $0x28] sm:$0xff]
    %v140 = vld [vmem:[#allocation6 + $0x30] sm:$0xff]
    %v141 = vld [vmem:[#allocation6 + $0x38] sm:$0xff]
    %v142 = vld [vmem:[#allocation6 + $0x40] sm:$0xff]
    %v143 = vld [vmem:[#allocation6 + $0x48] sm:$0xf]
    %v144 = vld [vmem:[#allocation6 + $0x50] sm:$0xf]
    %v145 = vld [vmem:[#allocation6 + $0x58] sm:$0xf]
    %v146 = vld [vmem:[#allocation9] sm:$0x7]
    %v148 = vlaneseq
    %v149 = vshrl.u32 %v148, 7
    %v150 = vsub.s32 0, %v149
    %v151 = vrot.slane %v146, %v150
    %v152 = vlaneseq
    %v153 = vshrl.u32 %v152, 7
    %v154 = vsub.s32 1, %v153
    %v155 = vrot.slane %v146, %v154
    %v156 = vlaneseq
    %v157 = vshrl.u32 %v156, 7
    %v158 = vsub.s32 2, %v157
    %v159 = vrot.slane %v146, %v158
    %vm163 = vcmask 228352
    %v165 = vsel %vm163, %v132, 0
    %v168 = vsel %vm163, %v133, 0
    %vm170 = vcmask 1043456
    %v172 = vsel %vm170, %v143, 0
    %v175 = vsel %vm170, %v144, 0
    %v178 = vsel %vm170, %v145, 0
    %180 = vmatprep.subr.mxu0 %v135
    %181 = vmatpush1.msra.mxu0 %v134
    %182 = vmatprep.subr.mxu0 %v138
    %183 = vmatpush1.msra.mxu0 %v137
    %184 = vmatprep.subr.mxu0 %v141
    %185 = vmatpush1.msra.mxu0 %v140
    %186 = vmatprep.subr.mxu0 %v175
    %187 = vmatpush1.msra.mxu0 %v172
    %188 = vmatprep.subr.mxu0 0.0
    %189 = vmatpush1.msra.mxu0 0.0
    %190 = vmatprep.subr.mxu0 0.0
    %191 = vmatpush1.msra.mxu0 0.0
    %192 = vmatprep.subr.mxu0 0.0
    %193 = vmatpush1.msra.mxu0 0.0
    %194 = vmatprep.subr.mxu0 0.0
    %195 = vmatpush1.msra.mxu0 0.0
    %196 = vmatprep.subr.mxu0 0.0
    %197 = vmatpush1.msra.mxu0 0.0
    %198 = vmatprep.subr.mxu0 0.0
    %199 = vmatpush1.msra.mxu0 0.0
    %200 = vmatprep.subr.mxu0 0.0
    %201 = vmatpush1.msra.mxu0 0.0
    %202 = vmatprep.subr.mxu0 0.0
    %203 = vmatpush1.msra.mxu0 0.0
    %204 = vmatprep.subr.mxu0 0.0
    %205 = vmatpush1.msra.mxu0 0.0
    %206 = vmatprep.subr.mxu0 0.0
    %207 = vmatpush1.msra.mxu0 0.0
    %208 = vmatprep.subr.mxu0 0.0
    %209 = vmatpush1.msra.mxu0 0.0
    %210 = vmatprep.subr.mxu0 0.0
    %211 = vmatpush1.msra.mxu0 0.0
    %212 = vmatprep.subr.mxu0 0.0
    %213 = vmatpush1.msra.mxu0 0.0
    %214 = vmatprep.subr.mxu0 0.0
    %215 = vmatpush1.msra.mxu0 0.0
    %216 = vmatprep.subr.mxu0 0.0
    %217 = vmatpush1.msra.mxu0 0.0
    %218 = vmatprep.subr.mxu0 0.0
    %219 = vmatpush1.msra.mxu0 0.0
    %220 = vmatprep.subr.mxu0 0.0
    %221 = vmatpush1.msra.mxu0 0.0
    %222 = vmatprep.subr.mxu0 0.0
    %223 = vmatpush1.msra.mxu0 0.0
    %224 = vmatprep.subr.mxu0 0.0
    %225 = vmatpush1.msra.mxu0 0.0
    %226 = vmatprep.subr.mxu0 0.0
    %227 = vmatpush1.msra.mxu0 0.0
    %228 = vmatprep.subr.mxu0 0.0
    %229 = vmatpush1.msra.mxu0 0.0
    %230 = vmatprep.subr.mxu0 0.0
    %231 = vmatpush1.msra.mxu0 0.0
    %232 = vmatprep.subr.mxu0 0.0
    %233 = vmatpush1.msra.mxu0 0.0
    %234 = vmatprep.subr.mxu0 0.0
    %235 = vmatpush1.msra.mxu0 0.0
    %236 = vmatprep.subr.mxu0 0.0
    %237 = vmatpush1.msra.mxu0 0.0
    %238 = vmatprep.subr.mxu0 0.0
    %239 = vmatpush1.msra.mxu0 0.0
    %240 = vmatprep.subr.mxu0 0.0
    %241 = vmatpush1.msra.mxu0 0.0
    %242 = vmatprep.subr.mxu0 0.0
    %243 = vmatpush1.msra.mxu0 0.0
    %244 = vmatprep.mubr.f32.mxu0 0.0
    %245 = vmatmul.mubr.f32.gmra.mrb[0].mxu0 %v165
    %v246 = vpop.f32.mrb[0].mxu0
    %v247 = vadd.f32 %v151, %v246
    %v248 = vpop.f32.mrb[0].mxu0
    %v249 = vadd.f32 %v155, %v248
    %250 = vmatprep.mubr.f32.mxu0 0.0
    %251 = vmatmul.mubr.f32.gmra.mrb[0].mxu0 %v168
    %v252 = vpop.f32.mrb[0].mxu0
    %v253 = vadd.f32 %v151, %v252
    %v254 = vpop.f32.mrb[0].mxu0
    %v255 = vadd.f32 %v155, %v254
    %256 = vdwg.mxu0
    %257 = vmatprep.subr.mxu0 0.0
    %258 = vmatpush1.msra.mxu0 %v136
    %259 = vmatprep.subr.mxu0 0.0
    %260 = vmatpush1.msra.mxu0 %v139
    %261 = vmatprep.subr.mxu0 0.0
    %262 = vmatpush1.msra.mxu0 %v142
    %263 = vmatprep.subr.mxu0 0.0
    %264 = vmatpush1.msra.mxu0 %v178
    %265 = vmatprep.subr.mxu0 0.0
    %266 = vmatpush1.msra.mxu0 0.0
    %267 = vmatprep.subr.mxu0 0.0
    %268 = vmatpush1.msra.mxu0 0.0
    %269 = vmatprep.subr.mxu0 0.0
    %270 = vmatpush1.msra.mxu0 0.0
    %271 = vmatprep.subr.mxu0 0.0
    %272 = vmatpush1.msra.mxu0 0.0
    %273 = vmatprep.subr.mxu0 0.0
    %274 = vmatpush1.msra.mxu0 0.0
    %275 = vmatprep.subr.mxu0 0.0
    %276 = vmatpush1.msra.mxu0 0.0
    %277 = vmatprep.subr.mxu0 0.0
    %278 = vmatpush1.msra.mxu0 0.0
    %279 = vmatprep.subr.mxu0 0.0
    %280 = vmatpush1.msra.mxu0 0.0
    %281 = vmatprep.subr.mxu0 0.0
    %282 = vmatpush1.msra.mxu0 0.0
    %283 = vmatprep.subr.mxu0 0.0
    %284 = vmatpush1.msra.mxu0 0.0
    %285 = vmatprep.subr.mxu0 0.0
    %286 = vmatpush1.msra.mxu0 0.0
    %287 = vmatprep.subr.mxu0 0.0
    %288 = vmatpush1.msra.mxu0 0.0
    %289 = vmatprep.subr.mxu0 0.0
    %290 = vmatpush1.msra.mxu0 0.0
    %291 = vmatprep.subr.mxu0 0.0
    %292 = vmatpush1.msra.mxu0 0.0
    %293 = vmatprep.subr.mxu0 0.0
    %294 = vmatpush1.msra.mxu0 0.0
    %295 = vmatprep.subr.mxu0 0.0
    %296 = vmatpush1.msra.mxu0 0.0
    %297 = vmatprep.subr.mxu0 0.0
    %298 = vmatpush1.msra.mxu0 0.0
    %299 = vmatprep.subr.mxu0 0.0
    %300 = vmatpush1.msra.mxu0 0.0
    %301 = vmatprep.subr.mxu0 0.0
    %302 = vmatpush1.msra.mxu0 0.0
    %303 = vmatprep.subr.mxu0 0.0
    %304 = vmatpush1.msra.mxu0 0.0
    %305 = vmatprep.subr.mxu0 0.0
    %306 = vmatpush1.msra.mxu0 0.0
    %307 = vmatprep.subr.mxu0 0.0
    %308 = vmatpush1.msra.mxu0 0.0
    %309 = vmatprep.subr.mxu0 0.0
    %310 = vmatpush1.msra.mxu0 0.0
    %311 = vmatprep.subr.mxu0 0.0
    %312 = vmatpush1.msra.mxu0 0.0
    %313 = vmatprep.subr.mxu0 0.0
    %314 = vmatpush1.msra.mxu0 0.0
    %315 = vmatprep.subr.mxu0 0.0
    %316 = vmatpush1.msra.mxu0 0.0
    %317 = vmatprep.subr.mxu0 0.0
    %318 = vmatpush1.msra.mxu0 0.0
    %319 = vmatprep.subr.mxu0 0.0
    %320 = vmatpush1.msra.mxu0 0.0
    %321 = vmatprep.mubr.f32.mxu0 0.0
    %322 = vmatmul.mubr.f32.gmra.mrb[0].mxu0 %v165
    %v323 = vpop.f32.mrb[0].mxu0
    %v324 = vadd.f32 %v159, %v323
    %v325 = vpop.f32.mrb[0].mxu0
    %326 = vmatprep.mubr.f32.mxu0 0.0
    %327 = vmatmul.mubr.f32.gmra.mrb[0].mxu0 %v168
    %v328 = vpop.f32.mrb[0].mxu0
    %v329 = vadd.f32 %v159, %v328
    %v330 = vpop.f32.mrb[0].mxu0
    %331 = vdwg.mxu0
    %v332 = vld [vmem:[#allocation8] sm:$0xff]
    %v333 = vld [vmem:[#allocation8 + $0x8] sm:$0xff]
    %v334 = vld [vmem:[#allocation8 + $0x10] sm:$0xff]
    %v335 = vld [vmem:[#allocation8 + $0x18] sm:$0xff]
    %v336 = vld [vmem:[#allocation8 + $0x20] sm:$0xff]
    %v337 = vld [vmem:[#allocation8 + $0x28] sm:$0xff]
    %v338 = vld [vmem:[#allocation8 + $0x30] sm:$0xff]
    %v339 = vld [vmem:[#allocation8 + $0x38] sm:$0xff]
    %v340 = vld [vmem:[#allocation8 + $0x40] sm:$0xff]
    %v341 = vld [vmem:[#allocation8 + $0x48] sm:$0xff]
    %v342 = vld [vmem:[#allocation8 + $0x50] sm:$0xff]
    %v343 = vld [vmem:[#allocation8 + $0x58] sm:$0xff]
    %v344 = vld [vmem:[#allocation8 + $0x60] sm:$0xff]
    %v345 = vld [vmem:[#allocation8 + $0x68] sm:$0xff]
    %v346 = vld [vmem:[#allocation8 + $0x70] sm:$0xff]
    %v347 = vld [vmem:[#allocation8 + $0x78] sm:$0xff]
    %v348 = vld [vmem:[#allocation8 + $0x80] sm:$0xff]
    %v349 = vld [vmem:[#allocation8 + $0x88] sm:$0xff]
    %v350 = vld [vmem:[#allocation8 + $0x90] sm:$0xff]
    %v351 = vld [vmem:[#allocation8 + $0x98] sm:$0xff]
    %v352 = vld [vmem:[#allocation8 + $0xa0] sm:$0xff]
    %v353 = vld [vmem:[#allocation8 + $0xa8] sm:$0xff]
    %v354 = vld [vmem:[#allocation8 + $0xb0] sm:$0xff]
    %v355 = vld [vmem:[#allocation8 + $0xb8] sm:$0xff]
    %v356 = vld [vmem:[#allocation8 + $0xc0] sm:$0xff]
    %v357 = vld [vmem:[#allocation8 + $0xc8] sm:$0xff]
    %v358 = vld [vmem:[#allocation8 + $0xd0] sm:$0xff]
    %v359 = vld [vmem:[#allocation8 + $0xd8] sm:$0xff]
    %v360 = vld [vmem:[#allocation8 + $0xe0] sm:$0xff]
    %v361 = vld [vmem:[#allocation8 + $0xe8] sm:$0xff]
    %v362 = vld [vmem:[#allocation8 + $0xf0] sm:$0xff]
    %v363 = vld [vmem:[#allocation8 + $0xf8] sm:$0xff]
    %v364 = vld [vmem:[#allocation8 + $0x100] sm:$0xff]
    %v365 = vld [vmem:[#allocation8 + $0x108] sm:$0xff]
    %v366 = vld [vmem:[#allocation8 + $0x110] sm:$0xff]
    %v367 = vld [vmem:[#allocation8 + $0x118] sm:$0xff]
    %v368 = vld [vmem:[#allocation8 + $0x120] sm:$0xff]
    %v369 = vld [vmem:[#allocation8 + $0x128] sm:$0xff]
    %v370 = vld [vmem:[#allocation8 + $0x130] sm:$0xff]
    %v371 = vld [vmem:[#allocation8 + $0x138] sm:$0xff]
    %v372 = vld [vmem:[#allocation8 + $0x140] sm:$0xff]
    %v373 = vld [vmem:[#allocation8 + $0x148] sm:$0xff]
    %v374 = vld [vmem:[#allocation8 + $0x150] sm:$0xff]
    %v375 = vld [vmem:[#allocation8 + $0x158] sm:$0xff]
    %v376 = vld [vmem:[#allocation8 + $0x160] sm:$0xff]
    %v377 = vld [vmem:[#allocation8 + $0x168] sm:$0xff]
    %v378 = vld [vmem:[#allocation8 + $0x170] sm:$0xff]
    %v379 = vld [vmem:[#allocation8 + $0x178] sm:$0xff]
    %v380 = vld [vmem:[%s4] sm:$0x7]
    %v382 = vlaneseq
    %v383 = vshrl.u32 %v382, 7
    %v384 = vsub.s32 0, %v383
    %v385 = vrot.slane %v380, %v384
    %v386 = vlaneseq
    %v387 = vshrl.u32 %v386, 7
    %v388 = vsub.s32 1, %v387
    %v389 = vrot.slane %v380, %v388
    %v390 = vlaneseq
    %v391 = vshrl.u32 %v390, 7
    %v392 = vsub.s32 2, %v391
    %v393 = vrot.slane %v380, %v392
    %397 = vmatprep.subr.mxu0 %v333
    %398 = vmatpush1.msra.mxu0 %v332
    %399 = vmatprep.subr.mxu0 %v336
    %400 = vmatpush1.msra.mxu0 %v335
    %401 = vmatprep.subr.mxu0 %v339
    %402 = vmatpush1.msra.mxu0 %v338
    %403 = vmatprep.subr.mxu0 %v342
    %404 = vmatpush1.msra.mxu0 %v341
    %405 = vmatprep.subr.mxu0 %v345
    %406 = vmatpush1.msra.mxu0 %v344
    %407 = vmatprep.subr.mxu0 %v348
    %408 = vmatpush1.msra.mxu0 %v347
    %409 = vmatprep.subr.mxu0 %v351
    %410 = vmatpush1.msra.mxu0 %v350
    %411 = vmatprep.subr.mxu0 %v354
    %412 = vmatpush1.msra.mxu0 %v353
    %413 = vmatprep.subr.mxu0 %v357
    %414 = vmatpush1.msra.mxu0 %v356
    %415 = vmatprep.subr.mxu0 %v360
    %416 = vmatpush1.msra.mxu0 %v359
    %417 = vmatprep.subr.mxu0 %v363
    %418 = vmatpush1.msra.mxu0 %v362
    %419 = vmatprep.subr.mxu0 %v366
    %420 = vmatpush1.msra.mxu0 %v365
    %421 = vmatprep.subr.mxu0 %v369
    %422 = vmatpush1.msra.mxu0 %v368
    %423 = vmatprep.subr.mxu0 %v372
    %424 = vmatpush1.msra.mxu0 %v371
    %425 = vmatprep.subr.mxu0 %v375
    %426 = vmatpush1.msra.mxu0 %v374
    %427 = vmatprep.subr.mxu0 %v378
    %428 = vmatpush1.msra.mxu0 %v377
    %429 = vmatprep.subr.mxu0 0.0
    %430 = vmatpush1.msra.mxu0 0.0
    %431 = vmatprep.subr.mxu0 0.0
    %432 = vmatpush1.msra.mxu0 0.0
    %433 = vmatprep.subr.mxu0 0.0
    %434 = vmatpush1.msra.mxu0 0.0
    %435 = vmatprep.subr.mxu0 0.0
    %436 = vmatpush1.msra.mxu0 0.0
    %437 = vmatprep.subr.mxu0 0.0
    %438 = vmatpush1.msra.mxu0 0.0
    %439 = vmatprep.subr.mxu0 0.0
    %440 = vmatpush1.msra.mxu0 0.0
    %441 = vmatprep.subr.mxu0 0.0
    %442 = vmatpush1.msra.mxu0 0.0
    %443 = vmatprep.subr.mxu0 0.0
    %444 = vmatpush1.msra.mxu0 0.0
    %445 = vmatprep.subr.mxu0 0.0
    %446 = vmatpush1.msra.mxu0 0.0
    %447 = vmatprep.subr.mxu0 0.0
    %448 = vmatpush1.msra.mxu0 0.0
    %449 = vmatprep.subr.mxu0 0.0
    %450 = vmatpush1.msra.mxu0 0.0
    %451 = vmatprep.subr.mxu0 0.0
    %452 = vmatpush1.msra.mxu0 0.0
    %453 = vmatprep.subr.mxu0 0.0
    %454 = vmatpush1.msra.mxu0 0.0
    %455 = vmatprep.subr.mxu0 0.0
    %456 = vmatpush1.msra.mxu0 0.0
    %457 = vmatprep.subr.mxu0 0.0
    %458 = vmatpush1.msra.mxu0 0.0
    %459 = vmatprep.subr.mxu0 0.0
    %460 = vmatpush1.msra.mxu0 0.0
    %461 = vmatprep.mubr.f32.mxu0 0.0
    %462 = vmatmul.mubr.f32.gmra.mrb[0].mxu0 0.0
    %v463 = vpop.f32.mrb[0].mxu0
    %v464 = vadd.f32 %v385, %v463
    %v465 = vpop.f32.mrb[0].mxu0
    %v466 = vadd.f32 %v389, %v465
    %467 = vdwg.mxu0
    %468 = vmatprep.subr.mxu0 0.0
    %469 = vmatpush1.msra.mxu0 %v334
    %470 = vmatprep.subr.mxu0 0.0
    %471 = vmatpush1.msra.mxu0 %v337
    %472 = vmatprep.subr.mxu0 0.0
    %473 = vmatpush1.msra.mxu0 %v340
    %474 = vmatprep.subr.mxu0 0.0
    %475 = vmatpush1.msra.mxu0 %v343
    %476 = vmatprep.subr.mxu0 0.0
    %477 = vmatpush1.msra.mxu0 %v346
    %478 = vmatprep.subr.mxu0 0.0
    %479 = vmatpush1.msra.mxu0 %v349
    %480 = vmatprep.subr.mxu0 0.0
    %481 = vmatpush1.msra.mxu0 %v352
    %482 = vmatprep.subr.mxu0 0.0
    %483 = vmatpush1.msra.mxu0 %v355
    %484 = vmatprep.subr.mxu0 0.0
    %485 = vmatpush1.msra.mxu0 %v358
    %486 = vmatprep.subr.mxu0 0.0
    %487 = vmatpush1.msra.mxu0 %v361
    %488 = vmatprep.subr.mxu0 0.0
    %489 = vmatpush1.msra.mxu0 %v364
    %490 = vmatprep.subr.mxu0 0.0
    %491 = vmatpush1.msra.mxu0 %v367
    %492 = vmatprep.subr.mxu0 0.0
    %493 = vmatpush1.msra.mxu0 %v370
    %494 = vmatprep.subr.mxu0 0.0
    %495 = vmatpush1.msra.mxu0 %v373
    %496 = vmatprep.subr.mxu0 0.0
    %497 = vmatpush1.msra.mxu0 %v376
    %498 = vmatprep.subr.mxu0 0.0
    %499 = vmatpush1.msra.mxu0 %v379
    %500 = vmatprep.subr.mxu0 0.0
    %501 = vmatpush1.msra.mxu0 0.0
    %502 = vmatprep.subr.mxu0 0.0
    %503 = vmatpush1.msra.mxu0 0.0
    %504 = vmatprep.subr.mxu0 0.0
    %505 = vmatpush1.msra.mxu0 0.0
    %506 = vmatprep.subr.mxu0 0.0
    %507 = vmatpush1.msra.mxu0 0.0
    %508 = vmatprep.subr.mxu0 0.0
    %509 = vmatpush1.msra.mxu0 0.0
    %510 = vmatprep.subr.mxu0 0.0
    %511 = vmatpush1.msra.mxu0 0.0
    %512 = vmatprep.subr.mxu0 0.0
    %513 = vmatpush1.msra.mxu0 0.0
    %514 = vmatprep.subr.mxu0 0.0
    %515 = vmatpush1.msra.mxu0 0.0
    %516 = vmatprep.subr.mxu0 0.0
    %517 = vmatpush1.msra.mxu0 0.0
    %518 = vmatprep.subr.mxu0 0.0
    %519 = vmatpush1.msra.mxu0 0.0
    %520 = vmatprep.subr.mxu0 0.0
    %521 = vmatpush1.msra.mxu0 0.0
    %522 = vmatprep.subr.mxu0 0.0
    %523 = vmatpush1.msra.mxu0 0.0
    %524 = vmatprep.subr.mxu0 0.0
    %525 = vmatpush1.msra.mxu0 0.0
    %526 = vmatprep.subr.mxu0 0.0
    %527 = vmatpush1.msra.mxu0 0.0
    %528 = vmatprep.subr.mxu0 0.0
    %529 = vmatpush1.msra.mxu0 0.0
    %530 = vmatprep.subr.mxu0 0.0
    %531 = vmatpush1.msra.mxu0 0.0
    %532 = vmatprep.mubr.f32.mxu0 0.0
    %533 = vmatmul.mubr.f32.gmra.mrb[0].mxu0 0.0
    %v534 = vpop.f32.mrb[0].mxu0
    %v535 = vadd.f32 %v393, %v534
    %v536 = vpop.f32.mrb[0].mxu0
    %537 = vdwg.mxu0
    %v539 = vrot.slane %v464, 1
    %v542 = vadd.f32 %v247, %v464
    %v543 = vadd.f32 %v253, %v539
    %v544 = vxor.u32 %v542, 2147483648
    %v545 = vxor.u32 %v543, 2147483648
    %v546 = vmul.f32 %v544, 1.442695
    %v547 = vpow.pop %v546
    %v548 = vmul.f32 %v545, 1.442695
    %v549 = vpow.pop %v548
    %v550 = vadd.f32 %v547, 1.0
    %v551 = vadd.f32 %v549, 1.0
    %v552 = vrcp.pop %v550
    %v553 = vmul.f32 1.0, %v552
    %v554 = vrcp.pop %v551
    %v555 = vmul.f32 1.0, %v554
    %v557 = vrot.slane %v466, 1
    %v560 = vadd.f32 %v249, %v466
    %v561 = vadd.f32 %v255, %v557
    %v562 = vxor.u32 %v560, 2147483648
    %v563 = vxor.u32 %v561, 2147483648
    %v564 = vmul.f32 %v562, 1.442695
    %v565 = vpow.pop %v564
    %v566 = vmul.f32 %v563, 1.442695
    %v567 = vpow.pop %v566
    %v568 = vadd.f32 %v565, 1.0
    %v569 = vadd.f32 %v567, 1.0
    %v570 = vrcp.pop %v568
    %v571 = vmul.f32 1.0, %v570
    %v572 = vrcp.pop %v569
    %v573 = vmul.f32 1.0, %v572
    %v575 = vrot.slane %v535, 1
    %v578 = vmul.f32 %v553, %v535
    %v579 = vmul.f32 %v555, %v575
    %v580 = vadd.f32 %v324, %v578
    %v581 = vadd.f32 %v329, %v579
    %v582 = vtanh.pop %v580
    %v583 = vtanh.pop %v581
    %v584 = vsub.f32 1.0, %v571
    %v585 = vsub.f32 1.0, %v573
    %v586 = vmul.f32 %v584, %v582
    %v587 = vmul.f32 %v585, %v583
    %v588 = vmul.f32 %v571, 0.0
    %v589 = vmul.f32 %v573, 0.0
    %v590 = vadd.f32 %v586, %v588
    %v591 = vadd.f32 %v587, %v589
    %v594 = vrot.slane %v591, 7
    %vm595 = vcmask 1041409
    %v596 = vsel %vm595, %v594, %v590
    %598 = vmatprep.subr.mxu0 %v333
    %599 = vmatpush1.msra.mxu0 %v332
    %600 = vmatprep.subr.mxu0 %v336
    %601 = vmatpush1.msra.mxu0 %v335
    %602 = vmatprep.subr.mxu0 %v339
    %603 = vmatpush1.msra.mxu0 %v338
    %604 = vmatprep.subr.mxu0 %v342
    %605 = vmatpush1.msra.mxu0 %v341
    %606 = vmatprep.subr.mxu0 %v345
    %607 = vmatpush1.msra.mxu0 %v344
    %608 = vmatprep.subr.mxu0 %v348
    %609 = vmatpush1.msra.mxu0 %v347
    %610 = vmatprep.subr.mxu0 %v351
    %611 = vmatpush1.msra.mxu0 %v350
    %612 = vmatprep.subr.mxu0 %v354
    %613 = vmatpush1.msra.mxu0 %v353
    %614 = vmatprep.subr.mxu0 %v357
    %615 = vmatpush1.msra.mxu0 %v356
    %616 = vmatprep.subr.mxu0 %v360
    %617 = vmatpush1.msra.mxu0 %v359
    %618 = vmatprep.subr.mxu0 %v363
    %619 = vmatpush1.msra.mxu0 %v362
    %620 = vmatprep.subr.mxu0 %v366
    %621 = vmatpush1.msra.mxu0 %v365
    %622 = vmatprep.subr.mxu0 %v369
    %623 = vmatpush1.msra.mxu0 %v368
    %624 = vmatprep.subr.mxu0 %v372
    %625 = vmatpush1.msra.mxu0 %v371
    %626 = vmatprep.subr.mxu0 %v375
    %627 = vmatpush1.msra.mxu0 %v374
    %628 = vmatprep.subr.mxu0 %v378
    %629 = vmatpush1.msra.mxu0 %v377
    %630 = vmatprep.subr.mxu0 0.0
    %631 = vmatpush1.msra.mxu0 0.0
    %632 = vmatprep.subr.mxu0 0.0
    %633 = vmatpush1.msra.mxu0 0.0
    %634 = vmatprep.subr.mxu0 0.0
    %635 = vmatpush1.msra.mxu0 0.0
    %636 = vmatprep.subr.mxu0 0.0
    %637 = vmatpush1.msra.mxu0 0.0
    %638 = vmatprep.subr.mxu0 0.0
    %639 = vmatpush1.msra.mxu0 0.0
    %640 = vmatprep.subr.mxu0 0.0
    %641 = vmatpush1.msra.mxu0 0.0
    %642 = vmatprep.subr.mxu0 0.0
    %643 = vmatpush1.msra.mxu0 0.0
    %644 = vmatprep.subr.mxu0 0.0
    %645 = vmatpush1.msra.mxu0 0.0
    %646 = vmatprep.subr.mxu0 0.0
    %647 = vmatpush1.msra.mxu0 0.0
    %648 = vmatprep.subr.mxu0 0.0
    %649 = vmatpush1.msra.mxu0 0.0
    %650 = vmatprep.subr.mxu0 0.0
    %651 = vmatpush1.msra.mxu0 0.0
    %652 = vmatprep.subr.mxu0 0.0
    %653 = vmatpush1.msra.mxu0 0.0
    %654 = vmatprep.subr.mxu0 0.0
    %655 = vmatpush1.msra.mxu0 0.0
    %656 = vmatprep.subr.mxu0 0.0
    %657 = vmatpush1.msra.mxu0 0.0
    %658 = vmatprep.subr.mxu0 0.0
    %659 = vmatpush1.msra.mxu0 0.0
    %660 = vmatprep.subr.mxu0 0.0
    %661 = vmatpush1.msra.mxu0 0.0
    %662 = vmatprep.mubr.f32.mxu0 0.0
    %663 = vmatmul.mubr.f32.gmra.mrb[0].mxu0 %v596
    %v664 = vpop.f32.mrb[0].mxu0
    %v665 = vadd.f32 %v385, %v664
    %v666 = vpop.f32.mrb[0].mxu0
    %v667 = vadd.f32 %v389, %v666
    %668 = vdwg.mxu0
    %669 = vmatprep.subr.mxu0 0.0
    %670 = vmatpush1.msra.mxu0 %v334
    %671 = vmatprep.subr.mxu0 0.0
    %672 = vmatpush1.msra.mxu0 %v337
    %673 = vmatprep.subr.mxu0 0.0
    %674 = vmatpush1.msra.mxu0 %v340
    %675 = vmatprep.subr.mxu0 0.0
    %676 = vmatpush1.msra.mxu0 %v343
    %677 = vmatprep.subr.mxu0 0.0
    %678 = vmatpush1.msra.mxu0 %v346
    %679 = vmatprep.subr.mxu0 0.0
    %680 = vmatpush1.msra.mxu0 %v349
    %681 = vmatprep.subr.mxu0 0.0
    %682 = vmatpush1.msra.mxu0 %v352
    %683 = vmatprep.subr.mxu0 0.0
    %684 = vmatpush1.msra.mxu0 %v355
    %685 = vmatprep.subr.mxu0 0.0
    %686 = vmatpush1.msra.mxu0 %v358
    %687 = vmatprep.subr.mxu0 0.0
    %688 = vmatpush1.msra.mxu0 %v361
    %689 = vmatprep.subr.mxu0 0.0
    %690 = vmatpush1.msra.mxu0 %v364
    %691 = vmatprep.subr.mxu0 0.0
    %692 = vmatpush1.msra.mxu0 %v367
    %693 = vmatprep.subr.mxu0 0.0
    %694 = vmatpush1.msra.mxu0 %v370
    %695 = vmatprep.subr.mxu0 0.0
    %696 = vmatpush1.msra.mxu0 %v373
    %697 = vmatprep.subr.mxu0 0.0
    %698 = vmatpush1.msra.mxu0 %v376
    %699 = vmatprep.subr.mxu0 0.0
    %700 = vmatpush1.msra.mxu0 %v379
    %701 = vmatprep.subr.mxu0 0.0
    %702 = vmatpush1.msra.mxu0 0.0
    %703 = vmatprep.subr.mxu0 0.0
    %704 = vmatpush1.msra.mxu0 0.0
    %705 = vmatprep.subr.mxu0 0.0
    %706 = vmatpush1.msra.mxu0 0.0
    %707 = vmatprep.subr.mxu0 0.0
    %708 = vmatpush1.msra.mxu0 0.0
    %709 = vmatprep.subr.mxu0 0.0
    %710 = vmatpush1.msra.mxu0 0.0
    %711 = vmatprep.subr.mxu0 0.0
    %712 = vmatpush1.msra.mxu0 0.0
    %713 = vmatprep.subr.mxu0 0.0
    %714 = vmatpush1.msra.mxu0 0.0
    %715 = vmatprep.subr.mxu0 0.0
    %716 = vmatpush1.msra.mxu0 0.0
    %717 = vmatprep.subr.mxu0 0.0
    %718 = vmatpush1.msra.mxu0 0.0
    %719 = vmatprep.subr.mxu0 0.0
    %720 = vmatpush1.msra.mxu0 0.0
    %721 = vmatprep.subr.mxu0 0.0
    %722 = vmatpush1.msra.mxu0 0.0
    %723 = vmatprep.subr.mxu0 0.0
    %724 = vmatpush1.msra.mxu0 0.0
    %725 = vmatprep.subr.mxu0 0.0
    %726 = vmatpush1.msra.mxu0 0.0
    %727 = vmatprep.subr.mxu0 0.0
    %728 = vmatpush1.msra.mxu0 0.0
    %729 = vmatprep.subr.mxu0 0.0
    %730 = vmatpush1.msra.mxu0 0.0
    %731 = vmatprep.subr.mxu0 0.0
    %732 = vmatpush1.msra.mxu0 0.0
    %733 = vmatprep.mubr.f32.mxu0 0.0
    %734 = vmatmul.mubr.f32.gmra.mrb[0].mxu0 %v596
    %v735 = vpop.f32.mrb[0].mxu0
    %v736 = vadd.f32 %v393, %v735
    %v737 = vpop.f32.mrb[0].mxu0
    %738 = vdwg.mxu0
    %v740 = vrot.slane %v665, 7
    %v743 = vadd.f32 %v247, %v740
    %v744 = vadd.f32 %v253, %v665
    %v745 = vxor.u32 %v743, 2147483648
    %v746 = vxor.u32 %v744, 2147483648
    %v747 = vmul.f32 %v745, 1.442695
    %v748 = vpow.pop %v747
    %v749 = vmul.f32 %v746, 1.442695
    %v750 = vpow.pop %v749
    %v751 = vadd.f32 %v748, 1.0
    %v752 = vadd.f32 %v750, 1.0
    %v753 = vrcp.pop %v751
    %v754 = vmul.f32 1.0, %v753
    %v755 = vrcp.pop %v752
    %v756 = vmul.f32 1.0, %v755
    %v758 = vrot.slane %v667, 7
    %v761 = vadd.f32 %v249, %v758
    %v762 = vadd.f32 %v255, %v667
    %v763 = vxor.u32 %v761, 2147483648
    %v764 = vxor.u32 %v762, 2147483648
    %v765 = vmul.f32 %v763, 1.442695
    %v766 = vpow.pop %v765
    %v767 = vmul.f32 %v764, 1.442695
    %v768 = vpow.pop %v767
    %v769 = vadd.f32 %v766, 1.0
    %v770 = vadd.f32 %v768, 1.0
    %v771 = vrcp.pop %v769
    %v772 = vmul.f32 1.0, %v771
    %v773 = vrcp.pop %v770
    %v774 = vmul.f32 1.0, %v773
    %v776 = vrot.slane %v736, 7
    %v779 = vmul.f32 %v754, %v776
    %v780 = vmul.f32 %v756, %v736
    %v781 = vadd.f32 %v324, %v779
    %v782 = vadd.f32 %v329, %v780
    %v783 = vtanh.pop %v781
    %v784 = vtanh.pop %v782
    %v785 = vsub.f32 1.0, %v772
    %v786 = vsub.f32 1.0, %v774
    %v787 = vmul.f32 %v785, %v783
    %v788 = vmul.f32 %v786, %v784
    %v789 = vrot.slane %v590, 7
    %v792 = vmul.f32 %v772, %v789
    %v793 = vmul.f32 %v774, %v594
    %v794 = vadd.f32 %v787, %v792
    %v795 = vadd.f32 %v788, %v793
    %v798 = vrot.slane %v794, 1
    %v799 = vsel %vm595, %v795, %v798
    %801 = vmatprep.subr.mxu0 %v333
    %802 = vmatpush1.msra.mxu0 %v332
    %803 = vmatprep.subr.mxu0 %v336
    %804 = vmatpush1.msra.mxu0 %v335
    %805 = vmatprep.subr.mxu0 %v339
    %806 = vmatpush1.msra.mxu0 %v338
    %807 = vmatprep.subr.mxu0 %v342
    %808 = vmatpush1.msra.mxu0 %v341
    %809 = vmatprep.subr.mxu0 %v345
    %810 = vmatpush1.msra.mxu0 %v344
    %811 = vmatprep.subr.mxu0 %v348
    %812 = vmatpush1.msra.mxu0 %v347
    %813 = vmatprep.subr.mxu0 %v351
    %814 = vmatpush1.msra.mxu0 %v350
    %815 = vmatprep.subr.mxu0 %v354
    %816 = vmatpush1.msra.mxu0 %v353
    %817 = vmatprep.subr.mxu0 %v357
    %818 = vmatpush1.msra.mxu0 %v356
    %819 = vmatprep.subr.mxu0 %v360
    %820 = vmatpush1.msra.mxu0 %v359
    %821 = vmatprep.subr.mxu0 %v363
    %822 = vmatpush1.msra.mxu0 %v362
    %823 = vmatprep.subr.mxu0 %v366
    %824 = vmatpush1.msra.mxu0 %v365
    %825 = vmatprep.subr.mxu0 %v369
    %826 = vmatpush1.msra.mxu0 %v368
    %827 = vmatprep.subr.mxu0 %v372
    %828 = vmatpush1.msra.mxu0 %v371
    %829 = vmatprep.subr.mxu0 %v375
    %830 = vmatpush1.msra.mxu0 %v374
    %831 = vmatprep.subr.mxu0 %v378
    %832 = vmatpush1.msra.mxu0 %v377
    %833 = vmatprep.subr.mxu0 0.0
    %834 = vmatpush1.msra.mxu0 0.0
    %835 = vmatprep.subr.mxu0 0.0
    %836 = vmatpush1.msra.mxu0 0.0
    %837 = vmatprep.subr.mxu0 0.0
    %838 = vmatpush1.msra.mxu0 0.0
    %839 = vmatprep.subr.mxu0 0.0
    %840 = vmatpush1.msra.mxu0 0.0
    %841 = vmatprep.subr.mxu0 0.0
    %842 = vmatpush1.msra.mxu0 0.0
    %843 = vmatprep.subr.mxu0 0.0
    %844 = vmatpush1.msra.mxu0 0.0
    %845 = vmatprep.subr.mxu0 0.0
    %846 = vmatpush1.msra.mxu0 0.0
    %847 = vmatprep.subr.mxu0 0.0
    %848 = vmatpush1.msra.mxu0 0.0
    %849 = vmatprep.subr.mxu0 0.0
    %850 = vmatpush1.msra.mxu0 0.0
    %851 = vmatprep.subr.mxu0 0.0
    %852 = vmatpush1.msra.mxu0 0.0
    %853 = vmatprep.subr.mxu0 0.0
    %854 = vmatpush1.msra.mxu0 0.0
    %855 = vmatprep.subr.mxu0 0.0
    %856 = vmatpush1.msra.mxu0 0.0
    %857 = vmatprep.subr.mxu0 0.0
    %858 = vmatpush1.msra.mxu0 0.0
    %859 = vmatprep.subr.mxu0 0.0
    %860 = vmatpush1.msra.mxu0 0.0
    %861 = vmatprep.subr.mxu0 0.0
    %862 = vmatpush1.msra.mxu0 0.0
    %863 = vmatprep.subr.mxu0 0.0
    %864 = vmatpush1.msra.mxu0 0.0
    %865 = vmatprep.mubr.f32.mxu0 0.0
    %866 = vmatmul.mubr.f32.gmra.mrb[0].mxu0 %v799
    %v867 = vpop.f32.mrb[0].mxu0
    %v868 = vadd.f32 %v385, %v867
    %v869 = vpop.f32.mrb[0].mxu0
    %v870 = vadd.f32 %v389, %v869
    %871 = vdwg.mxu0
    %872 = vmatprep.subr.mxu0 0.0
    %873 = vmatpush1.msra.mxu0 %v334
    %874 = vmatprep.subr.mxu0 0.0
    %875 = vmatpush1.msra.mxu0 %v337
    %876 = vmatprep.subr.mxu0 0.0
    %877 = vmatpush1.msra.mxu0 %v340
    %878 = vmatprep.subr.mxu0 0.0
    %879 = vmatpush1.msra.mxu0 %v343
    %880 = vmatprep.subr.mxu0 0.0
    %881 = vmatpush1.msra.mxu0 %v346
    %882 = vmatprep.subr.mxu0 0.0
    %883 = vmatpush1.msra.mxu0 %v349
    %884 = vmatprep.subr.mxu0 0.0
    %885 = vmatpush1.msra.mxu0 %v352
    %886 = vmatprep.subr.mxu0 0.0
    %887 = vmatpush1.msra.mxu0 %v355
    %888 = vmatprep.subr.mxu0 0.0
    %889 = vmatpush1.msra.mxu0 %v358
    %890 = vmatprep.subr.mxu0 0.0
    %891 = vmatpush1.msra.mxu0 %v361
    %892 = vmatprep.subr.mxu0 0.0
    %893 = vmatpush1.msra.mxu0 %v364
    %894 = vmatprep.subr.mxu0 0.0
    %895 = vmatpush1.msra.mxu0 %v367
    %896 = vmatprep.subr.mxu0 0.0
    %897 = vmatpush1.msra.mxu0 %v370
    %898 = vmatprep.subr.mxu0 0.0
    %899 = vmatpush1.msra.mxu0 %v373
    %900 = vmatprep.subr.mxu0 0.0
    %901 = vmatpush1.msra.mxu0 %v376
    %902 = vmatprep.subr.mxu0 0.0
    %903 = vmatpush1.msra.mxu0 %v379
    %904 = vmatprep.subr.mxu0 0.0
    %905 = vmatpush1.msra.mxu0 0.0
    %906 = vmatprep.subr.mxu0 0.0
    %907 = vmatpush1.msra.mxu0 0.0
    %908 = vmatprep.subr.mxu0 0.0
    %909 = vmatpush1.msra.mxu0 0.0
    %910 = vmatprep.subr.mxu0 0.0
    %911 = vmatpush1.msra.mxu0 0.0
    %912 = vmatprep.subr.mxu0 0.0
    %913 = vmatpush1.msra.mxu0 0.0
    %914 = vmatprep.subr.mxu0 0.0
    %915 = vmatpush1.msra.mxu0 0.0
    %916 = vmatprep.subr.mxu0 0.0
    %917 = vmatpush1.msra.mxu0 0.0
    %918 = vmatprep.subr.mxu0 0.0
    %919 = vmatpush1.msra.mxu0 0.0
    %920 = vmatprep.subr.mxu0 0.0
    %921 = vmatpush1.msra.mxu0 0.0
    %922 = vmatprep.subr.mxu0 0.0
    %923 = vmatpush1.msra.mxu0 0.0
    %924 = vmatprep.subr.mxu0 0.0
    %925 = vmatpush1.msra.mxu0 0.0
    %926 = vmatprep.subr.mxu0 0.0
    %927 = vmatpush1.msra.mxu0 0.0
    %928 = vmatprep.subr.mxu0 0.0
    %929 = vmatpush1.msra.mxu0 0.0
    %930 = vmatprep.subr.mxu0 0.0
    %931 = vmatpush1.msra.mxu0 0.0
    %932 = vmatprep.subr.mxu0 0.0
    %933 = vmatpush1.msra.mxu0 0.0
    %934 = vmatprep.subr.mxu0 0.0
    %935 = vmatpush1.msra.mxu0 0.0
    %936 = vmatprep.mubr.f32.mxu0 0.0
    %937 = vmatmul.mubr.f32.gmra.mrb[0].mxu0 %v799
    %v938 = vpop.f32.mrb[0].mxu0
    %v939 = vadd.f32 %v393, %v938
    %v940 = vpop.f32.mrb[0].mxu0
    %941 = vdwg.mxu0
    %v943 = vrot.slane %v868, 6
    %v944 = vrot.slane %v868, 7
    %v947 = vadd.f32 %v247, %v943
    %v948 = vadd.f32 %v253, %v944
    %v949 = vxor.u32 %v947, 2147483648
    %v950 = vxor.u32 %v948, 2147483648
    %v951 = vmul.f32 %v949, 1.442695
    %v952 = vpow.pop %v951
    %v953 = vmul.f32 %v950, 1.442695
    %v954 = vpow.pop %v953
    %v955 = vadd.f32 %v952, 1.0
    %v956 = vadd.f32 %v954, 1.0
    %v957 = vrcp.pop %v955
    %v958 = vmul.f32 1.0, %v957
    %v959 = vrcp.pop %v956
    %v960 = vmul.f32 1.0, %v959
    %v962 = vrot.slane %v870, 6
    %v963 = vrot.slane %v870, 7
    %v966 = vadd.f32 %v249, %v962
    %v967 = vadd.f32 %v255, %v963
    %v968 = vxor.u32 %v966, 2147483648
    %v969 = vxor.u32 %v967, 2147483648
    %v970 = vmul.f32 %v968, 1.442695
    %v971 = vpow.pop %v970
    %v972 = vmul.f32 %v969, 1.442695
    %v973 = vpow.pop %v972
    %v974 = vadd.f32 %v971, 1.0
    %v975 = vadd.f32 %v973, 1.0
    %v976 = vrcp.pop %v974
    %v977 = vmul.f32 1.0, %v976
    %v978 = vrcp.pop %v975
    %v979 = vmul.f32 1.0, %v978
    %v981 = vrot.slane %v939, 6
    %v982 = vrot.slane %v939, 7
    %v985 = vmul.f32 %v958, %v981
    %v986 = vmul.f32 %v960, %v982
    %v987 = vadd.f32 %v324, %v985
    %v988 = vadd.f32 %v329, %v986
    %v989 = vtanh.pop %v987
    %v990 = vtanh.pop %v988
    %v991 = vsub.f32 1.0, %v977
    %v992 = vsub.f32 1.0, %v979
    %v993 = vmul.f32 %v991, %v989
    %v994 = vmul.f32 %v992, %v990
    %v995 = vrot.slane %v794, 7
    %v996 = vrot.slane %v795, 7
    %v999 = vmul.f32 %v977, %v995
    %v1000 = vmul.f32 %v979, %v996
    %v1001 = vadd.f32 %v993, %v999
    %v1002 = vadd.f32 %v994, %v1000
    %v1005 = vrot.slane %v1001, 2
    %v1006 = vrot.slane %v1002, 1
    %v1007 = vsel %vm595, %v1006, %v1005
    %1009 = vmatprep.subr.mxu0 %v333
    %1010 = vmatpush1.msra.mxu0 %v332
    %1011 = vmatprep.subr.mxu0 %v336
    %1012 = vmatpush1.msra.mxu0 %v335
    %1013 = vmatprep.subr.mxu0 %v339
    %1014 = vmatpush1.msra.mxu0 %v338
    %1015 = vmatprep.subr.mxu0 %v342
    %1016 = vmatpush1.msra.mxu0 %v341
    %1017 = vmatprep.subr.mxu0 %v345
    %1018 = vmatpush1.msra.mxu0 %v344
    %1019 = vmatprep.subr.mxu0 %v348
    %1020 = vmatpush1.msra.mxu0 %v347
    %1021 = vmatprep.subr.mxu0 %v351
    %1022 = vmatpush1.msra.mxu0 %v350
    %1023 = vmatprep.subr.mxu0 %v354
    %1024 = vmatpush1.msra.mxu0 %v353
    %1025 = vmatprep.subr.mxu0 %v357
    %1026 = vmatpush1.msra.mxu0 %v356
    %1027 = vmatprep.subr.mxu0 %v360
    %1028 = vmatpush1.msra.mxu0 %v359
    %1029 = vmatprep.subr.mxu0 %v363
    %1030 = vmatpush1.msra.mxu0 %v362
    %1031 = vmatprep.subr.mxu0 %v366
    %1032 = vmatpush1.msra.mxu0 %v365
    %1033 = vmatprep.subr.mxu0 %v369
    %1034 = vmatpush1.msra.mxu0 %v368
    %1035 = vmatprep.subr.mxu0 %v372
    %1036 = vmatpush1.msra.mxu0 %v371
    %1037 = vmatprep.subr.mxu0 %v375
    %1038 = vmatpush1.msra.mxu0 %v374
    %1039 = vmatprep.subr.mxu0 %v378
    %1040 = vmatpush1.msra.mxu0 %v377
    %1041 = vmatprep.subr.mxu0 0.0
    %1042 = vmatpush1.msra.mxu0 0.0
    %1043 = vmatprep.subr.mxu0 0.0
    %1044 = vmatpush1.msra.mxu0 0.0
    %1045 = vmatprep.subr.mxu0 0.0
    %1046 = vmatpush1.msra.mxu0 0.0
    %1047 = vmatprep.subr.mxu0 0.0
    %1048 = vmatpush1.msra.mxu0 0.0
    %1049 = vmatprep.subr.mxu0 0.0
    %1050 = vmatpush1.msra.mxu0 0.0
    %1051 = vmatprep.subr.mxu0 0.0
    %1052 = vmatpush1.msra.mxu0 0.0
    %1053 = vmatprep.subr.mxu0 0.0
    %1054 = vmatpush1.msra.mxu0 0.0
    %1055 = vmatprep.subr.mxu0 0.0
    %1056 = vmatpush1.msra.mxu0 0.0
    %1057 = vmatprep.subr.mxu0 0.0
    %1058 = vmatpush1.msra.mxu0 0.0
    %1059 = vmatprep.subr.mxu0 0.0
    %1060 = vmatpush1.msra.mxu0 0.0
    %1061 = vmatprep.subr.mxu0 0.0
    %1062 = vmatpush1.msra.mxu0 0.0
    %1063 = vmatprep.subr.mxu0 0.0
    %1064 = vmatpush1.msra.mxu0 0.0
    %1065 = vmatprep.subr.mxu0 0.0
    %1066 = vmatpush1.msra.mxu0 0.0
    %1067 = vmatprep.subr.mxu0 0.0
    %1068 = vmatpush1.msra.mxu0 0.0
    %1069 = vmatprep.subr.mxu0 0.0
    %1070 = vmatpush1.msra.mxu0 0.0
    %1071 = vmatprep.subr.mxu0 0.0
    %1072 = vmatpush1.msra.mxu0 0.0
    %1073 = vmatprep.mubr.f32.mxu0 0.0
    %1074 = vmatmul.mubr.f32.gmra.mrb[0].mxu0 %v1007
    %v1075 = vpop.f32.mrb[0].mxu0
    %v1076 = vadd.f32 %v385, %v1075
    %v1077 = vpop.f32.mrb[0].mxu0
    %v1078 = vadd.f32 %v389, %v1077
    %1079 = vdwg.mxu0
    %1080 = vmatprep.subr.mxu0 0.0
    %1081 = vmatpush1.msra.mxu0 %v334
    %1082 = vmatprep.subr.mxu0 0.0
    %1083 = vmatpush1.msra.mxu0 %v337
    %1084 = vmatprep.subr.mxu0 0.0
    %1085 = vmatpush1.msra.mxu0 %v340
    %1086 = vmatprep.subr.mxu0 0.0
    %1087 = vmatpush1.msra.mxu0 %v343
    %1088 = vmatprep.subr.mxu0 0.0
    %1089 = vmatpush1.msra.mxu0 %v346
    %1090 = vmatprep.subr.mxu0 0.0
    %1091 = vmatpush1.msra.mxu0 %v349
    %1092 = vmatprep.subr.mxu0 0.0
    %1093 = vmatpush1.msra.mxu0 %v352
    %1094 = vmatprep.subr.mxu0 0.0
    %1095 = vmatpush1.msra.mxu0 %v355
    %1096 = vmatprep.subr.mxu0 0.0
    %1097 = vmatpush1.msra.mxu0 %v358
    %1098 = vmatprep.subr.mxu0 0.0
    %1099 = vmatpush1.msra.mxu0 %v361
    %1100 = vmatprep.subr.mxu0 0.0
    %1101 = vmatpush1.msra.mxu0 %v364
    %1102 = vmatprep.subr.mxu0 0.0
    %1103 = vmatpush1.msra.mxu0 %v367
    %1104 = vmatprep.subr.mxu0 0.0
    %1105 = vmatpush1.msra.mxu0 %v370
    %1106 = vmatprep.subr.mxu0 0.0
    %1107 = vmatpush1.msra.mxu0 %v373
    %1108 = vmatprep.subr.mxu0 0.0
    %1109 = vmatpush1.msra.mxu0 %v376
    %1110 = vmatprep.subr.mxu0 0.0
    %1111 = vmatpush1.msra.mxu0 %v379
    %1112 = vmatprep.subr.mxu0 0.0
    %1113 = vmatpush1.msra.mxu0 0.0
    %1114 = vmatprep.subr.mxu0 0.0
    %1115 = vmatpush1.msra.mxu0 0.0
    %1116 = vmatprep.subr.mxu0 0.0
    %1117 = vmatpush1.msra.mxu0 0.0
    %1118 = vmatprep.subr.mxu0 0.0
    %1119 = vmatpush1.msra.mxu0 0.0
    %1120 = vmatprep.subr.mxu0 0.0
    %1121 = vmatpush1.msra.mxu0 0.0
    %1122 = vmatprep.subr.mxu0 0.0
    %1123 = vmatpush1.msra.mxu0 0.0
    %1124 = vmatprep.subr.mxu0 0.0
    %1125 = vmatpush1.msra.mxu0 0.0
    %1126 = vmatprep.subr.mxu0 0.0
    %1127 = vmatpush1.msra.mxu0 0.0
    %1128 = vmatprep.subr.mxu0 0.0
    %1129 = vmatpush1.msra.mxu0 0.0
    %1130 = vmatprep.subr.mxu0 0.0
    %1131 = vmatpush1.msra.mxu0 0.0
    %1132 = vmatprep.subr.mxu0 0.0
    %1133 = vmatpush1.msra.mxu0 0.0
    %1134 = vmatprep.subr.mxu0 0.0
    %1135 = vmatpush1.msra.mxu0 0.0
    %1136 = vmatprep.subr.mxu0 0.0
    %1137 = vmatpush1.msra.mxu0 0.0
    %1138 = vmatprep.subr.mxu0 0.0
    %1139 = vmatpush1.msra.mxu0 0.0
    %1140 = vmatprep.subr.mxu0 0.0
    %1141 = vmatpush1.msra.mxu0 0.0
    %1142 = vmatprep.subr.mxu0 0.0
    %1143 = vmatpush1.msra.mxu0 0.0
    %1144 = vmatprep.mubr.f32.mxu0 0.0
    %1145 = vmatmul.mubr.f32.gmra.mrb[0].mxu0 %v1007
    %v1146 = vpop.f32.mrb[0].mxu0
    %v1147 = vadd.f32 %v393, %v1146
    %v1148 = vpop.f32.mrb[0].mxu0
    %1149 = vdwg.mxu0
    %v1151 = vrot.slane %v1076, 5
    %v1152 = vrot.slane %v1076, 6
    %v1155 = vadd.f32 %v247, %v1151
    %v1156 = vadd.f32 %v253, %v1152
    %v1157 = vxor.u32 %v1155, 2147483648
    %v1158 = vxor.u32 %v1156, 2147483648
    %v1159 = vmul.f32 %v1157, 1.442695
    %v1160 = vpow.pop %v1159
    %v1161 = vmul.f32 %v1158, 1.442695
    %v1162 = vpow.pop %v1161
    %v1163 = vadd.f32 %v1160, 1.0
    %v1164 = vadd.f32 %v1162, 1.0
    %v1165 = vrcp.pop %v1163
    %v1166 = vmul.f32 1.0, %v1165
    %v1167 = vrcp.pop %v1164
    %v1168 = vmul.f32 1.0, %v1167
    %v1170 = vrot.slane %v1078, 5
    %v1171 = vrot.slane %v1078, 6
    %v1174 = vadd.f32 %v249, %v1170
    %v1175 = vadd.f32 %v255, %v1171
    %v1176 = vxor.u32 %v1174, 2147483648
    %v1177 = vxor.u32 %v1175, 2147483648
    %v1178 = vmul.f32 %v1176, 1.442695
    %v1179 = vpow.pop %v1178
    %v1180 = vmul.f32 %v1177, 1.442695
    %v1181 = vpow.pop %v1180
    %v1182 = vadd.f32 %v1179, 1.0
    %v1183 = vadd.f32 %v1181, 1.0
    %v1184 = vrcp.pop %v1182
    %v1185 = vmul.f32 1.0, %v1184
    %v1186 = vrcp.pop %v1183
    %v1187 = vmul.f32 1.0, %v1186
    %v1189 = vrot.slane %v1147, 5
    %v1190 = vrot.slane %v1147, 6
    %v1193 = vmul.f32 %v1166, %v1189
    %v1194 = vmul.f32 %v1168, %v1190
    %v1195 = vadd.f32 %v324, %v1193
    %v1196 = vadd.f32 %v329, %v1194
    %v1197 = vtanh.pop %v1195
    %v1198 = vtanh.pop %v1196
    %v1199 = vsub.f32 1.0, %v1185
    %v1200 = vsub.f32 1.0, %v1187
    %v1201 = vmul.f32 %v1199, %v1197
    %v1202 = vmul.f32 %v1200, %v1198
    %v1203 = vrot.slane %v1001, 7
    %v1204 = vrot.slane %v1002, 7
    %v1207 = vmul.f32 %v1185, %v1203
    %v1208 = vmul.f32 %v1187, %v1204
    %v1209 = vadd.f32 %v1201, %v1207
    %v1210 = vadd.f32 %v1202, %v1208
    %v1213 = vrot.slane %v1209, 3
    %v1214 = vrot.slane %v1210, 2
    %v1215 = vsel %vm595, %v1214, %v1213
    %1217 = vmatprep.subr.mxu0 %v333
    %1218 = vmatpush1.msra.mxu0 %v332
    %1219 = vmatprep.subr.mxu0 %v336
    %1220 = vmatpush1.msra.mxu0 %v335
    %1221 = vmatprep.subr.mxu0 %v339
    %1222 = vmatpush1.msra.mxu0 %v338
    %1223 = vmatprep.subr.mxu0 %v342
    %1224 = vmatpush1.msra.mxu0 %v341
    %1225 = vmatprep.subr.mxu0 %v345
    %1226 = vmatpush1.msra.mxu0 %v344
    %1227 = vmatprep.subr.mxu0 %v348
    %1228 = vmatpush1.msra.mxu0 %v347
    %1229 = vmatprep.subr.mxu0 %v351
    %1230 = vmatpush1.msra.mxu0 %v350
    %1231 = vmatprep.subr.mxu0 %v354
    %1232 = vmatpush1.msra.mxu0 %v353
    %1233 = vmatprep.subr.mxu0 %v357
    %1234 = vmatpush1.msra.mxu0 %v356
    %1235 = vmatprep.subr.mxu0 %v360
    %1236 = vmatpush1.msra.mxu0 %v359
    %1237 = vmatprep.subr.mxu0 %v363
    %1238 = vmatpush1.msra.mxu0 %v362
    %1239 = vmatprep.subr.mxu0 %v366
    %1240 = vmatpush1.msra.mxu0 %v365
    %1241 = vmatprep.subr.mxu0 %v369
    %1242 = vmatpush1.msra.mxu0 %v368
    %1243 = vmatprep.subr.mxu0 %v372
    %1244 = vmatpush1.msra.mxu0 %v371
    %1245 = vmatprep.subr.mxu0 %v375
    %1246 = vmatpush1.msra.mxu0 %v374
    %1247 = vmatprep.subr.mxu0 %v378
    %1248 = vmatpush1.msra.mxu0 %v377
    %1249 = vmatprep.subr.mxu0 0.0
    %1250 = vmatpush1.msra.mxu0 0.0
    %1251 = vmatprep.subr.mxu0 0.0
    %1252 = vmatpush1.msra.mxu0 0.0
    %1253 = vmatprep.subr.mxu0 0.0
    %1254 = vmatpush1.msra.mxu0 0.0
    %1255 = vmatprep.subr.mxu0 0.0
    %1256 = vmatpush1.msra.mxu0 0.0
    %1257 = vmatprep.subr.mxu0 0.0
    %1258 = vmatpush1.msra.mxu0 0.0
    %1259 = vmatprep.subr.mxu0 0.0
    %1260 = vmatpush1.msra.mxu0 0.0
    %1261 = vmatprep.subr.mxu0 0.0
    %1262 = vmatpush1.msra.mxu0 0.0
    %1263 = vmatprep.subr.mxu0 0.0
    %1264 = vmatpush1.msra.mxu0 0.0
    %1265 = vmatprep.subr.mxu0 0.0
    %1266 = vmatpush1.msra.mxu0 0.0
    %1267 = vmatprep.subr.mxu0 0.0
    %1268 = vmatpush1.msra.mxu0 0.0
    %1269 = vmatprep.subr.mxu0 0.0
    %1270 = vmatpush1.msra.mxu0 0.0
    %1271 = vmatprep.subr.mxu0 0.0
    %1272 = vmatpush1.msra.mxu0 0.0
    %1273 = vmatprep.subr.mxu0 0.0
    %1274 = vmatpush1.msra.mxu0 0.0
    %1275 = vmatprep.subr.mxu0 0.0
    %1276 = vmatpush1.msra.mxu0 0.0
    %1277 = vmatprep.subr.mxu0 0.0
    %1278 = vmatpush1.msra.mxu0 0.0
    %1279 = vmatprep.subr.mxu0 0.0
    %1280 = vmatpush1.msra.mxu0 0.0
    %1281 = vmatprep.mubr.f32.mxu0 0.0
    %1282 = vmatmul.mubr.f32.gmra.mrb[0].mxu0 %v1215
    %v1283 = vpop.f32.mrb[0].mxu0
    %v1284 = vadd.f32 %v385, %v1283
    %v1285 = vpop.f32.mrb[0].mxu0
    %v1286 = vadd.f32 %v389, %v1285
    %1287 = vdwg.mxu0
    %1288 = vmatprep.subr.mxu0 0.0
    %1289 = vmatpush1.msra.mxu0 %v334
    %1290 = vmatprep.subr.mxu0 0.0
    %1291 = vmatpush1.msra.mxu0 %v337
    %1292 = vmatprep.subr.mxu0 0.0
    %1293 = vmatpush1.msra.mxu0 %v340
    %1294 = vmatprep.subr.mxu0 0.0
    %1295 = vmatpush1.msra.mxu0 %v343
    %1296 = vmatprep.subr.mxu0 0.0
    %1297 = vmatpush1.msra.mxu0 %v346
    %1298 = vmatprep.subr.mxu0 0.0
    %1299 = vmatpush1.msra.mxu0 %v349
    %1300 = vmatprep.subr.mxu0 0.0
    %1301 = vmatpush1.msra.mxu0 %v352
    %1302 = vmatprep.subr.mxu0 0.0
    %1303 = vmatpush1.msra.mxu0 %v355
    %1304 = vmatprep.subr.mxu0 0.0
    %1305 = vmatpush1.msra.mxu0 %v358
    %1306 = vmatprep.subr.mxu0 0.0
    %1307 = vmatpush1.msra.mxu0 %v361
    %1308 = vmatprep.subr.mxu0 0.0
    %1309 = vmatpush1.msra.mxu0 %v364
    %1310 = vmatprep.subr.mxu0 0.0
    %1311 = vmatpush1.msra.mxu0 %v367
    %1312 = vmatprep.subr.mxu0 0.0
    %1313 = vmatpush1.msra.mxu0 %v370
    %1314 = vmatprep.subr.mxu0 0.0
    %1315 = vmatpush1.msra.mxu0 %v373
    %1316 = vmatprep.subr.mxu0 0.0
    %1317 = vmatpush1.msra.mxu0 %v376
    %1318 = vmatprep.subr.mxu0 0.0
    %1319 = vmatpush1.msra.mxu0 %v379
    %1320 = vmatprep.subr.mxu0 0.0
    %1321 = vmatpush1.msra.mxu0 0.0
    %1322 = vmatprep.subr.mxu0 0.0
    %1323 = vmatpush1.msra.mxu0 0.0
    %1324 = vmatprep.subr.mxu0 0.0
    %1325 = vmatpush1.msra.mxu0 0.0
    %1326 = vmatprep.subr.mxu0 0.0
    %1327 = vmatpush1.msra.mxu0 0.0
    %1328 = vmatprep.subr.mxu0 0.0
    %1329 = vmatpush1.msra.mxu0 0.0
    %1330 = vmatprep.subr.mxu0 0.0
    %1331 = vmatpush1.msra.mxu0 0.0
    %1332 = vmatprep.subr.mxu0 0.0
    %1333 = vmatpush1.msra.mxu0 0.0
    %1334 = vmatprep.subr.mxu0 0.0
    %1335 = vmatpush1.msra.mxu0 0.0
    %1336 = vmatprep.subr.mxu0 0.0
    %1337 = vmatpush1.msra.mxu0 0.0
    %1338 = vmatprep.subr.mxu0 0.0
    %1339 = vmatpush1.msra.mxu0 0.0
    %1340 = vmatprep.subr.mxu0 0.0
    %1341 = vmatpush1.msra.mxu0 0.0
    %1342 = vmatprep.subr.mxu0 0.0
    %1343 = vmatpush1.msra.mxu0 0.0
    %1344 = vmatprep.subr.mxu0 0.0
    %1345 = vmatpush1.msra.mxu0 0.0
    %1346 = vmatprep.subr.mxu0 0.0
    %1347 = vmatpush1.msra.mxu0 0.0
    %1348 = vmatprep.subr.mxu0 0.0
    %1349 = vmatpush1.msra.mxu0 0.0
    %1350 = vmatprep.subr.mxu0 0.0
    %1351 = vmatpush1.msra.mxu0 0.0
    %1352 = vmatprep.mubr.f32.mxu0 0.0
    %1353 = vmatmul.mubr.f32.gmra.mrb[0].mxu0 %v1215
    %v1354 = vpop.f32.mrb[0].mxu0
    %v1355 = vadd.f32 %v393, %v1354
    %v1356 = vpop.f32.mrb[0].mxu0
    %1357 = vdwg.mxu0
    %v1359 = vrot.slane %v1284, 4
    %v1360 = vrot.slane %v1284, 5
    %v1363 = vadd.f32 %v247, %v1359
    %v1364 = vadd.f32 %v253, %v1360
    %v1365 = vxor.u32 %v1363, 2147483648
    %v1366 = vxor.u32 %v1364, 2147483648
    %v1367 = vmul.f32 %v1365, 1.442695
    %v1368 = vpow.pop %v1367
    %v1369 = vmul.f32 %v1366, 1.442695
    %v1370 = vpow.pop %v1369
    %v1371 = vadd.f32 %v1368, 1.0
    %v1372 = vadd.f32 %v1370, 1.0
    %v1373 = vrcp.pop %v1371
    %v1374 = vmul.f32 1.0, %v1373
    %v1375 = vrcp.pop %v1372
    %v1376 = vmul.f32 1.0, %v1375
    %v1378 = vrot.slane %v1286, 4
    %v1379 = vrot.slane %v1286, 5
    %v1382 = vadd.f32 %v249, %v1378
    %v1383 = vadd.f32 %v255, %v1379
    %v1384 = vxor.u32 %v1382, 2147483648
    %v1385 = vxor.u32 %v1383, 2147483648
    %v1386 = vmul.f32 %v1384, 1.442695
    %v1387 = vpow.pop %v1386
    %v1388 = vmul.f32 %v1385, 1.442695
    %v1389 = vpow.pop %v1388
    %v1390 = vadd.f32 %v1387, 1.0
    %v1391 = vadd.f32 %v1389, 1.0
    %v1392 = vrcp.pop %v1390
    %v1393 = vmul.f32 1.0, %v1392
    %v1394 = vrcp.pop %v1391
    %v1395 = vmul.f32 1.0, %v1394
    %v1397 = vrot.slane %v1355, 4
    %v1398 = vrot.slane %v1355, 5
    %v1401 = vmul.f32 %v1374, %v1397
    %v1402 = vmul.f32 %v1376, %v1398
    %v1403 = vadd.f32 %v324, %v1401
    %v1404 = vadd.f32 %v329, %v1402
    %v1405 = vtanh.pop %v1403
    %v1406 = vtanh.pop %v1404
    %v1407 = vsub.f32 1.0, %v1393
    %v1408 = vsub.f32 1.0, %v1395
    %v1409 = vmul.f32 %v1407, %v1405
    %v1410 = vmul.f32 %v1408, %v1406
    %v1411 = vrot.slane %v1209, 7
    %v1412 = vrot.slane %v1210, 7
    %v1415 = vmul.f32 %v1393, %v1411
    %v1416 = vmul.f32 %v1395, %v1412
    %v1417 = vadd.f32 %v1409, %v1415
    %v1418 = vadd.f32 %v1410, %v1416
    %v1421 = vrot.slane %v1417, 4
    %v1422 = vrot.slane %v1418, 3
    %v1423 = vsel %vm595, %v1422, %v1421
    %1425 = vmatprep.subr.mxu0 %v333
    %1426 = vmatpush1.msra.mxu0 %v332
    %1427 = vmatprep.subr.mxu0 %v336
    %1428 = vmatpush1.msra.mxu0 %v335
    %1429 = vmatprep.subr.mxu0 %v339
    %1430 = vmatpush1.msra.mxu0 %v338
    %1431 = vmatprep.subr.mxu0 %v342
    %1432 = vmatpush1.msra.mxu0 %v341
    %1433 = vmatprep.subr.mxu0 %v345
    %1434 = vmatpush1.msra.mxu0 %v344
    %1435 = vmatprep.subr.mxu0 %v348
    %1436 = vmatpush1.msra.mxu0 %v347
    %1437 = vmatprep.subr.mxu0 %v351
    %1438 = vmatpush1.msra.mxu0 %v350
    %1439 = vmatprep.subr.mxu0 %v354
    %1440 = vmatpush1.msra.mxu0 %v353
    %1441 = vmatprep.subr.mxu0 %v357
    %1442 = vmatpush1.msra.mxu0 %v356
    %1443 = vmatprep.subr.mxu0 %v360
    %1444 = vmatpush1.msra.mxu0 %v359
    %1445 = vmatprep.subr.mxu0 %v363
    %1446 = vmatpush1.msra.mxu0 %v362
    %1447 = vmatprep.subr.mxu0 %v366
    %1448 = vmatpush1.msra.mxu0 %v365
    %1449 = vmatprep.subr.mxu0 %v369
    %1450 = vmatpush1.msra.mxu0 %v368
    %1451 = vmatprep.subr.mxu0 %v372
    %1452 = vmatpush1.msra.mxu0 %v371
    %1453 = vmatprep.subr.mxu0 %v375
    %1454 = vmatpush1.msra.mxu0 %v374
    %1455 = vmatprep.subr.mxu0 %v378
    %1456 = vmatpush1.msra.mxu0 %v377
    %1457 = vmatprep.subr.mxu0 0.0
    %1458 = vmatpush1.msra.mxu0 0.0
    %1459 = vmatprep.subr.mxu0 0.0
    %1460 = vmatpush1.msra.mxu0 0.0
    %1461 = vmatprep.subr.mxu0 0.0
    %1462 = vmatpush1.msra.mxu0 0.0
    %1463 = vmatprep.subr.mxu0 0.0
    %1464 = vmatpush1.msra.mxu0 0.0
    %1465 = vmatprep.subr.mxu0 0.0
    %1466 = vmatpush1.msra.mxu0 0.0
    %1467 = vmatprep.subr.mxu0 0.0
    %1468 = vmatpush1.msra.mxu0 0.0
    %1469 = vmatprep.subr.mxu0 0.0
    %1470 = vmatpush1.msra.mxu0 0.0
    %1471 = vmatprep.subr.mxu0 0.0
    %1472 = vmatpush1.msra.mxu0 0.0
    %1473 = vmatprep.subr.mxu0 0.0
    %1474 = vmatpush1.msra.mxu0 0.0
    %1475 = vmatprep.subr.mxu0 0.0
    %1476 = vmatpush1.msra.mxu0 0.0
    %1477 = vmatprep.subr.mxu0 0.0
    %1478 = vmatpush1.msra.mxu0 0.0
    %1479 = vmatprep.subr.mxu0 0.0
    %1480 = vmatpush1.msra.mxu0 0.0
    %1481 = vmatprep.subr.mxu0 0.0
    %1482 = vmatpush1.msra.mxu0 0.0
    %1483 = vmatprep.subr.mxu0 0.0
    %1484 = vmatpush1.msra.mxu0 0.0
    %1485 = vmatprep.subr.mxu0 0.0
    %1486 = vmatpush1.msra.mxu0 0.0
    %1487 = vmatprep.subr.mxu0 0.0
    %1488 = vmatpush1.msra.mxu0 0.0
    %1489 = vmatprep.mubr.f32.mxu0 0.0
    %1490 = vmatmul.mubr.f32.gmra.mrb[0].mxu0 %v1423
    %v1491 = vpop.f32.mrb[0].mxu0
    %v1492 = vadd.f32 %v385, %v1491
    %v1493 = vpop.f32.mrb[0].mxu0
    %v1494 = vadd.f32 %v389, %v1493
    %1495 = vdwg.mxu0
    %1496 = vmatprep.subr.mxu0 0.0
    %1497 = vmatpush1.msra.mxu0 %v334
    %1498 = vmatprep.subr.mxu0 0.0
    %1499 = vmatpush1.msra.mxu0 %v337
    %1500 = vmatprep.subr.mxu0 0.0
    %1501 = vmatpush1.msra.mxu0 %v340
    %1502 = vmatprep.subr.mxu0 0.0
    %1503 = vmatpush1.msra.mxu0 %v343
    %1504 = vmatprep.subr.mxu0 0.0
    %1505 = vmatpush1.msra.mxu0 %v346
    %1506 = vmatprep.subr.mxu0 0.0
    %1507 = vmatpush1.msra.mxu0 %v349
    %1508 = vmatprep.subr.mxu0 0.0
    %1509 = vmatpush1.msra.mxu0 %v352
    %1510 = vmatprep.subr.mxu0 0.0
    %1511 = vmatpush1.msra.mxu0 %v355
    %1512 = vmatprep.subr.mxu0 0.0
    %1513 = vmatpush1.msra.mxu0 %v358
    %1514 = vmatprep.subr.mxu0 0.0
    %1515 = vmatpush1.msra.mxu0 %v361
    %1516 = vmatprep.subr.mxu0 0.0
    %1517 = vmatpush1.msra.mxu0 %v364
    %1518 = vmatprep.subr.mxu0 0.0
    %1519 = vmatpush1.msra.mxu0 %v367
    %1520 = vmatprep.subr.mxu0 0.0
    %1521 = vmatpush1.msra.mxu0 %v370
    %1522 = vmatprep.subr.mxu0 0.0
    %1523 = vmatpush1.msra.mxu0 %v373
    %1524 = vmatprep.subr.mxu0 0.0
    %1525 = vmatpush1.msra.mxu0 %v376
    %1526 = vmatprep.subr.mxu0 0.0
    %1527 = vmatpush1.msra.mxu0 %v379
    %1528 = vmatprep.subr.mxu0 0.0
    %1529 = vmatpush1.msra.mxu0 0.0
    %1530 = vmatprep.subr.mxu0 0.0
    %1531 = vmatpush1.msra.mxu0 0.0
    %1532 = vmatprep.subr.mxu0 0.0
    %1533 = vmatpush1.msra.mxu0 0.0
    %1534 = vmatprep.subr.mxu0 0.0
    %1535 = vmatpush1.msra.mxu0 0.0
    %1536 = vmatprep.subr.mxu0 0.0
    %1537 = vmatpush1.msra.mxu0 0.0
    %1538 = vmatprep.subr.mxu0 0.0
    %1539 = vmatpush1.msra.mxu0 0.0
    %1540 = vmatprep.subr.mxu0 0.0
    %1541 = vmatpush1.msra.mxu0 0.0
    %1542 = vmatprep.subr.mxu0 0.0
    %1543 = vmatpush1.msra.mxu0 0.0
    %1544 = vmatprep.subr.mxu0 0.0
    %1545 = vmatpush1.msra.mxu0 0.0
    %1546 = vmatprep.subr.mxu0 0.0
    %1547 = vmatpush1.msra.mxu0 0.0
    %1548 = vmatprep.subr.mxu0 0.0
    %1549 = vmatpush1.msra.mxu0 0.0
    %1550 = vmatprep.subr.mxu0 0.0
    %1551 = vmatpush1.msra.mxu0 0.0
    %1552 = vmatprep.subr.mxu0 0.0
    %1553 = vmatpush1.msra.mxu0 0.0
    %1554 = vmatprep.subr.mxu0 0.0
    %1555 = vmatpush1.msra.mxu0 0.0
    %1556 = vmatprep.subr.mxu0 0.0
    %1557 = vmatpush1.msra.mxu0 0.0
    %1558 = vmatprep.subr.mxu0 0.0
    %1559 = vmatpush1.msra.mxu0 0.0
    %1560 = vmatprep.mubr.f32.mxu0 0.0
    %1561 = vmatmul.mubr.f32.gmra.mrb[0].mxu0 %v1423
    %v1562 = vpop.f32.mrb[0].mxu0
    %v1563 = vadd.f32 %v393, %v1562
    %v1564 = vpop.f32.mrb[0].mxu0
    %1565 = vdwg.mxu0
    %v1567 = vrot.slane %v1492, 3
    %v1568 = vrot.slane %v1492, 4
    %v1571 = vadd.f32 %v247, %v1567
    %v1572 = vadd.f32 %v253, %v1568
    %v1573 = vxor.u32 %v1571, 2147483648
    %v1574 = vxor.u32 %v1572, 2147483648
    %v1575 = vmul.f32 %v1573, 1.442695
    %v1576 = vpow.pop %v1575
    %v1577 = vmul.f32 %v1574, 1.442695
    %v1578 = vpow.pop %v1577
    %v1579 = vadd.f32 %v1576, 1.0
    %v1580 = vadd.f32 %v1578, 1.0
    %v1581 = vrcp.pop %v1579
    %v1582 = vmul.f32 1.0, %v1581
    %v1583 = vrcp.pop %v1580
    %v1584 = vmul.f32 1.0, %v1583
    %v1586 = vrot.slane %v1494, 3
    %v1587 = vrot.slane %v1494, 4
    %v1590 = vadd.f32 %v249, %v1586
    %v1591 = vadd.f32 %v255, %v1587
    %v1592 = vxor.u32 %v1590, 2147483648
    %v1593 = vxor.u32 %v1591, 2147483648
    %v1594 = vmul.f32 %v1592, 1.442695
    %v1595 = vpow.pop %v1594
    %v1596 = vmul.f32 %v1593, 1.442695
    %v1597 = vpow.pop %v1596
    %v1598 = vadd.f32 %v1595, 1.0
    %v1599 = vadd.f32 %v1597, 1.0
    %v1600 = vrcp.pop %v1598
    %v1601 = vmul.f32 1.0, %v1600
    %v1602 = vrcp.pop %v1599
    %v1603 = vmul.f32 1.0, %v1602
    %v1605 = vrot.slane %v1563, 3
    %v1606 = vrot.slane %v1563, 4
    %v1609 = vmul.f32 %v1582, %v1605
    %v1610 = vmul.f32 %v1584, %v1606
    %v1611 = vadd.f32 %v324, %v1609
    %v1612 = vadd.f32 %v329, %v1610
    %v1613 = vtanh.pop %v1611
    %v1614 = vtanh.pop %v1612
    %v1615 = vsub.f32 1.0, %v1601
    %v1616 = vsub.f32 1.0, %v1603
    %v1617 = vmul.f32 %v1615, %v1613
    %v1618 = vmul.f32 %v1616, %v1614
    %v1619 = vrot.slane %v1417, 7
    %v1620 = vrot.slane %v1418, 7
    %v1623 = vmul.f32 %v1601, %v1619
    %v1624 = vmul.f32 %v1603, %v1620
    %v1625 = vadd.f32 %v1617, %v1623
    %v1626 = vadd.f32 %v1618, %v1624
    %v1629 = vrot.slane %v1625, 5
    %v1630 = vrot.slane %v1626, 4
    %v1631 = vsel %vm595, %v1630, %v1629
    %1633 = vmatprep.subr.mxu0 %v333
    %1634 = vmatpush1.msra.mxu0 %v332
    %1635 = vmatprep.subr.mxu0 %v336
    %1636 = vmatpush1.msra.mxu0 %v335
    %1637 = vmatprep.subr.mxu0 %v339
    %1638 = vmatpush1.msra.mxu0 %v338
    %1639 = vmatprep.subr.mxu0 %v342
    %1640 = vmatpush1.msra.mxu0 %v341
    %1641 = vmatprep.subr.mxu0 %v345
    %1642 = vmatpush1.msra.mxu0 %v344
    %1643 = vmatprep.subr.mxu0 %v348
    %1644 = vmatpush1.msra.mxu0 %v347
    %1645 = vmatprep.subr.mxu0 %v351
    %1646 = vmatpush1.msra.mxu0 %v350
    %1647 = vmatprep.subr.mxu0 %v354
    %1648 = vmatpush1.msra.mxu0 %v353
    %1649 = vmatprep.subr.mxu0 %v357
    %1650 = vmatpush1.msra.mxu0 %v356
    %1651 = vmatprep.subr.mxu0 %v360
    %1652 = vmatpush1.msra.mxu0 %v359
    %1653 = vmatprep.subr.mxu0 %v363
    %1654 = vmatpush1.msra.mxu0 %v362
    %1655 = vmatprep.subr.mxu0 %v366
    %1656 = vmatpush1.msra.mxu0 %v365
    %1657 = vmatprep.subr.mxu0 %v369
    %1658 = vmatpush1.msra.mxu0 %v368
    %1659 = vmatprep.subr.mxu0 %v372
    %1660 = vmatpush1.msra.mxu0 %v371
    %1661 = vmatprep.subr.mxu0 %v375
    %1662 = vmatpush1.msra.mxu0 %v374
    %1663 = vmatprep.subr.mxu0 %v378
    %1664 = vmatpush1.msra.mxu0 %v377
    %1665 = vmatprep.subr.mxu0 0.0
    %1666 = vmatpush1.msra.mxu0 0.0
    %1667 = vmatprep.subr.mxu0 0.0
    %1668 = vmatpush1.msra.mxu0 0.0
    %1669 = vmatprep.subr.mxu0 0.0
    %1670 = vmatpush1.msra.mxu0 0.0
    %1671 = vmatprep.subr.mxu0 0.0
    %1672 = vmatpush1.msra.mxu0 0.0
    %1673 = vmatprep.subr.mxu0 0.0
    %1674 = vmatpush1.msra.mxu0 0.0
    %1675 = vmatprep.subr.mxu0 0.0
    %1676 = vmatpush1.msra.mxu0 0.0
    %1677 = vmatprep.subr.mxu0 0.0
    %1678 = vmatpush1.msra.mxu0 0.0
    %1679 = vmatprep.subr.mxu0 0.0
    %1680 = vmatpush1.msra.mxu0 0.0
    %1681 = vmatprep.subr.mxu0 0.0
    %1682 = vmatpush1.msra.mxu0 0.0
    %1683 = vmatprep.subr.mxu0 0.0
    %1684 = vmatpush1.msra.mxu0 0.0
    %1685 = vmatprep.subr.mxu0 0.0
    %1686 = vmatpush1.msra.mxu0 0.0
    %1687 = vmatprep.subr.mxu0 0.0
    %1688 = vmatpush1.msra.mxu0 0.0
    %1689 = vmatprep.subr.mxu0 0.0
    %1690 = vmatpush1.msra.mxu0 0.0
    %1691 = vmatprep.subr.mxu0 0.0
    %1692 = vmatpush1.msra.mxu0 0.0
    %1693 = vmatprep.subr.mxu0 0.0
    %1694 = vmatpush1.msra.mxu0 0.0
    %1695 = vmatprep.subr.mxu0 0.0
    %1696 = vmatpush1.msra.mxu0 0.0
    %1697 = vmatprep.mubr.f32.mxu0 0.0
    %1698 = vmatmul.mubr.f32.gmra.mrb[0].mxu0 %v1631
    %v1699 = vpop.f32.mrb[0].mxu0
    %v1700 = vadd.f32 %v385, %v1699
    %v1701 = vpop.f32.mrb[0].mxu0
    %v1702 = vadd.f32 %v389, %v1701
    %1703 = vdwg.mxu0
    %1704 = vmatprep.subr.mxu0 0.0
    %1705 = vmatpush1.msra.mxu0 %v334
    %1706 = vmatprep.subr.mxu0 0.0
    %1707 = vmatpush1.msra.mxu0 %v337
    %1708 = vmatprep.subr.mxu0 0.0
    %1709 = vmatpush1.msra.mxu0 %v340
    %1710 = vmatprep.subr.mxu0 0.0
    %1711 = vmatpush1.msra.mxu0 %v343
    %1712 = vmatprep.subr.mxu0 0.0
    %1713 = vmatpush1.msra.mxu0 %v346
    %1714 = vmatprep.subr.mxu0 0.0
    %1715 = vmatpush1.msra.mxu0 %v349
    %1716 = vmatprep.subr.mxu0 0.0
    %1717 = vmatpush1.msra.mxu0 %v352
    %1718 = vmatprep.subr.mxu0 0.0
    %1719 = vmatpush1.msra.mxu0 %v355
    %1720 = vmatprep.subr.mxu0 0.0
    %1721 = vmatpush1.msra.mxu0 %v358
    %1722 = vmatprep.subr.mxu0 0.0
    %1723 = vmatpush1.msra.mxu0 %v361
    %1724 = vmatprep.subr.mxu0 0.0
    %1725 = vmatpush1.msra.mxu0 %v364
    %1726 = vmatprep.subr.mxu0 0.0
    %1727 = vmatpush1.msra.mxu0 %v367
    %1728 = vmatprep.subr.mxu0 0.0
    %1729 = vmatpush1.msra.mxu0 %v370
    %1730 = vmatprep.subr.mxu0 0.0
    %1731 = vmatpush1.msra.mxu0 %v373
    %1732 = vmatprep.subr.mxu0 0.0
    %1733 = vmatpush1.msra.mxu0 %v376
    %1734 = vmatprep.subr.mxu0 0.0
    %1735 = vmatpush1.msra.mxu0 %v379
    %1736 = vmatprep.subr.mxu0 0.0
    %1737 = vmatpush1.msra.mxu0 0.0
    %1738 = vmatprep.subr.mxu0 0.0
    %1739 = vmatpush1.msra.mxu0 0.0
    %1740 = vmatprep.subr.mxu0 0.0
    %1741 = vmatpush1.msra.mxu0 0.0
    %1742 = vmatprep.subr.mxu0 0.0
    %1743 = vmatpush1.msra.mxu0 0.0
    %1744 = vmatprep.subr.mxu0 0.0
    %1745 = vmatpush1.msra.mxu0 0.0
    %1746 = vmatprep.subr.mxu0 0.0
    %1747 = vmatpush1.msra.mxu0 0.0
    %1748 = vmatprep.subr.mxu0 0.0
    %1749 = vmatpush1.msra.mxu0 0.0
    %1750 = vmatprep.subr.mxu0 0.0
    %1751 = vmatpush1.msra.mxu0 0.0
    %1752 = vmatprep.subr.mxu0 0.0
    %1753 = vmatpush1.msra.mxu0 0.0
    %1754 = vmatprep.subr.mxu0 0.0
    %1755 = vmatpush1.msra.mxu0 0.0
    %1756 = vmatprep.subr.mxu0 0.0
    %1757 = vmatpush1.msra.mxu0 0.0
    %1758 = vmatprep.subr.mxu0 0.0
    %1759 = vmatpush1.msra.mxu0 0.0
    %1760 = vmatprep.subr.mxu0 0.0
    %1761 = vmatpush1.msra.mxu0 0.0
    %1762 = vmatprep.subr.mxu0 0.0
    %1763 = vmatpush1.msra.mxu0 0.0
    %1764 = vmatprep.subr.mxu0 0.0
    %1765 = vmatpush1.msra.mxu0 0.0
    %1766 = vmatprep.subr.mxu0 0.0
    %1767 = vmatpush1.msra.mxu0 0.0
    %1768 = vmatprep.mubr.f32.mxu0 0.0
    %1769 = vmatmul.mubr.f32.gmra.mrb[0].mxu0 %v1631
    %v1770 = vpop.f32.mrb[0].mxu0
    %v1771 = vadd.f32 %v393, %v1770
    %v1772 = vpop.f32.mrb[0].mxu0
    %1773 = vdwg.mxu0
    %v1775 = vrot.slane %v1700, 2
    %v1776 = vrot.slane %v1700, 3
    %v1779 = vadd.f32 %v247, %v1775
    %v1780 = vadd.f32 %v253, %v1776
    %v1781 = vxor.u32 %v1779, 2147483648
    %v1782 = vxor.u32 %v1780, 2147483648
    %v1783 = vmul.f32 %v1781, 1.442695
    %v1784 = vpow.pop %v1783
    %v1785 = vmul.f32 %v1782, 1.442695
    %v1786 = vpow.pop %v1785
    %v1787 = vadd.f32 %v1784, 1.0
    %v1788 = vadd.f32 %v1786, 1.0
    %v1789 = vrcp.pop %v1787
    %v1790 = vmul.f32 1.0, %v1789
    %v1791 = vrcp.pop %v1788
    %v1792 = vmul.f32 1.0, %v1791
    %v1794 = vrot.slane %v1702, 2
    %v1795 = vrot.slane %v1702, 3
    %v1798 = vadd.f32 %v249, %v1794
    %v1799 = vadd.f32 %v255, %v1795
    %v1800 = vxor.u32 %v1798, 2147483648
    %v1801 = vxor.u32 %v1799, 2147483648
    %v1802 = vmul.f32 %v1800, 1.442695
    %v1803 = vpow.pop %v1802
    %v1804 = vmul.f32 %v1801, 1.442695
    %v1805 = vpow.pop %v1804
    %v1806 = vadd.f32 %v1803, 1.0
    %v1807 = vadd.f32 %v1805, 1.0
    %v1808 = vrcp.pop %v1806
    %v1809 = vmul.f32 1.0, %v1808
    %v1810 = vrcp.pop %v1807
    %v1811 = vmul.f32 1.0, %v1810
    %v1813 = vrot.slane %v1771, 2
    %v1814 = vrot.slane %v1771, 3
    %v1817 = vmul.f32 %v1790, %v1813
    %v1818 = vmul.f32 %v1792, %v1814
    %v1819 = vadd.f32 %v324, %v1817
    %v1820 = vadd.f32 %v329, %v1818
    %v1821 = vtanh.pop %v1819
    %v1822 = vtanh.pop %v1820
    %v1823 = vsub.f32 1.0, %v1809
    %v1824 = vsub.f32 1.0, %v1811
    %v1825 = vmul.f32 %v1823, %v1821
    %v1826 = vmul.f32 %v1824, %v1822
    %v1827 = vrot.slane %v1625, 7
    %v1828 = vrot.slane %v1626, 7
    %v1831 = vmul.f32 %v1809, %v1827
    %v1832 = vmul.f32 %v1811, %v1828
    %v1833 = vadd.f32 %v1825, %v1831
    %v1834 = vadd.f32 %v1826, %v1832
    %v1837 = vrot.slane %v1833, 6
    %v1838 = vrot.slane %v1834, 5
    %v1839 = vsel %vm595, %v1838, %v1837
    %1841 = vmatprep.subr.mxu0 %v333
    %1842 = vmatpush1.msra.mxu0 %v332
    %1843 = vmatprep.subr.mxu0 %v336
    %1844 = vmatpush1.msra.mxu0 %v335
    %1845 = vmatprep.subr.mxu0 %v339
    %1846 = vmatpush1.msra.mxu0 %v338
    %1847 = vmatprep.subr.mxu0 %v342
    %1848 = vmatpush1.msra.mxu0 %v341
    %1849 = vmatprep.subr.mxu0 %v345
    %1850 = vmatpush1.msra.mxu0 %v344
    %1851 = vmatprep.subr.mxu0 %v348
    %1852 = vmatpush1.msra.mxu0 %v347
    %1853 = vmatprep.subr.mxu0 %v351
    %1854 = vmatpush1.msra.mxu0 %v350
    %1855 = vmatprep.subr.mxu0 %v354
    %1856 = vmatpush1.msra.mxu0 %v353
    %1857 = vmatprep.subr.mxu0 %v357
    %1858 = vmatpush1.msra.mxu0 %v356
    %1859 = vmatprep.subr.mxu0 %v360
    %1860 = vmatpush1.msra.mxu0 %v359
    %1861 = vmatprep.subr.mxu0 %v363
    %1862 = vmatpush1.msra.mxu0 %v362
    %1863 = vmatprep.subr.mxu0 %v366
    %1864 = vmatpush1.msra.mxu0 %v365
    %1865 = vmatprep.subr.mxu0 %v369
    %1866 = vmatpush1.msra.mxu0 %v368
    %1867 = vmatprep.subr.mxu0 %v372
    %1868 = vmatpush1.msra.mxu0 %v371
    %1869 = vmatprep.subr.mxu0 %v375
    %1870 = vmatpush1.msra.mxu0 %v374
    %1871 = vmatprep.subr.mxu0 %v378
    %1872 = vmatpush1.msra.mxu0 %v377
    %1873 = vmatprep.subr.mxu0 0.0
    %1874 = vmatpush1.msra.mxu0 0.0
    %1875 = vmatprep.subr.mxu0 0.0
    %1876 = vmatpush1.msra.mxu0 0.0
    %1877 = vmatprep.subr.mxu0 0.0
    %1878 = vmatpush1.msra.mxu0 0.0
    %1879 = vmatprep.subr.mxu0 0.0
    %1880 = vmatpush1.msra.mxu0 0.0
    %1881 = vmatprep.subr.mxu0 0.0
    %1882 = vmatpush1.msra.mxu0 0.0
    %1883 = vmatprep.subr.mxu0 0.0
    %1884 = vmatpush1.msra.mxu0 0.0
    %1885 = vmatprep.subr.mxu0 0.0
    %1886 = vmatpush1.msra.mxu0 0.0
    %1887 = vmatprep.subr.mxu0 0.0
    %1888 = vmatpush1.msra.mxu0 0.0
    %1889 = vmatprep.subr.mxu0 0.0
    %1890 = vmatpush1.msra.mxu0 0.0
    %1891 = vmatprep.subr.mxu0 0.0
    %1892 = vmatpush1.msra.mxu0 0.0
    %1893 = vmatprep.subr.mxu0 0.0
    %1894 = vmatpush1.msra.mxu0 0.0
    %1895 = vmatprep.subr.mxu0 0.0
    %1896 = vmatpush1.msra.mxu0 0.0
    %1897 = vmatprep.subr.mxu0 0.0
    %1898 = vmatpush1.msra.mxu0 0.0
    %1899 = vmatprep.subr.mxu0 0.0
    %1900 = vmatpush1.msra.mxu0 0.0
    %1901 = vmatprep.subr.mxu0 0.0
    %1902 = vmatpush1.msra.mxu0 0.0
    %1903 = vmatprep.subr.mxu0 0.0
    %1904 = vmatpush1.msra.mxu0 0.0
    %1905 = vmatprep.mubr.f32.mxu0 0.0
    %1906 = vmatmul.mubr.f32.gmra.mrb[0].mxu0 %v1839
    %v1907 = vpop.f32.mrb[0].mxu0
    %v1908 = vadd.f32 %v385, %v1907
    %v1909 = vpop.f32.mrb[0].mxu0
    %v1910 = vadd.f32 %v389, %v1909
    %1911 = vdwg.mxu0
    %1912 = vmatprep.subr.mxu0 0.0
    %1913 = vmatpush1.msra.mxu0 %v334
    %1914 = vmatprep.subr.mxu0 0.0
    %1915 = vmatpush1.msra.mxu0 %v337
    %1916 = vmatprep.subr.mxu0 0.0
    %1917 = vmatpush1.msra.mxu0 %v340
    %1918 = vmatprep.subr.mxu0 0.0
    %1919 = vmatpush1.msra.mxu0 %v343
    %1920 = vmatprep.subr.mxu0 0.0
    %1921 = vmatpush1.msra.mxu0 %v346
    %1922 = vmatprep.subr.mxu0 0.0
    %1923 = vmatpush1.msra.mxu0 %v349
    %1924 = vmatprep.subr.mxu0 0.0
    %1925 = vmatpush1.msra.mxu0 %v352
    %1926 = vmatprep.subr.mxu0 0.0
    %1927 = vmatpush1.msra.mxu0 %v355
    %1928 = vmatprep.subr.mxu0 0.0
    %1929 = vmatpush1.msra.mxu0 %v358
    %1930 = vmatprep.subr.mxu0 0.0
    %1931 = vmatpush1.msra.mxu0 %v361
    %1932 = vmatprep.subr.mxu0 0.0
    %1933 = vmatpush1.msra.mxu0 %v364
    %1934 = vmatprep.subr.mxu0 0.0
    %1935 = vmatpush1.msra.mxu0 %v367
    %1936 = vmatprep.subr.mxu0 0.0
    %1937 = vmatpush1.msra.mxu0 %v370
    %1938 = vmatprep.subr.mxu0 0.0
    %1939 = vmatpush1.msra.mxu0 %v373
    %1940 = vmatprep.subr.mxu0 0.0
    %1941 = vmatpush1.msra.mxu0 %v376
    %1942 = vmatprep.subr.mxu0 0.0
    %1943 = vmatpush1.msra.mxu0 %v379
    %1944 = vmatprep.subr.mxu0 0.0
    %1945 = vmatpush1.msra.mxu0 0.0
    %1946 = vmatprep.subr.mxu0 0.0
    %1947 = vmatpush1.msra.mxu0 0.0
    %1948 = vmatprep.subr.mxu0 0.0
    %1949 = vmatpush1.msra.mxu0 0.0
    %1950 = vmatprep.subr.mxu0 0.0
    %1951 = vmatpush1.msra.mxu0 0.0
    %1952 = vmatprep.subr.mxu0 0.0
    %1953 = vmatpush1.msra.mxu0 0.0
    %1954 = vmatprep.subr.mxu0 0.0
    %1955 = vmatpush1.msra.mxu0 0.0
    %1956 = vmatprep.subr.mxu0 0.0
    %1957 = vmatpush1.msra.mxu0 0.0
    %1958 = vmatprep.subr.mxu0 0.0
    %1959 = vmatpush1.msra.mxu0 0.0
    %1960 = vmatprep.subr.mxu0 0.0
    %1961 = vmatpush1.msra.mxu0 0.0
    %1962 = vmatprep.subr.mxu0 0.0
    %1963 = vmatpush1.msra.mxu0 0.0
    %1964 = vmatprep.subr.mxu0 0.0
    %1965 = vmatpush1.msra.mxu0 0.0
    %1966 = vmatprep.subr.mxu0 0.0
    %1967 = vmatpush1.msra.mxu0 0.0
    %1968 = vmatprep.subr.mxu0 0.0
    %1969 = vmatpush1.msra.mxu0 0.0
    %1970 = vmatprep.subr.mxu0 0.0
    %1971 = vmatpush1.msra.mxu0 0.0
    %1972 = vmatprep.subr.mxu0 0.0
    %1973 = vmatpush1.msra.mxu0 0.0
    %1974 = vmatprep.subr.mxu0 0.0
    %1975 = vmatpush1.msra.mxu0 0.0
    %1976 = vmatprep.mubr.f32.mxu0 0.0
    %1977 = vmatmul.mubr.f32.gmra.mrb[0].mxu0 %v1839
    %v1978 = vpop.f32.mrb[0].mxu0
    %v1979 = vadd.f32 %v393, %v1978
    %v1980 = vpop.f32.mrb[0].mxu0
    %1981 = vdwg.mxu0
    %v1983 = vrot.slane %v1908, 1
    %v1984 = vrot.slane %v1908, 2
    %v1987 = vadd.f32 %v247, %v1983
    %v1988 = vadd.f32 %v253, %v1984
    %v1989 = vxor.u32 %v1987, 2147483648
    %v1990 = vxor.u32 %v1988, 2147483648
    %v1991 = vmul.f32 %v1989, 1.442695
    %v1992 = vpow.pop %v1991
    %v1993 = vmul.f32 %v1990, 1.442695
    %v1994 = vpow.pop %v1993
    %v1995 = vadd.f32 %v1992, 1.0
    %v1996 = vadd.f32 %v1994, 1.0
    %v1997 = vrcp.pop %v1995
    %v1998 = vmul.f32 1.0, %v1997
    %v1999 = vrcp.pop %v1996
    %v2000 = vmul.f32 1.0, %v1999
    %v2002 = vrot.slane %v1910, 1
    %v2003 = vrot.slane %v1910, 2
    %v2006 = vadd.f32 %v249, %v2002
    %v2007 = vadd.f32 %v255, %v2003
    %v2008 = vxor.u32 %v2006, 2147483648
    %v2009 = vxor.u32 %v2007, 2147483648
    %v2010 = vmul.f32 %v2008, 1.442695
    %v2011 = vpow.pop %v2010
    %v2012 = vmul.f32 %v2009, 1.442695
    %v2013 = vpow.pop %v2012
    %v2014 = vadd.f32 %v2011, 1.0
    %v2015 = vadd.f32 %v2013, 1.0
    %v2016 = vrcp.pop %v2014
    %v2017 = vmul.f32 1.0, %v2016
    %v2018 = vrcp.pop %v2015
    %v2019 = vmul.f32 1.0, %v2018
    %v2021 = vrot.slane %v1979, 1
    %v2022 = vrot.slane %v1979, 2
    %v2025 = vmul.f32 %v1998, %v2021
    %v2026 = vmul.f32 %v2000, %v2022
    %v2027 = vadd.f32 %v324, %v2025
    %v2028 = vadd.f32 %v329, %v2026
    %v2029 = vtanh.pop %v2027
    %v2030 = vtanh.pop %v2028
    %v2031 = vsub.f32 1.0, %v2017
    %v2032 = vsub.f32 1.0, %v2019
    %v2033 = vmul.f32 %v2031, %v2029
    %v2034 = vmul.f32 %v2032, %v2030
    %v2035 = vrot.slane %v1833, 7
    %v2036 = vrot.slane %v1834, 7
    %v2039 = vmul.f32 %v2017, %v2035
    %v2040 = vmul.f32 %v2019, %v2036
    %v2041 = vadd.f32 %v2033, %v2039
    %v2042 = vadd.f32 %v2034, %v2040
    %v2043 = vld [vmem:[#allocation11] sm:$0xff]
    %v2044 = vld [vmem:[#allocation11 + $0x8] sm:$0xff]
    %v2045 = vld [vmem:[#allocation11 + $0x10] sm:$0xff]
    %v2046 = vld [vmem:[#allocation11 + $0x18] sm:$0xff]
    %v2047 = vld [vmem:[#allocation11 + $0x20] sm:$0xff]
    %v2048 = vld [vmem:[#allocation11 + $0x28] sm:$0xff]
    %v2049 = vld [vmem:[#allocation11 + $0x30] sm:$0xff]
    %v2050 = vld [vmem:[#allocation11 + $0x38] sm:$0xff]
    %v2051 = vld [vmem:[#allocation11 + $0x40] sm:$0xff]
    %v2052 = vld [vmem:[#allocation11 + $0x48] sm:$0xff]
    %v2053 = vld [vmem:[#allocation11 + $0x50] sm:$0xff]
    %v2054 = vld [vmem:[#allocation11 + $0x58] sm:$0xff]
    %v2055 = vld [vmem:[#allocation11 + $0x60] sm:$0xff]
    %v2056 = vld [vmem:[#allocation11 + $0x68] sm:$0xff]
    %v2057 = vld [vmem:[#allocation11 + $0x70] sm:$0xff]
    %v2058 = vld [vmem:[#allocation11 + $0x78] sm:$0xff]
    %v2059 = vld [vmem:[#allocation11 + $0x80] sm:$0xff]
    %v2060 = vld [vmem:[#allocation11 + $0x88] sm:$0xff]
    %v2061 = vld [vmem:[#allocation11 + $0x90] sm:$0xff]
    %v2062 = vld [vmem:[#allocation11 + $0x98] sm:$0xff]
    %v2063 = vld [vmem:[#allocation11 + $0xa0] sm:$0xff]
    %v2064 = vld [vmem:[#allocation11 + $0xa8] sm:$0xff]
    %v2065 = vld [vmem:[#allocation11 + $0xb0] sm:$0xff]
    %v2066 = vld [vmem:[#allocation11 + $0xb8] sm:$0xff]
    %v2067 = vld [vmem:[#allocation11 + $0xc0] sm:$0xff]
    %v2068 = vld [vmem:[#allocation11 + $0xc8] sm:$0xff]
    %v2069 = vld [vmem:[#allocation11 + $0xd0] sm:$0xff]
    %v2070 = vld [vmem:[#allocation11 + $0xd8] sm:$0xff]
    %v2071 = vld [vmem:[#allocation11 + $0xe0] sm:$0xff]
    %v2072 = vld [vmem:[#allocation11 + $0xe8] sm:$0xff]
    %v2073 = vld [vmem:[#allocation11 + $0xf0] sm:$0xff]
    %v2074 = vld [vmem:[#allocation11 + $0xf8] sm:$0xff]
    %v2075 = vld [vmem:[#allocation11 + $0x100] sm:$0xff]
    %v2076 = vld [vmem:[#allocation11 + $0x108] sm:$0xff]
    %v2077 = vld [vmem:[#allocation11 + $0x110] sm:$0xff]
    %v2078 = vld [vmem:[#allocation11 + $0x118] sm:$0xff]
    %v2079 = vld [vmem:[#allocation11 + $0x120] sm:$0xff]
    %v2080 = vld [vmem:[#allocation11 + $0x128] sm:$0xff]
    %v2081 = vld [vmem:[#allocation11 + $0x130] sm:$0xff]
    %v2082 = vld [vmem:[#allocation11 + $0x138] sm:$0xff]
    %v2083 = vld [vmem:[#allocation11 + $0x140] sm:$0xff]
    %v2084 = vld [vmem:[#allocation11 + $0x148] sm:$0xff]
    %v2085 = vld [vmem:[#allocation11 + $0x150] sm:$0xff]
    %v2086 = vld [vmem:[#allocation11 + $0x158] sm:$0xff]
    %v2087 = vld [vmem:[#allocation11 + $0x160] sm:$0xff]
    %v2088 = vld [vmem:[#allocation11 + $0x168] sm:$0xff]
    %v2089 = vld [vmem:[#allocation11 + $0x170] sm:$0xff]
    %v2090 = vld [vmem:[#allocation11 + $0x178] sm:$0xff]
    %v2091 = vld [vmem:[%s7] sm:$0x7]
    %v2093 = vlaneseq
    %v2094 = vshrl.u32 %v2093, 7
    %v2095 = vsub.s32 0, %v2094
    %v2096 = vrot.slane %v2091, %v2095
    %v2097 = vlaneseq
    %v2098 = vshrl.u32 %v2097, 7
    %v2099 = vsub.s32 1, %v2098
    %v2100 = vrot.slane %v2091, %v2099
    %v2101 = vlaneseq
    %v2102 = vshrl.u32 %v2101, 7
    %v2103 = vsub.s32 2, %v2102
    %v2104 = vrot.slane %v2091, %v2103
    %v2110 = vrot.slane %v2041, 7
    %v2111 = vrot.slane %v2042, 6
    %v2112 = vsel %vm595, %v2111, %v2110
    %2114 = vmatprep.subr.mxu0 %v2044
    %2115 = vmatpush1.msra.mxu0 %v2043
    %2116 = vmatprep.subr.mxu0 %v2047
    %2117 = vmatpush1.msra.mxu0 %v2046
    %2118 = vmatprep.subr.mxu0 %v2050
    %2119 = vmatpush1.msra.mxu0 %v2049
    %2120 = vmatprep.subr.mxu0 %v2053
    %2121 = vmatpush1.msra.mxu0 %v2052
    %2122 = vmatprep.subr.mxu0 %v2056
    %2123 = vmatpush1.msra.mxu0 %v2055
    %2124 = vmatprep.subr.mxu0 %v2059
    %2125 = vmatpush1.msra.mxu0 %v2058
    %2126 = vmatprep.subr.mxu0 %v2062
    %2127 = vmatpush1.msra.mxu0 %v2061
    %2128 = vmatprep.subr.mxu0 %v2065
    %2129 = vmatpush1.msra.mxu0 %v2064
    %2130 = vmatprep.subr.mxu0 %v2068
    %2131 = vmatpush1.msra.mxu0 %v2067
    %2132 = vmatprep.subr.mxu0 %v2071
    %2133 = vmatpush1.msra.mxu0 %v2070
    %2134 = vmatprep.subr.mxu0 %v2074
    %2135 = vmatpush1.msra.mxu0 %v2073
    %2136 = vmatprep.subr.mxu0 %v2077
    %2137 = vmatpush1.msra.mxu0 %v2076
    %2138 = vmatprep.subr.mxu0 %v2080
    %2139 = vmatpush1.msra.mxu0 %v2079
    %2140 = vmatprep.subr.mxu0 %v2083
    %2141 = vmatpush1.msra.mxu0 %v2082
    %2142 = vmatprep.subr.mxu0 %v2086
    %2143 = vmatpush1.msra.mxu0 %v2085
    %2144 = vmatprep.subr.mxu0 %v2089
    %2145 = vmatpush1.msra.mxu0 %v2088
    %2146 = vmatprep.subr.mxu0 0.0
    %2147 = vmatpush1.msra.mxu0 0.0
    %2148 = vmatprep.subr.mxu0 0.0
    %2149 = vmatpush1.msra.mxu0 0.0
    %2150 = vmatprep.subr.mxu0 0.0
    %2151 = vmatpush1.msra.mxu0 0.0
    %2152 = vmatprep.subr.mxu0 0.0
    %2153 = vmatpush1.msra.mxu0 0.0
    %2154 = vmatprep.subr.mxu0 0.0
    %2155 = vmatpush1.msra.mxu0 0.0
    %2156 = vmatprep.subr.mxu0 0.0
    %2157 = vmatpush1.msra.mxu0 0.0
    %2158 = vmatprep.subr.mxu0 0.0
    %2159 = vmatpush1.msra.mxu0 0.0
    %2160 = vmatprep.subr.mxu0 0.0
    %2161 = vmatpush1.msra.mxu0 0.0
    %2162 = vmatprep.subr.mxu0 0.0
    %2163 = vmatpush1.msra.mxu0 0.0
    %2164 = vmatprep.subr.mxu0 0.0
    %2165 = vmatpush1.msra.mxu0 0.0
    %2166 = vmatprep.subr.mxu0 0.0
    %2167 = vmatpush1.msra.mxu0 0.0
    %2168 = vmatprep.subr.mxu0 0.0
    %2169 = vmatpush1.msra.mxu0 0.0
    %2170 = vmatprep.subr.mxu0 0.0
    %2171 = vmatpush1.msra.mxu0 0.0
    %2172 = vmatprep.subr.mxu0 0.0
    %2173 = vmatpush1.msra.mxu0 0.0
    %2174 = vmatprep.subr.mxu0 0.0
    %2175 = vmatpush1.msra.mxu0 0.0
    %2176 = vmatprep.subr.mxu0 0.0
    %2177 = vmatpush1.msra.mxu0 0.0
    %2178 = vmatprep.mubr.f32.mxu0 0.0
    %2179 = vmatmul.mubr.f32.gmra.mrb[0].mxu0 %v2112
    %v2180 = vpop.f32.mrb[0].mxu0
    %v2181 = vadd.f32 %v2096, %v2180
    %v2182 = vpop.f32.mrb[0].mxu0
    %v2183 = vadd.f32 %v2100, %v2182
    %2184 = vdwg.mxu0
    %2185 = vmatprep.subr.mxu0 0.0
    %2186 = vmatpush1.msra.mxu0 %v2045
    %2187 = vmatprep.subr.mxu0 0.0
    %2188 = vmatpush1.msra.mxu0 %v2048
    %2189 = vmatprep.subr.mxu0 0.0
    %2190 = vmatpush1.msra.mxu0 %v2051
    %2191 = vmatprep.subr.mxu0 0.0
    %2192 = vmatpush1.msra.mxu0 %v2054
    %2193 = vmatprep.subr.mxu0 0.0
    %2194 = vmatpush1.msra.mxu0 %v2057
    %2195 = vmatprep.subr.mxu0 0.0
    %2196 = vmatpush1.msra.mxu0 %v2060
    %2197 = vmatprep.subr.mxu0 0.0
    %2198 = vmatpush1.msra.mxu0 %v2063
    %2199 = vmatprep.subr.mxu0 0.0
    %2200 = vmatpush1.msra.mxu0 %v2066
    %2201 = vmatprep.subr.mxu0 0.0
    %2202 = vmatpush1.msra.mxu0 %v2069
    %2203 = vmatprep.subr.mxu0 0.0
    %2204 = vmatpush1.msra.mxu0 %v2072
    %2205 = vmatprep.subr.mxu0 0.0
    %2206 = vmatpush1.msra.mxu0 %v2075
    %2207 = vmatprep.subr.mxu0 0.0
    %2208 = vmatpush1.msra.mxu0 %v2078
    %2209 = vmatprep.subr.mxu0 0.0
    %2210 = vmatpush1.msra.mxu0 %v2081
    %2211 = vmatprep.subr.mxu0 0.0
    %2212 = vmatpush1.msra.mxu0 %v2084
    %2213 = vmatprep.subr.mxu0 0.0
    %2214 = vmatpush1.msra.mxu0 %v2087
    %2215 = vmatprep.subr.mxu0 0.0
    %2216 = vmatpush1.msra.mxu0 %v2090
    %2217 = vmatprep.subr.mxu0 0.0
    %2218 = vmatpush1.msra.mxu0 0.0
    %2219 = vmatprep.subr.mxu0 0.0
    %2220 = vmatpush1.msra.mxu0 0.0
    %2221 = vmatprep.subr.mxu0 0.0
    %2222 = vmatpush1.msra.mxu0 0.0
    %2223 = vmatprep.subr.mxu0 0.0
    %2224 = vmatpush1.msra.mxu0 0.0
    %2225 = vmatprep.subr.mxu0 0.0
    %2226 = vmatpush1.msra.mxu0 0.0
    %2227 = vmatprep.subr.mxu0 0.0
    %2228 = vmatpush1.msra.mxu0 0.0
    %2229 = vmatprep.subr.mxu0 0.0
    %2230 = vmatpush1.msra.mxu0 0.0
    %2231 = vmatprep.subr.mxu0 0.0
    %2232 = vmatpush1.msra.mxu0 0.0
    %2233 = vmatprep.subr.mxu0 0.0
    %2234 = vmatpush1.msra.mxu0 0.0
    %2235 = vmatprep.subr.mxu0 0.0
    %2236 = vmatpush1.msra.mxu0 0.0
    %2237 = vmatprep.subr.mxu0 0.0
    %2238 = vmatpush1.msra.mxu0 0.0
    %2239 = vmatprep.subr.mxu0 0.0
    %2240 = vmatpush1.msra.mxu0 0.0
    %2241 = vmatprep.subr.mxu0 0.0
    %2242 = vmatpush1.msra.mxu0 0.0
    %2243 = vmatprep.subr.mxu0 0.0
    %2244 = vmatpush1.msra.mxu0 0.0
    %2245 = vmatprep.subr.mxu0 0.0
    %2246 = vmatpush1.msra.mxu0 0.0
    %2247 = vmatprep.subr.mxu0 0.0
    %2248 = vmatpush1.msra.mxu0 0.0
    %2249 = vmatprep.mubr.f32.mxu0 0.0
    %2250 = vmatmul.mubr.f32.gmra.mrb[0].mxu0 %v2112
    %v2251 = vpop.f32.mrb[0].mxu0
    %v2252 = vadd.f32 %v2104, %v2251
    %v2253 = vpop.f32.mrb[0].mxu0
    %2254 = vdwg.mxu0
    %v2255 = vld [vmem:[#allocation12] sm:$0xff]
    %v2256 = vld [vmem:[#allocation12 + $0x8] sm:$0xff]
    %v2257 = vld [vmem:[#allocation12 + $0x10] sm:$0xff]
    %v2258 = vld [vmem:[#allocation12 + $0x18] sm:$0xff]
    %v2259 = vld [vmem:[#allocation12 + $0x20] sm:$0xff]
    %v2260 = vld [vmem:[#allocation12 + $0x28] sm:$0xff]
    %v2261 = vld [vmem:[#allocation12 + $0x30] sm:$0xff]
    %v2262 = vld [vmem:[#allocation12 + $0x38] sm:$0xff]
    %v2263 = vld [vmem:[#allocation12 + $0x40] sm:$0xff]
    %v2264 = vld [vmem:[#allocation12 + $0x48] sm:$0xff]
    %v2265 = vld [vmem:[#allocation12 + $0x50] sm:$0xff]
    %v2266 = vld [vmem:[#allocation12 + $0x58] sm:$0xff]
    %v2267 = vld [vmem:[#allocation12 + $0x60] sm:$0xff]
    %v2268 = vld [vmem:[#allocation12 + $0x68] sm:$0xff]
    %v2269 = vld [vmem:[#allocation12 + $0x70] sm:$0xff]
    %v2270 = vld [vmem:[#allocation12 + $0x78] sm:$0xff]
    %v2271 = vld [vmem:[#allocation12 + $0x80] sm:$0xff]
    %v2272 = vld [vmem:[#allocation12 + $0x88] sm:$0xff]
    %v2273 = vld [vmem:[#allocation12 + $0x90] sm:$0xff]
    %v2274 = vld [vmem:[#allocation12 + $0x98] sm:$0xff]
    %v2275 = vld [vmem:[#allocation12 + $0xa0] sm:$0xff]
    %v2276 = vld [vmem:[#allocation12 + $0xa8] sm:$0xff]
    %v2277 = vld [vmem:[#allocation12 + $0xb0] sm:$0xff]
    %v2278 = vld [vmem:[#allocation12 + $0xb8] sm:$0xff]
    %v2279 = vld [vmem:[#allocation12 + $0xc0] sm:$0xff]
    %v2280 = vld [vmem:[#allocation12 + $0xc8] sm:$0xff]
    %v2281 = vld [vmem:[#allocation12 + $0xd0] sm:$0xff]
    %v2282 = vld [vmem:[#allocation12 + $0xd8] sm:$0xff]
    %v2283 = vld [vmem:[#allocation12 + $0xe0] sm:$0xff]
    %v2284 = vld [vmem:[#allocation12 + $0xe8] sm:$0xff]
    %v2285 = vld [vmem:[#allocation12 + $0xf0] sm:$0xff]
    %v2286 = vld [vmem:[#allocation12 + $0xf8] sm:$0xff]
    %v2287 = vld [vmem:[#allocation12 + $0x100] sm:$0xff]
    %v2288 = vld [vmem:[#allocation12 + $0x108] sm:$0xff]
    %v2289 = vld [vmem:[#allocation12 + $0x110] sm:$0xff]
    %v2290 = vld [vmem:[#allocation12 + $0x118] sm:$0xff]
    %v2291 = vld [vmem:[#allocation12 + $0x120] sm:$0xff]
    %v2292 = vld [vmem:[#allocation12 + $0x128] sm:$0xff]
    %v2293 = vld [vmem:[#allocation12 + $0x130] sm:$0xff]
    %v2294 = vld [vmem:[#allocation12 + $0x138] sm:$0xff]
    %v2295 = vld [vmem:[#allocation12 + $0x140] sm:$0xff]
    %v2296 = vld [vmem:[#allocation12 + $0x148] sm:$0xff]
    %v2297 = vld [vmem:[#allocation12 + $0x150] sm:$0xff]
    %v2298 = vld [vmem:[#allocation12 + $0x158] sm:$0xff]
    %v2299 = vld [vmem:[#allocation12 + $0x160] sm:$0xff]
    %v2300 = vld [vmem:[#allocation12 + $0x168] sm:$0xff]
    %v2301 = vld [vmem:[#allocation12 + $0x170] sm:$0xff]
    %v2302 = vld [vmem:[#allocation12 + $0x178] sm:$0xff]
    %v2303 = vld [vmem:[%s8] sm:$0x7]
    %v2305 = vlaneseq
    %v2306 = vshrl.u32 %v2305, 7
    %v2307 = vsub.s32 0, %v2306
    %v2308 = vrot.slane %v2303, %v2307
    %v2309 = vlaneseq
    %v2310 = vshrl.u32 %v2309, 7
    %v2311 = vsub.s32 1, %v2310
    %v2312 = vrot.slane %v2303, %v2311
    %v2313 = vlaneseq
    %v2314 = vshrl.u32 %v2313, 7
    %v2315 = vsub.s32 2, %v2314
    %v2316 = vrot.slane %v2303, %v2315
    %2320 = vmatprep.subr.mxu0 %v2256
    %2321 = vmatpush1.msra.mxu0 %v2255
    %2322 = vmatprep.subr.mxu0 %v2259
    %2323 = vmatpush1.msra.mxu0 %v2258
    %2324 = vmatprep.subr.mxu0 %v2262
    %2325 = vmatpush1.msra.mxu0 %v2261
    %2326 = vmatprep.subr.mxu0 %v2265
    %2327 = vmatpush1.msra.mxu0 %v2264
    %2328 = vmatprep.subr.mxu0 %v2268
    %2329 = vmatpush1.msra.mxu0 %v2267
    %2330 = vmatprep.subr.mxu0 %v2271
    %2331 = vmatpush1.msra.mxu0 %v2270
    %2332 = vmatprep.subr.mxu0 %v2274
    %2333 = vmatpush1.msra.mxu0 %v2273
    %2334 = vmatprep.subr.mxu0 %v2277
    %2335 = vmatpush1.msra.mxu0 %v2276
    %2336 = vmatprep.subr.mxu0 %v2280
    %2337 = vmatpush1.msra.mxu0 %v2279
    %2338 = vmatprep.subr.mxu0 %v2283
    %2339 = vmatpush1.msra.mxu0 %v2282
    %2340 = vmatprep.subr.mxu0 %v2286
    %2341 = vmatpush1.msra.mxu0 %v2285
    %2342 = vmatprep.subr.mxu0 %v2289
    %2343 = vmatpush1.msra.mxu0 %v2288
    %2344 = vmatprep.subr.mxu0 %v2292
    %2345 = vmatpush1.msra.mxu0 %v2291
    %2346 = vmatprep.subr.mxu0 %v2295
    %2347 = vmatpush1.msra.mxu0 %v2294
    %2348 = vmatprep.subr.mxu0 %v2298
    %2349 = vmatpush1.msra.mxu0 %v2297
    %2350 = vmatprep.subr.mxu0 %v2301
    %2351 = vmatpush1.msra.mxu0 %v2300
    %2352 = vmatprep.subr.mxu0 0.0
    %2353 = vmatpush1.msra.mxu0 0.0
    %2354 = vmatprep.subr.mxu0 0.0
    %2355 = vmatpush1.msra.mxu0 0.0
    %2356 = vmatprep.subr.mxu0 0.0
    %2357 = vmatpush1.msra.mxu0 0.0
    %2358 = vmatprep.subr.mxu0 0.0
    %2359 = vmatpush1.msra.mxu0 0.0
    %2360 = vmatprep.subr.mxu0 0.0
    %2361 = vmatpush1.msra.mxu0 0.0
    %2362 = vmatprep.subr.mxu0 0.0
    %2363 = vmatpush1.msra.mxu0 0.0
    %2364 = vmatprep.subr.mxu0 0.0
    %2365 = vmatpush1.msra.mxu0 0.0
    %2366 = vmatprep.subr.mxu0 0.0
    %2367 = vmatpush1.msra.mxu0 0.0
    %2368 = vmatprep.subr.mxu0 0.0
    %2369 = vmatpush1.msra.mxu0 0.0
    %2370 = vmatprep.subr.mxu0 0.0
    %2371 = vmatpush1.msra.mxu0 0.0
    %2372 = vmatprep.subr.mxu0 0.0
    %2373 = vmatpush1.msra.mxu0 0.0
    %2374 = vmatprep.subr.mxu0 0.0
    %2375 = vmatpush1.msra.mxu0 0.0
    %2376 = vmatprep.subr.mxu0 0.0
    %2377 = vmatpush1.msra.mxu0 0.0
    %2378 = vmatprep.subr.mxu0 0.0
    %2379 = vmatpush1.msra.mxu0 0.0
    %2380 = vmatprep.subr.mxu0 0.0
    %2381 = vmatpush1.msra.mxu0 0.0
    %2382 = vmatprep.subr.mxu0 0.0
    %2383 = vmatpush1.msra.mxu0 0.0
    %2384 = vmatprep.mubr.f32.mxu0 0.0
    %2385 = vmatmul.mubr.f32.gmra.mrb[0].mxu0 %v2112
    %v2386 = vpop.f32.mrb[0].mxu0
    %v2387 = vadd.f32 %v2308, %v2386
    %v2388 = vpop.f32.mrb[0].mxu0
    %v2389 = vadd.f32 %v2312, %v2388
    %2390 = vdwg.mxu0
    %2391 = vmatprep.subr.mxu0 0.0
    %2392 = vmatpush1.msra.mxu0 %v2257
    %2393 = vmatprep.subr.mxu0 0.0
    %2394 = vmatpush1.msra.mxu0 %v2260
    %2395 = vmatprep.subr.mxu0 0.0
    %2396 = vmatpush1.msra.mxu0 %v2263
    %2397 = vmatprep.subr.mxu0 0.0
    %2398 = vmatpush1.msra.mxu0 %v2266
    %2399 = vmatprep.subr.mxu0 0.0
    %2400 = vmatpush1.msra.mxu0 %v2269
    %2401 = vmatprep.subr.mxu0 0.0
    %2402 = vmatpush1.msra.mxu0 %v2272
    %2403 = vmatprep.subr.mxu0 0.0
    %2404 = vmatpush1.msra.mxu0 %v2275
    %2405 = vmatprep.subr.mxu0 0.0
    %2406 = vmatpush1.msra.mxu0 %v2278
    %2407 = vmatprep.subr.mxu0 0.0
    %2408 = vmatpush1.msra.mxu0 %v2281
    %2409 = vmatprep.subr.mxu0 0.0
    %2410 = vmatpush1.msra.mxu0 %v2284
    %2411 = vmatprep.subr.mxu0 0.0
    %2412 = vmatpush1.msra.mxu0 %v2287
    %2413 = vmatprep.subr.mxu0 0.0
    %2414 = vmatpush1.msra.mxu0 %v2290
    %2415 = vmatprep.subr.mxu0 0.0
    %2416 = vmatpush1.msra.mxu0 %v2293
    %2417 = vmatprep.subr.mxu0 0.0
    %2418 = vmatpush1.msra.mxu0 %v2296
    %2419 = vmatprep.subr.mxu0 0.0
    %2420 = vmatpush1.msra.mxu0 %v2299
    %2421 = vmatprep.subr.mxu0 0.0
    %2422 = vmatpush1.msra.mxu0 %v2302
    %2423 = vmatprep.subr.mxu0 0.0
    %2424 = vmatpush1.msra.mxu0 0.0
    %2425 = vmatprep.subr.mxu0 0.0
    %2426 = vmatpush1.msra.mxu0 0.0
    %2427 = vmatprep.subr.mxu0 0.0
    %2428 = vmatpush1.msra.mxu0 0.0
    %2429 = vmatprep.subr.mxu0 0.0
    %2430 = vmatpush1.msra.mxu0 0.0
    %2431 = vmatprep.subr.mxu0 0.0
    %2432 = vmatpush1.msra.mxu0 0.0
    %2433 = vmatprep.subr.mxu0 0.0
    %2434 = vmatpush1.msra.mxu0 0.0
    %2435 = vmatprep.subr.mxu0 0.0
    %2436 = vmatpush1.msra.mxu0 0.0
    %2437 = vmatprep.subr.mxu0 0.0
    %2438 = vmatpush1.msra.mxu0 0.0
    %2439 = vmatprep.subr.mxu0 0.0
    %2440 = vmatpush1.msra.mxu0 0.0
    %2441 = vmatprep.subr.mxu0 0.0
    %2442 = vmatpush1.msra.mxu0 0.0
    %2443 = vmatprep.subr.mxu0 0.0
    %2444 = vmatpush1.msra.mxu0 0.0
    %2445 = vmatprep.subr.mxu0 0.0
    %2446 = vmatpush1.msra.mxu0 0.0
    %2447 = vmatprep.subr.mxu0 0.0
    %2448 = vmatpush1.msra.mxu0 0.0
    %2449 = vmatprep.subr.mxu0 0.0
    %2450 = vmatpush1.msra.mxu0 0.0
    %2451 = vmatprep.subr.mxu0 0.0
    %2452 = vmatpush1.msra.mxu0 0.0
    %2453 = vmatprep.subr.mxu0 0.0
    %2454 = vmatpush1.msra.mxu0 0.0
    %2455 = vmatprep.mubr.f32.mxu0 0.0
    %2456 = vmatmul.mubr.f32.gmra.mrb[0].mxu0 %v2112
    %v2457 = vpop.f32.mrb[0].mxu0
    %v2458 = vadd.f32 %v2316, %v2457
    %v2459 = vpop.f32.mrb[0].mxu0
    %2460 = vdwg.mxu0
    %v2461 = vadd.f32 %v2181, %v2387
    %v2462 = vxor.u32 %v2461, 2147483648
    %v2463 = vmul.f32 %v2462, 1.442695
    %v2464 = vpow.pop %v2463
    %v2465 = vadd.f32 %v2464, 1.0
    %v2466 = vrcp.pop %v2465
    %v2467 = vmul.f32 1.0, %v2466
    %v2468 = vadd.f32 %v2183, %v2389
    %v2469 = vxor.u32 %v2468, 2147483648
    %v2470 = vmul.f32 %v2469, 1.442695
    %v2471 = vpow.pop %v2470
    %v2472 = vadd.f32 %v2471, 1.0
    %v2473 = vrcp.pop %v2472
    %v2474 = vmul.f32 1.0, %v2473
    %v2475 = vmul.f32 %v2467, %v2458
    %v2476 = vadd.f32 %v2252, %v2475
    %v2477 = vtanh.pop %v2476
    %v2478 = vsub.f32 1.0, %v2474
    %v2479 = vmul.f32 %v2478, %v2477
    %v2480 = vmul.f32 %v2474, %v2112
    %v2481 = vadd.f32 %v2479, %v2480
    %v2484 = vunpack.c.l.s4 1966171168
    %v2485 = vunpack.c.0.s8 %v2484
    %v2486 = vlaneseq
    %v2487 = vshrl.u32 %v2486, 7
    %v2488 = vsub.s32 %v2485, %v2487
    %v2489 = vrot.slane %v2481, %v2488
    %v2490 = vcombine.high %v2489, %v2489
    %v2492 = vunpack.c.l.s4 1966171168
    %v2493 = vunpack.c.0.s8 %v2492
    %v2494 = vlaneseq
    %v2495 = vshrl.u32 %v2494, 7
    %v2496 = vsub.s32 %v2493, %v2495
    %v2497 = vrot.slane %v2489, %v2496
    %v2499 = vunpack.c.l.s4 1966171168
    %v2500 = vunpack.c.0.s8 %v2499
    %v2501 = vlaneseq
    %v2502 = vshrl.u32 %v2501, 7
    %v2503 = vsub.s32 %v2500, %v2502
    %v2504 = vrot.slane %v2490, %v2503
    %2507 = vst [vmem:[#allocation2] sm:$0x1] %v2497
    %2508 = vst [vmem:[#allocation2 + $0x8] sm:$0x1] %v2504
    %2509 = vmatprep.subr.mxu0 %v2256
    %2510 = vmatpush1.msra.mxu0 %v2255
    %2511 = vmatprep.subr.mxu0 %v2259
    %2512 = vmatpush1.msra.mxu0 %v2258
    %2513 = vmatprep.subr.mxu0 %v2262
    %2514 = vmatpush1.msra.mxu0 %v2261
    %2515 = vmatprep.subr.mxu0 %v2265
    %2516 = vmatpush1.msra.mxu0 %v2264
    %2517 = vmatprep.subr.mxu0 %v2268
    %2518 = vmatpush1.msra.mxu0 %v2267
    %2519 = vmatprep.subr.mxu0 %v2271
    %2520 = vmatpush1.msra.mxu0 %v2270
    %2521 = vmatprep.subr.mxu0 %v2274
    %2522 = vmatpush1.msra.mxu0 %v2273
    %2523 = vmatprep.subr.mxu0 %v2277
    %2524 = vmatpush1.msra.mxu0 %v2276
    %2525 = vmatprep.subr.mxu0 %v2280
    %2526 = vmatpush1.msra.mxu0 %v2279
    %2527 = vmatprep.subr.mxu0 %v2283
    %2528 = vmatpush1.msra.mxu0 %v2282
    %2529 = vmatprep.subr.mxu0 %v2286
    %2530 = vmatpush1.msra.mxu0 %v2285
    %2531 = vmatprep.subr.mxu0 %v2289
    %2532 = vmatpush1.msra.mxu0 %v2288
    %2533 = vmatprep.subr.mxu0 %v2292
    %2534 = vmatpush1.msra.mxu0 %v2291
    %2535 = vmatprep.subr.mxu0 %v2295
    %2536 = vmatpush1.msra.mxu0 %v2294
    %2537 = vmatprep.subr.mxu0 %v2298
    %2538 = vmatpush1.msra.mxu0 %v2297
    %2539 = vmatprep.subr.mxu0 %v2301
    %2540 = vmatpush1.msra.mxu0 %v2300
    %2541 = vmatprep.subr.mxu0 0.0
    %2542 = vmatpush1.msra.mxu0 0.0
    %2543 = vmatprep.subr.mxu0 0.0
    %2544 = vmatpush1.msra.mxu0 0.0
    %2545 = vmatprep.subr.mxu0 0.0
    %2546 = vmatpush1.msra.mxu0 0.0
    %2547 = vmatprep.subr.mxu0 0.0
    %2548 = vmatpush1.msra.mxu0 0.0
    %2549 = vmatprep.subr.mxu0 0.0
    %2550 = vmatpush1.msra.mxu0 0.0
    %2551 = vmatprep.subr.mxu0 0.0
    %2552 = vmatpush1.msra.mxu0 0.0
    %2553 = vmatprep.subr.mxu0 0.0
    %2554 = vmatpush1.msra.mxu0 0.0
    %2555 = vmatprep.subr.mxu0 0.0
    %2556 = vmatpush1.msra.mxu0 0.0
    %2557 = vmatprep.subr.mxu0 0.0
    %2558 = vmatpush1.msra.mxu0 0.0
    %2559 = vmatprep.subr.mxu0 0.0
    %2560 = vmatpush1.msra.mxu0 0.0
    %2561 = vmatprep.subr.mxu0 0.0
    %2562 = vmatpush1.msra.mxu0 0.0
    %2563 = vmatprep.subr.mxu0 0.0
    %2564 = vmatpush1.msra.mxu0 0.0
    %2565 = vmatprep.subr.mxu0 0.0
    %2566 = vmatpush1.msra.mxu0 0.0
    %2567 = vmatprep.subr.mxu0 0.0
    %2568 = vmatpush1.msra.mxu0 0.0
    %2569 = vmatprep.subr.mxu0 0.0
    %2570 = vmatpush1.msra.mxu0 0.0
    %2571 = vmatprep.subr.mxu0 0.0
    %2572 = vmatpush1.msra.mxu0 0.0
    %2573 = vmatprep.mubr.f32.mxu0 0.0
    %2574 = vmatmul.mubr.f32.gmra.mrb[0].mxu0 %v2481
    %v2575 = vpop.f32.mrb[0].mxu0
    %v2576 = vadd.f32 %v2308, %v2575
    %v2577 = vpop.f32.mrb[0].mxu0
    %v2578 = vadd.f32 %v2312, %v2577
    %2579 = vdwg.mxu0
    %2580 = vmatprep.subr.mxu0 0.0
    %2581 = vmatpush1.msra.mxu0 %v2257
    %2582 = vmatprep.subr.mxu0 0.0
    %2583 = vmatpush1.msra.mxu0 %v2260
    %2584 = vmatprep.subr.mxu0 0.0
    %2585 = vmatpush1.msra.mxu0 %v2263
    %2586 = vmatprep.subr.mxu0 0.0
    %2587 = vmatpush1.msra.mxu0 %v2266
    %2588 = vmatprep.subr.mxu0 0.0
    %2589 = vmatpush1.msra.mxu0 %v2269
    %2590 = vmatprep.subr.mxu0 0.0
    %2591 = vmatpush1.msra.mxu0 %v2272
    %2592 = vmatprep.subr.mxu0 0.0
    %2593 = vmatpush1.msra.mxu0 %v2275
    %2594 = vmatprep.subr.mxu0 0.0
    %2595 = vmatpush1.msra.mxu0 %v2278
    %2596 = vmatprep.subr.mxu0 0.0
    %2597 = vmatpush1.msra.mxu0 %v2281
    %2598 = vmatprep.subr.mxu0 0.0
    %2599 = vmatpush1.msra.mxu0 %v2284
    %2600 = vmatprep.subr.mxu0 0.0
    %2601 = vmatpush1.msra.mxu0 %v2287
    %2602 = vmatprep.subr.mxu0 0.0
    %2603 = vmatpush1.msra.mxu0 %v2290
    %2604 = vmatprep.subr.mxu0 0.0
    %2605 = vmatpush1.msra.mxu0 %v2293
    %2606 = vmatprep.subr.mxu0 0.0
    %2607 = vmatpush1.msra.mxu0 %v2296
    %2608 = vmatprep.subr.mxu0 0.0
    %2609 = vmatpush1.msra.mxu0 %v2299
    %2610 = vmatprep.subr.mxu0 0.0
    %2611 = vmatpush1.msra.mxu0 %v2302
    %2612 = vmatprep.subr.mxu0 0.0
    %2613 = vmatpush1.msra.mxu0 0.0
    %2614 = vmatprep.subr.mxu0 0.0
    %2615 = vmatpush1.msra.mxu0 0.0
    %2616 = vmatprep.subr.mxu0 0.0
    %2617 = vmatpush1.msra.mxu0 0.0
    %2618 = vmatprep.subr.mxu0 0.0
    %2619 = vmatpush1.msra.mxu0 0.0
    %2620 = vmatprep.subr.mxu0 0.0
    %2621 = vmatpush1.msra.mxu0 0.0
    %2622 = vmatprep.subr.mxu0 0.0
    %2623 = vmatpush1.msra.mxu0 0.0
    %2624 = vmatprep.subr.mxu0 0.0
    %2625 = vmatpush1.msra.mxu0 0.0
    %2626 = vmatprep.subr.mxu0 0.0
    %2627 = vmatpush1.msra.mxu0 0.0
    %2628 = vmatprep.subr.mxu0 0.0
    %2629 = vmatpush1.msra.mxu0 0.0
    %2630 = vmatprep.subr.mxu0 0.0
    %2631 = vmatpush1.msra.mxu0 0.0
    %2632 = vmatprep.subr.mxu0 0.0
    %2633 = vmatpush1.msra.mxu0 0.0
    %2634 = vmatprep.subr.mxu0 0.0
    %2635 = vmatpush1.msra.mxu0 0.0
    %2636 = vmatprep.subr.mxu0 0.0
    %2637 = vmatpush1.msra.mxu0 0.0
    %2638 = vmatprep.subr.mxu0 0.0
    %2639 = vmatpush1.msra.mxu0 0.0
    %2640 = vmatprep.subr.mxu0 0.0
    %2641 = vmatpush1.msra.mxu0 0.0
    %2642 = vmatprep.subr.mxu0 0.0
    %2643 = vmatpush1.msra.mxu0 0.0
    %2644 = vmatprep.mubr.f32.mxu0 0.0
    %2645 = vmatmul.mubr.f32.gmra.mrb[0].mxu0 %v2481
    %v2646 = vpop.f32.mrb[0].mxu0
    %v2647 = vadd.f32 %v2316, %v2646
    %v2648 = vpop.f32.mrb[0].mxu0
    %2649 = vdwg.mxu0
    %v2650 = vadd.f32 %v2181, %v2576
    %v2651 = vxor.u32 %v2650, 2147483648
    %v2652 = vmul.f32 %v2651, 1.442695
    %v2653 = vpow.pop %v2652
    %v2654 = vadd.f32 %v2653, 1.0
    %v2655 = vrcp.pop %v2654
    %v2656 = vmul.f32 1.0, %v2655
    %v2657 = vadd.f32 %v2183, %v2578
    %v2658 = vxor.u32 %v2657, 2147483648
    %v2659 = vmul.f32 %v2658, 1.442695
    %v2660 = vpow.pop %v2659
    %v2661 = vadd.f32 %v2660, 1.0
    %v2662 = vrcp.pop %v2661
    %v2663 = vmul.f32 1.0, %v2662
    %v2664 = vmul.f32 %v2656, %v2647
    %v2665 = vadd.f32 %v2252, %v2664
    %v2666 = vtanh.pop %v2665
    %v2667 = vsub.f32 1.0, %v2663
    %v2668 = vmul.f32 %v2667, %v2666
    %v2669 = vmul.f32 %v2663, %v2481
    %v2670 = vadd.f32 %v2668, %v2669
    %v2673 = vunpack.c.l.s4 1966171168
    %v2674 = vunpack.c.0.s8 %v2673
    %v2675 = vlaneseq
    %v2676 = vshrl.u32 %v2675, 7
    %v2677 = vsub.s32 %v2674, %v2676
    %v2678 = vrot.slane %v2670, %v2677
    %v2679 = vcombine.high %v2678, %v2678
    %v2681 = vunpack.c.l.s4 1966171168
    %v2682 = vunpack.c.0.s8 %v2681
    %v2683 = vlaneseq
    %v2684 = vshrl.u32 %v2683, 7
    %v2685 = vsub.s32 %v2682, %v2684
    %v2686 = vrot.slane %v2678, %v2685
    %v2688 = vunpack.c.l.s4 1966171168
    %v2689 = vunpack.c.0.s8 %v2688
    %v2690 = vlaneseq
    %v2691 = vshrl.u32 %v2690, 7
    %v2692 = vsub.s32 %v2689, %v2691
    %v2693 = vrot.slane %v2679, %v2692
    %2696 = vst [vmem:[#allocation2 + $0x1] sm:$0x1] %v2686
    %2697 = vst [vmem:[#allocation2 + $0x9] sm:$0x1] %v2693
    %2698 = vmatprep.subr.mxu0 %v2256
    %2699 = vmatpush1.msra.mxu0 %v2255
    %2700 = vmatprep.subr.mxu0 %v2259
    %2701 = vmatpush1.msra.mxu0 %v2258
    %2702 = vmatprep.subr.mxu0 %v2262
    %2703 = vmatpush1.msra.mxu0 %v2261
    %2704 = vmatprep.subr.mxu0 %v2265
    %2705 = vmatpush1.msra.mxu0 %v2264
    %2706 = vmatprep.subr.mxu0 %v2268
    %2707 = vmatpush1.msra.mxu0 %v2267
    %2708 = vmatprep.subr.mxu0 %v2271
    %2709 = vmatpush1.msra.mxu0 %v2270
    %2710 = vmatprep.subr.mxu0 %v2274
    %2711 = vmatpush1.msra.mxu0 %v2273
    %2712 = vmatprep.subr.mxu0 %v2277
    %2713 = vmatpush1.msra.mxu0 %v2276
    %2714 = vmatprep.subr.mxu0 %v2280
    %2715 = vmatpush1.msra.mxu0 %v2279
    %2716 = vmatprep.subr.mxu0 %v2283
    %2717 = vmatpush1.msra.mxu0 %v2282
    %2718 = vmatprep.subr.mxu0 %v2286
    %2719 = vmatpush1.msra.mxu0 %v2285
    %2720 = vmatprep.subr.mxu0 %v2289
    %2721 = vmatpush1.msra.mxu0 %v2288
    %2722 = vmatprep.subr.mxu0 %v2292
    %2723 = vmatpush1.msra.mxu0 %v2291
    %2724 = vmatprep.subr.mxu0 %v2295
    %2725 = vmatpush1.msra.mxu0 %v2294
    %2726 = vmatprep.subr.mxu0 %v2298
    %2727 = vmatpush1.msra.mxu0 %v2297
    %2728 = vmatprep.subr.mxu0 %v2301
    %2729 = vmatpush1.msra.mxu0 %v2300
    %2730 = vmatprep.subr.mxu0 0.0
    %2731 = vmatpush1.msra.mxu0 0.0
    %2732 = vmatprep.subr.mxu0 0.0
    %2733 = vmatpush1.msra.mxu0 0.0
    %2734 = vmatprep.subr.mxu0 0.0
    %2735 = vmatpush1.msra.mxu0 0.0
    %2736 = vmatprep.subr.mxu0 0.0
    %2737 = vmatpush1.msra.mxu0 0.0
    %2738 = vmatprep.subr.mxu0 0.0
    %2739 = vmatpush1.msra.mxu0 0.0
    %2740 = vmatprep.subr.mxu0 0.0
    %2741 = vmatpush1.msra.mxu0 0.0
    %2742 = vmatprep.subr.mxu0 0.0
    %2743 = vmatpush1.msra.mxu0 0.0
    %2744 = vmatprep.subr.mxu0 0.0
    %2745 = vmatpush1.msra.mxu0 0.0
    %2746 = vmatprep.subr.mxu0 0.0
    %2747 = vmatpush1.msra.mxu0 0.0
    %2748 = vmatprep.subr.mxu0 0.0
    %2749 = vmatpush1.msra.mxu0 0.0
    %2750 = vmatprep.subr.mxu0 0.0
    %2751 = vmatpush1.msra.mxu0 0.0
    %2752 = vmatprep.subr.mxu0 0.0
    %2753 = vmatpush1.msra.mxu0 0.0
    %2754 = vmatprep.subr.mxu0 0.0
    %2755 = vmatpush1.msra.mxu0 0.0
    %2756 = vmatprep.subr.mxu0 0.0
    %2757 = vmatpush1.msra.mxu0 0.0
    %2758 = vmatprep.subr.mxu0 0.0
    %2759 = vmatpush1.msra.mxu0 0.0
    %2760 = vmatprep.subr.mxu0 0.0
    %2761 = vmatpush1.msra.mxu0 0.0
    %2762 = vmatprep.mubr.f32.mxu0 0.0
    %2763 = vmatmul.mubr.f32.gmra.mrb[0].mxu0 %v2670
    %v2764 = vpop.f32.mrb[0].mxu0
    %v2765 = vadd.f32 %v2308, %v2764
    %v2766 = vpop.f32.mrb[0].mxu0
    %v2767 = vadd.f32 %v2312, %v2766
    %2768 = vdwg.mxu0
    %2769 = vmatprep.subr.mxu0 0.0
    %2770 = vmatpush1.msra.mxu0 %v2257
    %2771 = vmatprep.subr.mxu0 0.0
    %2772 = vmatpush1.msra.mxu0 %v2260
    %2773 = vmatprep.subr.mxu0 0.0
    %2774 = vmatpush1.msra.mxu0 %v2263
    %2775 = vmatprep.subr.mxu0 0.0
    %2776 = vmatpush1.msra.mxu0 %v2266
    %2777 = vmatprep.subr.mxu0 0.0
    %2778 = vmatpush1.msra.mxu0 %v2269
    %2779 = vmatprep.subr.mxu0 0.0
    %2780 = vmatpush1.msra.mxu0 %v2272
    %2781 = vmatprep.subr.mxu0 0.0
    %2782 = vmatpush1.msra.mxu0 %v2275
    %2783 = vmatprep.subr.mxu0 0.0
    %2784 = vmatpush1.msra.mxu0 %v2278
    %2785 = vmatprep.subr.mxu0 0.0
    %2786 = vmatpush1.msra.mxu0 %v2281
    %2787 = vmatprep.subr.mxu0 0.0
    %2788 = vmatpush1.msra.mxu0 %v2284
    %2789 = vmatprep.subr.mxu0 0.0
    %2790 = vmatpush1.msra.mxu0 %v2287
    %2791 = vmatprep.subr.mxu0 0.0
    %2792 = vmatpush1.msra.mxu0 %v2290
    %2793 = vmatprep.subr.mxu0 0.0
    %2794 = vmatpush1.msra.mxu0 %v2293
    %2795 = vmatprep.subr.mxu0 0.0
    %2796 = vmatpush1.msra.mxu0 %v2296
    %2797 = vmatprep.subr.mxu0 0.0
    %2798 = vmatpush1.msra.mxu0 %v2299
    %2799 = vmatprep.subr.mxu0 0.0
    %2800 = vmatpush1.msra.mxu0 %v2302
    %2801 = vmatprep.subr.mxu0 0.0
    %2802 = vmatpush1.msra.mxu0 0.0
    %2803 = vmatprep.subr.mxu0 0.0
    %2804 = vmatpush1.msra.mxu0 0.0
    %2805 = vmatprep.subr.mxu0 0.0
    %2806 = vmatpush1.msra.mxu0 0.0
    %2807 = vmatprep.subr.mxu0 0.0
    %2808 = vmatpush1.msra.mxu0 0.0
    %2809 = vmatprep.subr.mxu0 0.0
    %2810 = vmatpush1.msra.mxu0 0.0
    %2811 = vmatprep.subr.mxu0 0.0
    %2812 = vmatpush1.msra.mxu0 0.0
    %2813 = vmatprep.subr.mxu0 0.0
    %2814 = vmatpush1.msra.mxu0 0.0
    %2815 = vmatprep.subr.mxu0 0.0
    %2816 = vmatpush1.msra.mxu0 0.0
    %2817 = vmatprep.subr.mxu0 0.0
    %2818 = vmatpush1.msra.mxu0 0.0
    %2819 = vmatprep.subr.mxu0 0.0
    %2820 = vmatpush1.msra.mxu0 0.0
    %2821 = vmatprep.subr.mxu0 0.0
    %2822 = vmatpush1.msra.mxu0 0.0
    %2823 = vmatprep.subr.mxu0 0.0
    %2824 = vmatpush1.msra.mxu0 0.0
    %2825 = vmatprep.subr.mxu0 0.0
    %2826 = vmatpush1.msra.mxu0 0.0
    %2827 = vmatprep.subr.mxu0 0.0
    %2828 = vmatpush1.msra.mxu0 0.0
    %2829 = vmatprep.subr.mxu0 0.0
    %2830 = vmatpush1.msra.mxu0 0.0
    %2831 = vmatprep.subr.mxu0 0.0
    %2832 = vmatpush1.msra.mxu0 0.0
    %2833 = vmatprep.mubr.f32.mxu0 0.0
    %2834 = vmatmul.mubr.f32.gmra.mrb[0].mxu0 %v2670
    %v2835 = vpop.f32.mrb[0].mxu0
    %v2836 = vadd.f32 %v2316, %v2835
    %v2837 = vpop.f32.mrb[0].mxu0
    %2838 = vdwg.mxu0
    %v2839 = vadd.f32 %v2181, %v2765
    %v2840 = vxor.u32 %v2839, 2147483648
    %v2841 = vmul.f32 %v2840, 1.442695
    %v2842 = vpow.pop %v2841
    %v2843 = vadd.f32 %v2842, 1.0
    %v2844 = vrcp.pop %v2843
    %v2845 = vmul.f32 1.0, %v2844
    %v2846 = vadd.f32 %v2183, %v2767
    %v2847 = vxor.u32 %v2846, 2147483648
    %v2848 = vmul.f32 %v2847, 1.442695
    %v2849 = vpow.pop %v2848
    %v2850 = vadd.f32 %v2849, 1.0
    %v2851 = vrcp.pop %v2850
    %v2852 = vmul.f32 1.0, %v2851
    %v2853 = vmul.f32 %v2845, %v2836
    %v2854 = vadd.f32 %v2252, %v2853
    %v2855 = vtanh.pop %v2854
    %v2856 = vsub.f32 1.0, %v2852
    %v2857 = vmul.f32 %v2856, %v2855
    %v2858 = vmul.f32 %v2852, %v2670
    %v2859 = vadd.f32 %v2857, %v2858
    %v2862 = vunpack.c.l.s4 1966171168
    %v2863 = vunpack.c.0.s8 %v2862
    %v2864 = vlaneseq
    %v2865 = vshrl.u32 %v2864, 7
    %v2866 = vsub.s32 %v2863, %v2865
    %v2867 = vrot.slane %v2859, %v2866
    %v2868 = vcombine.high %v2867, %v2867
    %v2870 = vunpack.c.l.s4 1966171168
    %v2871 = vunpack.c.0.s8 %v2870
    %v2872 = vlaneseq
    %v2873 = vshrl.u32 %v2872, 7
    %v2874 = vsub.s32 %v2871, %v2873
    %v2875 = vrot.slane %v2867, %v2874
    %v2877 = vunpack.c.l.s4 1966171168
    %v2878 = vunpack.c.0.s8 %v2877
    %v2879 = vlaneseq
    %v2880 = vshrl.u32 %v2879, 7
    %v2881 = vsub.s32 %v2878, %v2880
    %v2882 = vrot.slane %v2868, %v2881
    %2885 = vst [vmem:[#allocation2 + $0x2] sm:$0x1] %v2875
    %2886 = vst [vmem:[#allocation2 + $0xa] sm:$0x1] %v2882
    %2887 = vmatprep.subr.mxu0 %v2256
    %2888 = vmatpush1.msra.mxu0 %v2255
    %2889 = vmatprep.subr.mxu0 %v2259
    %2890 = vmatpush1.msra.mxu0 %v2258
    %2891 = vmatprep.subr.mxu0 %v2262
    %2892 = vmatpush1.msra.mxu0 %v2261
    %2893 = vmatprep.subr.mxu0 %v2265
    %2894 = vmatpush1.msra.mxu0 %v2264
    %2895 = vmatprep.subr.mxu0 %v2268
    %2896 = vmatpush1.msra.mxu0 %v2267
    %2897 = vmatprep.subr.mxu0 %v2271
    %2898 = vmatpush1.msra.mxu0 %v2270
    %2899 = vmatprep.subr.mxu0 %v2274
    %2900 = vmatpush1.msra.mxu0 %v2273
    %2901 = vmatprep.subr.mxu0 %v2277
    %2902 = vmatpush1.msra.mxu0 %v2276
    %2903 = vmatprep.subr.mxu0 %v2280
    %2904 = vmatpush1.msra.mxu0 %v2279
    %2905 = vmatprep.subr.mxu0 %v2283
    %2906 = vmatpush1.msra.mxu0 %v2282
    %2907 = vmatprep.subr.mxu0 %v2286
    %2908 = vmatpush1.msra.mxu0 %v2285
    %2909 = vmatprep.subr.mxu0 %v2289
    %2910 = vmatpush1.msra.mxu0 %v2288
    %2911 = vmatprep.subr.mxu0 %v2292
    %2912 = vmatpush1.msra.mxu0 %v2291
    %2913 = vmatprep.subr.mxu0 %v2295
    %2914 = vmatpush1.msra.mxu0 %v2294
    %2915 = vmatprep.subr.mxu0 %v2298
    %2916 = vmatpush1.msra.mxu0 %v2297
    %2917 = vmatprep.subr.mxu0 %v2301
    %2918 = vmatpush1.msra.mxu0 %v2300
    %2919 = vmatprep.subr.mxu0 0.0
    %2920 = vmatpush1.msra.mxu0 0.0
    %2921 = vmatprep.subr.mxu0 0.0
    %2922 = vmatpush1.msra.mxu0 0.0
    %2923 = vmatprep.subr.mxu0 0.0
    %2924 = vmatpush1.msra.mxu0 0.0
    %2925 = vmatprep.subr.mxu0 0.0
    %2926 = vmatpush1.msra.mxu0 0.0
    %2927 = vmatprep.subr.mxu0 0.0
    %2928 = vmatpush1.msra.mxu0 0.0
    %2929 = vmatprep.subr.mxu0 0.0
    %2930 = vmatpush1.msra.mxu0 0.0
    %2931 = vmatprep.subr.mxu0 0.0
    %2932 = vmatpush1.msra.mxu0 0.0
    %2933 = vmatprep.subr.mxu0 0.0
    %2934 = vmatpush1.msra.mxu0 0.0
    %2935 = vmatprep.subr.mxu0 0.0
    %2936 = vmatpush1.msra.mxu0 0.0
    %2937 = vmatprep.subr.mxu0 0.0
    %2938 = vmatpush1.msra.mxu0 0.0
    %2939 = vmatprep.subr.mxu0 0.0
    %2940 = vmatpush1.msra.mxu0 0.0
    %2941 = vmatprep.subr.mxu0 0.0
    %2942 = vmatpush1.msra.mxu0 0.0
    %2943 = vmatprep.subr.mxu0 0.0
    %2944 = vmatpush1.msra.mxu0 0.0
    %2945 = vmatprep.subr.mxu0 0.0
    %2946 = vmatpush1.msra.mxu0 0.0
    %2947 = vmatprep.subr.mxu0 0.0
    %2948 = vmatpush1.msra.mxu0 0.0
    %2949 = vmatprep.subr.mxu0 0.0
    %2950 = vmatpush1.msra.mxu0 0.0
    %2951 = vmatprep.mubr.f32.mxu0 0.0
    %2952 = vmatmul.mubr.f32.gmra.mrb[0].mxu0 %v2859
    %v2953 = vpop.f32.mrb[0].mxu0
    %v2954 = vadd.f32 %v2308, %v2953
    %v2955 = vpop.f32.mrb[0].mxu0
    %v2956 = vadd.f32 %v2312, %v2955
    %2957 = vdwg.mxu0
    %2958 = vmatprep.subr.mxu0 0.0
    %2959 = vmatpush1.msra.mxu0 %v2257
    %2960 = vmatprep.subr.mxu0 0.0
    %2961 = vmatpush1.msra.mxu0 %v2260
    %2962 = vmatprep.subr.mxu0 0.0
    %2963 = vmatpush1.msra.mxu0 %v2263
    %2964 = vmatprep.subr.mxu0 0.0
    %2965 = vmatpush1.msra.mxu0 %v2266
    %2966 = vmatprep.subr.mxu0 0.0
    %2967 = vmatpush1.msra.mxu0 %v2269
    %2968 = vmatprep.subr.mxu0 0.0
    %2969 = vmatpush1.msra.mxu0 %v2272
    %2970 = vmatprep.subr.mxu0 0.0
    %2971 = vmatpush1.msra.mxu0 %v2275
    %2972 = vmatprep.subr.mxu0 0.0
    %2973 = vmatpush1.msra.mxu0 %v2278
    %2974 = vmatprep.subr.mxu0 0.0
    %2975 = vmatpush1.msra.mxu0 %v2281
    %2976 = vmatprep.subr.mxu0 0.0
    %2977 = vmatpush1.msra.mxu0 %v2284
    %2978 = vmatprep.subr.mxu0 0.0
    %2979 = vmatpush1.msra.mxu0 %v2287
    %2980 = vmatprep.subr.mxu0 0.0
    %2981 = vmatpush1.msra.mxu0 %v2290
    %2982 = vmatprep.subr.mxu0 0.0
    %2983 = vmatpush1.msra.mxu0 %v2293
    %2984 = vmatprep.subr.mxu0 0.0
    %2985 = vmatpush1.msra.mxu0 %v2296
    %2986 = vmatprep.subr.mxu0 0.0
    %2987 = vmatpush1.msra.mxu0 %v2299
    %2988 = vmatprep.subr.mxu0 0.0
    %2989 = vmatpush1.msra.mxu0 %v2302
    %2990 = vmatprep.subr.mxu0 0.0
    %2991 = vmatpush1.msra.mxu0 0.0
    %2992 = vmatprep.subr.mxu0 0.0
    %2993 = vmatpush1.msra.mxu0 0.0
    %2994 = vmatprep.subr.mxu0 0.0
    %2995 = vmatpush1.msra.mxu0 0.0
    %2996 = vmatprep.subr.mxu0 0.0
    %2997 = vmatpush1.msra.mxu0 0.0
    %2998 = vmatprep.subr.mxu0 0.0
    %2999 = vmatpush1.msra.mxu0 0.0
    %3000 = vmatprep.subr.mxu0 0.0
    %3001 = vmatpush1.msra.mxu0 0.0
    %3002 = vmatprep.subr.mxu0 0.0
    %3003 = vmatpush1.msra.mxu0 0.0
    %3004 = vmatprep.subr.mxu0 0.0
    %3005 = vmatpush1.msra.mxu0 0.0
    %3006 = vmatprep.subr.mxu0 0.0
    %3007 = vmatpush1.msra.mxu0 0.0
    %3008 = vmatprep.subr.mxu0 0.0
    %3009 = vmatpush1.msra.mxu0 0.0
    %3010 = vmatprep.subr.mxu0 0.0
    %3011 = vmatpush1.msra.mxu0 0.0
    %3012 = vmatprep.subr.mxu0 0.0
    %3013 = vmatpush1.msra.mxu0 0.0
    %3014 = vmatprep.subr.mxu0 0.0
    %3015 = vmatpush1.msra.mxu0 0.0
    %3016 = vmatprep.subr.mxu0 0.0
    %3017 = vmatpush1.msra.mxu0 0.0
    %3018 = vmatprep.subr.mxu0 0.0
    %3019 = vmatpush1.msra.mxu0 0.0
    %3020 = vmatprep.subr.mxu0 0.0
    %3021 = vmatpush1.msra.mxu0 0.0
    %3022 = vmatprep.mubr.f32.mxu0 0.0
    %3023 = vmatmul.mubr.f32.gmra.mrb[0].mxu0 %v2859
    %v3024 = vpop.f32.mrb[0].mxu0
    %v3025 = vadd.f32 %v2316, %v3024
    %v3026 = vpop.f32.mrb[0].mxu0
    %3027 = vdwg.mxu0
    %v3028 = vadd.f32 %v2181, %v2954
    %v3029 = vxor.u32 %v3028, 2147483648
    %v3030 = vmul.f32 %v3029, 1.442695
    %v3031 = vpow.pop %v3030
    %v3032 = vadd.f32 %v3031, 1.0
    %v3033 = vrcp.pop %v3032
    %v3034 = vmul.f32 1.0, %v3033
    %v3035 = vadd.f32 %v2183, %v2956
    %v3036 = vxor.u32 %v3035, 2147483648
    %v3037 = vmul.f32 %v3036, 1.442695
    %v3038 = vpow.pop %v3037
    %v3039 = vadd.f32 %v3038, 1.0
    %v3040 = vrcp.pop %v3039
    %v3041 = vmul.f32 1.0, %v3040
    %v3042 = vmul.f32 %v3034, %v3025
    %v3043 = vadd.f32 %v2252, %v3042
    %v3044 = vtanh.pop %v3043
    %v3045 = vsub.f32 1.0, %v3041
    %v3046 = vmul.f32 %v3045, %v3044
    %v3047 = vmul.f32 %v3041, %v2859
    %v3048 = vadd.f32 %v3046, %v3047
    %v3051 = vunpack.c.l.s4 1966171168
    %v3052 = vunpack.c.0.s8 %v3051
    %v3053 = vlaneseq
    %v3054 = vshrl.u32 %v3053, 7
    %v3055 = vsub.s32 %v3052, %v3054
    %v3056 = vrot.slane %v3048, %v3055
    %v3057 = vcombine.high %v3056, %v3056
    %v3059 = vunpack.c.l.s4 1966171168
    %v3060 = vunpack.c.0.s8 %v3059
    %v3061 = vlaneseq
    %v3062 = vshrl.u32 %v3061, 7
    %v3063 = vsub.s32 %v3060, %v3062
    %v3064 = vrot.slane %v3056, %v3063
    %v3066 = vunpack.c.l.s4 1966171168
    %v3067 = vunpack.c.0.s8 %v3066
    %v3068 = vlaneseq
    %v3069 = vshrl.u32 %v3068, 7
    %v3070 = vsub.s32 %v3067, %v3069
    %v3071 = vrot.slane %v3057, %v3070
    %3074 = vst [vmem:[#allocation2 + $0x3] sm:$0x1] %v3064
    %3075 = vst [vmem:[#allocation2 + $0xb] sm:$0x1] %v3071
    %3076 = vmatprep.subr.mxu0 %v2256
    %3077 = vmatpush1.msra.mxu0 %v2255
    %3078 = vmatprep.subr.mxu0 %v2259
    %3079 = vmatpush1.msra.mxu0 %v2258
    %3080 = vmatprep.subr.mxu0 %v2262
    %3081 = vmatpush1.msra.mxu0 %v2261
    %3082 = vmatprep.subr.mxu0 %v2265
    %3083 = vmatpush1.msra.mxu0 %v2264
    %3084 = vmatprep.subr.mxu0 %v2268
    %3085 = vmatpush1.msra.mxu0 %v2267
    %3086 = vmatprep.subr.mxu0 %v2271
    %3087 = vmatpush1.msra.mxu0 %v2270
    %3088 = vmatprep.subr.mxu0 %v2274
    %3089 = vmatpush1.msra.mxu0 %v2273
    %3090 = vmatprep.subr.mxu0 %v2277
    %3091 = vmatpush1.msra.mxu0 %v2276
    %3092 = vmatprep.subr.mxu0 %v2280
    %3093 = vmatpush1.msra.mxu0 %v2279
    %3094 = vmatprep.subr.mxu0 %v2283
    %3095 = vmatpush1.msra.mxu0 %v2282
    %3096 = vmatprep.subr.mxu0 %v2286
    %3097 = vmatpush1.msra.mxu0 %v2285
    %3098 = vmatprep.subr.mxu0 %v2289
    %3099 = vmatpush1.msra.mxu0 %v2288
    %3100 = vmatprep.subr.mxu0 %v2292
    %3101 = vmatpush1.msra.mxu0 %v2291
    %3102 = vmatprep.subr.mxu0 %v2295
    %3103 = vmatpush1.msra.mxu0 %v2294
    %3104 = vmatprep.subr.mxu0 %v2298
    %3105 = vmatpush1.msra.mxu0 %v2297
    %3106 = vmatprep.subr.mxu0 %v2301
    %3107 = vmatpush1.msra.mxu0 %v2300
    %3108 = vmatprep.subr.mxu0 0.0
    %3109 = vmatpush1.msra.mxu0 0.0
    %3110 = vmatprep.subr.mxu0 0.0
    %3111 = vmatpush1.msra.mxu0 0.0
    %3112 = vmatprep.subr.mxu0 0.0
    %3113 = vmatpush1.msra.mxu0 0.0
    %3114 = vmatprep.subr.mxu0 0.0
    %3115 = vmatpush1.msra.mxu0 0.0
    %3116 = vmatprep.subr.mxu0 0.0
    %3117 = vmatpush1.msra.mxu0 0.0
    %3118 = vmatprep.subr.mxu0 0.0
    %3119 = vmatpush1.msra.mxu0 0.0
    %3120 = vmatprep.subr.mxu0 0.0
    %3121 = vmatpush1.msra.mxu0 0.0
    %3122 = vmatprep.subr.mxu0 0.0
    %3123 = vmatpush1.msra.mxu0 0.0
    %3124 = vmatprep.subr.mxu0 0.0
    %3125 = vmatpush1.msra.mxu0 0.0
    %3126 = vmatprep.subr.mxu0 0.0
    %3127 = vmatpush1.msra.mxu0 0.0
    %3128 = vmatprep.subr.mxu0 0.0
    %3129 = vmatpush1.msra.mxu0 0.0
    %3130 = vmatprep.subr.mxu0 0.0
    %3131 = vmatpush1.msra.mxu0 0.0
    %3132 = vmatprep.subr.mxu0 0.0
    %3133 = vmatpush1.msra.mxu0 0.0
    %3134 = vmatprep.subr.mxu0 0.0
    %3135 = vmatpush1.msra.mxu0 0.0
    %3136 = vmatprep.subr.mxu0 0.0
    %3137 = vmatpush1.msra.mxu0 0.0
    %3138 = vmatprep.subr.mxu0 0.0
    %3139 = vmatpush1.msra.mxu0 0.0
    %3140 = vmatprep.mubr.f32.mxu0 0.0
    %3141 = vmatmul.mubr.f32.gmra.mrb[0].mxu0 %v3048
    %v3142 = vpop.f32.mrb[0].mxu0
    %v3143 = vadd.f32 %v2308, %v3142
    %v3144 = vpop.f32.mrb[0].mxu0
    %v3145 = vadd.f32 %v2312, %v3144
    %3146 = vdwg.mxu0
    %3147 = vmatprep.subr.mxu0 0.0
    %3148 = vmatpush1.msra.mxu0 %v2257
    %3149 = vmatprep.subr.mxu0 0.0
    %3150 = vmatpush1.msra.mxu0 %v2260
    %3151 = vmatprep.subr.mxu0 0.0
    %3152 = vmatpush1.msra.mxu0 %v2263
    %3153 = vmatprep.subr.mxu0 0.0
    %3154 = vmatpush1.msra.mxu0 %v2266
    %3155 = vmatprep.subr.mxu0 0.0
    %3156 = vmatpush1.msra.mxu0 %v2269
    %3157 = vmatprep.subr.mxu0 0.0
    %3158 = vmatpush1.msra.mxu0 %v2272
    %3159 = vmatprep.subr.mxu0 0.0
    %3160 = vmatpush1.msra.mxu0 %v2275
    %3161 = vmatprep.subr.mxu0 0.0
    %3162 = vmatpush1.msra.mxu0 %v2278
    %3163 = vmatprep.subr.mxu0 0.0
    %3164 = vmatpush1.msra.mxu0 %v2281
    %3165 = vmatprep.subr.mxu0 0.0
    %3166 = vmatpush1.msra.mxu0 %v2284
    %3167 = vmatprep.subr.mxu0 0.0
    %3168 = vmatpush1.msra.mxu0 %v2287
    %3169 = vmatprep.subr.mxu0 0.0
    %3170 = vmatpush1.msra.mxu0 %v2290
    %3171 = vmatprep.subr.mxu0 0.0
    %3172 = vmatpush1.msra.mxu0 %v2293
    %3173 = vmatprep.subr.mxu0 0.0
    %3174 = vmatpush1.msra.mxu0 %v2296
    %3175 = vmatprep.subr.mxu0 0.0
    %3176 = vmatpush1.msra.mxu0 %v2299
    %3177 = vmatprep.subr.mxu0 0.0
    %3178 = vmatpush1.msra.mxu0 %v2302
    %3179 = vmatprep.subr.mxu0 0.0
    %3180 = vmatpush1.msra.mxu0 0.0
    %3181 = vmatprep.subr.mxu0 0.0
    %3182 = vmatpush1.msra.mxu0 0.0
    %3183 = vmatprep.subr.mxu0 0.0
    %3184 = vmatpush1.msra.mxu0 0.0
    %3185 = vmatprep.subr.mxu0 0.0
    %3186 = vmatpush1.msra.mxu0 0.0
    %3187 = vmatprep.subr.mxu0 0.0
    %3188 = vmatpush1.msra.mxu0 0.0
    %3189 = vmatprep.subr.mxu0 0.0
    %3190 = vmatpush1.msra.mxu0 0.0
    %3191 = vmatprep.subr.mxu0 0.0
    %3192 = vmatpush1.msra.mxu0 0.0
    %3193 = vmatprep.subr.mxu0 0.0
    %3194 = vmatpush1.msra.mxu0 0.0
    %3195 = vmatprep.subr.mxu0 0.0
    %3196 = vmatpush1.msra.mxu0 0.0
    %3197 = vmatprep.subr.mxu0 0.0
    %3198 = vmatpush1.msra.mxu0 0.0
    %3199 = vmatprep.subr.mxu0 0.0
    %3200 = vmatpush1.msra.mxu0 0.0
    %3201 = vmatprep.subr.mxu0 0.0
    %3202 = vmatpush1.msra.mxu0 0.0
    %3203 = vmatprep.subr.mxu0 0.0
    %3204 = vmatpush1.msra.mxu0 0.0
    %3205 = vmatprep.subr.mxu0 0.0
    %3206 = vmatpush1.msra.mxu0 0.0
    %3207 = vmatprep.subr.mxu0 0.0
    %3208 = vmatpush1.msra.mxu0 0.0
    %3209 = vmatprep.subr.mxu0 0.0
    %3210 = vmatpush1.msra.mxu0 0.0
    %3211 = vmatprep.mubr.f32.mxu0 0.0
    %3212 = vmatmul.mubr.f32.gmra.mrb[0].mxu0 %v3048
    %v3213 = vpop.f32.mrb[0].mxu0
    %v3214 = vadd.f32 %v2316, %v3213
    %v3215 = vpop.f32.mrb[0].mxu0
    %3216 = vdwg.mxu0
    %v3217 = vadd.f32 %v2181, %v3143
    %v3218 = vxor.u32 %v3217, 2147483648
    %v3219 = vmul.f32 %v3218, 1.442695
    %v3220 = vpow.pop %v3219
    %v3221 = vadd.f32 %v3220, 1.0
    %v3222 = vrcp.pop %v3221
    %v3223 = vmul.f32 1.0, %v3222
    %v3224 = vadd.f32 %v2183, %v3145
    %v3225 = vxor.u32 %v3224, 2147483648
    %v3226 = vmul.f32 %v3225, 1.442695
    %v3227 = vpow.pop %v3226
    %v3228 = vadd.f32 %v3227, 1.0
    %v3229 = vrcp.pop %v3228
    %v3230 = vmul.f32 1.0, %v3229
    %v3231 = vmul.f32 %v3223, %v3214
    %v3232 = vadd.f32 %v2252, %v3231
    %v3233 = vtanh.pop %v3232
    %v3234 = vsub.f32 1.0, %v3230
    %v3235 = vmul.f32 %v3234, %v3233
    %v3236 = vmul.f32 %v3230, %v3048
    %v3237 = vadd.f32 %v3235, %v3236
    %v3240 = vunpack.c.l.s4 1966171168
    %v3241 = vunpack.c.0.s8 %v3240
    %v3242 = vlaneseq
    %v3243 = vshrl.u32 %v3242, 7
    %v3244 = vsub.s32 %v3241, %v3243
    %v3245 = vrot.slane %v3237, %v3244
    %v3246 = vcombine.high %v3245, %v3245
    %v3248 = vunpack.c.l.s4 1966171168
    %v3249 = vunpack.c.0.s8 %v3248
    %v3250 = vlaneseq
    %v3251 = vshrl.u32 %v3250, 7
    %v3252 = vsub.s32 %v3249, %v3251
    %v3253 = vrot.slane %v3245, %v3252
    %v3255 = vunpack.c.l.s4 1966171168
    %v3256 = vunpack.c.0.s8 %v3255
    %v3257 = vlaneseq
    %v3258 = vshrl.u32 %v3257, 7
    %v3259 = vsub.s32 %v3256, %v3258
    %v3260 = vrot.slane %v3246, %v3259
    %3263 = vst [vmem:[#allocation2 + $0x4] sm:$0x1] %v3253
    %3264 = vst [vmem:[#allocation2 + $0xc] sm:$0x1] %v3260
    %3265 = vmatprep.subr.mxu0 %v2256
    %3266 = vmatpush1.msra.mxu0 %v2255
    %3267 = vmatprep.subr.mxu0 %v2259
    %3268 = vmatpush1.msra.mxu0 %v2258
    %3269 = vmatprep.subr.mxu0 %v2262
    %3270 = vmatpush1.msra.mxu0 %v2261
    %3271 = vmatprep.subr.mxu0 %v2265
    %3272 = vmatpush1.msra.mxu0 %v2264
    %3273 = vmatprep.subr.mxu0 %v2268
    %3274 = vmatpush1.msra.mxu0 %v2267
    %3275 = vmatprep.subr.mxu0 %v2271
    %3276 = vmatpush1.msra.mxu0 %v2270
    %3277 = vmatprep.subr.mxu0 %v2274
    %3278 = vmatpush1.msra.mxu0 %v2273
    %3279 = vmatprep.subr.mxu0 %v2277
    %3280 = vmatpush1.msra.mxu0 %v2276
    %3281 = vmatprep.subr.mxu0 %v2280
    %3282 = vmatpush1.msra.mxu0 %v2279
    %3283 = vmatprep.subr.mxu0 %v2283
    %3284 = vmatpush1.msra.mxu0 %v2282
    %3285 = vmatprep.subr.mxu0 %v2286
    %3286 = vmatpush1.msra.mxu0 %v2285
    %3287 = vmatprep.subr.mxu0 %v2289
    %3288 = vmatpush1.msra.mxu0 %v2288
    %3289 = vmatprep.subr.mxu0 %v2292
    %3290 = vmatpush1.msra.mxu0 %v2291
    %3291 = vmatprep.subr.mxu0 %v2295
    %3292 = vmatpush1.msra.mxu0 %v2294
    %3293 = vmatprep.subr.mxu0 %v2298
    %3294 = vmatpush1.msra.mxu0 %v2297
    %3295 = vmatprep.subr.mxu0 %v2301
    %3296 = vmatpush1.msra.mxu0 %v2300
    %3297 = vmatprep.subr.mxu0 0.0
    %3298 = vmatpush1.msra.mxu0 0.0
    %3299 = vmatprep.subr.mxu0 0.0
    %3300 = vmatpush1.msra.mxu0 0.0
    %3301 = vmatprep.subr.mxu0 0.0
    %3302 = vmatpush1.msra.mxu0 0.0
    %3303 = vmatprep.subr.mxu0 0.0
    %3304 = vmatpush1.msra.mxu0 0.0
    %3305 = vmatprep.subr.mxu0 0.0
    %3306 = vmatpush1.msra.mxu0 0.0
    %3307 = vmatprep.subr.mxu0 0.0
    %3308 = vmatpush1.msra.mxu0 0.0
    %3309 = vmatprep.subr.mxu0 0.0
    %3310 = vmatpush1.msra.mxu0 0.0
    %3311 = vmatprep.subr.mxu0 0.0
    %3312 = vmatpush1.msra.mxu0 0.0
    %3313 = vmatprep.subr.mxu0 0.0
    %3314 = vmatpush1.msra.mxu0 0.0
    %3315 = vmatprep.subr.mxu0 0.0
    %3316 = vmatpush1.msra.mxu0 0.0
    %3317 = vmatprep.subr.mxu0 0.0
    %3318 = vmatpush1.msra.mxu0 0.0
    %3319 = vmatprep.subr.mxu0 0.0
    %3320 = vmatpush1.msra.mxu0 0.0
    %3321 = vmatprep.subr.mxu0 0.0
    %3322 = vmatpush1.msra.mxu0 0.0
    %3323 = vmatprep.subr.mxu0 0.0
    %3324 = vmatpush1.msra.mxu0 0.0
    %3325 = vmatprep.subr.mxu0 0.0
    %3326 = vmatpush1.msra.mxu0 0.0
    %3327 = vmatprep.subr.mxu0 0.0
    %3328 = vmatpush1.msra.mxu0 0.0
    %3329 = vmatprep.mubr.f32.mxu0 0.0
    %3330 = vmatmul.mubr.f32.gmra.mrb[0].mxu0 %v3237
    %v3331 = vpop.f32.mrb[0].mxu0
    %v3332 = vadd.f32 %v2308, %v3331
    %v3333 = vpop.f32.mrb[0].mxu0
    %v3334 = vadd.f32 %v2312, %v3333
    %3335 = vdwg.mxu0
    %3336 = vmatprep.subr.mxu0 0.0
    %3337 = vmatpush1.msra.mxu0 %v2257
    %3338 = vmatprep.subr.mxu0 0.0
    %3339 = vmatpush1.msra.mxu0 %v2260
    %3340 = vmatprep.subr.mxu0 0.0
    %3341 = vmatpush1.msra.mxu0 %v2263
    %3342 = vmatprep.subr.mxu0 0.0
    %3343 = vmatpush1.msra.mxu0 %v2266
    %3344 = vmatprep.subr.mxu0 0.0
    %3345 = vmatpush1.msra.mxu0 %v2269
    %3346 = vmatprep.subr.mxu0 0.0
    %3347 = vmatpush1.msra.mxu0 %v2272
    %3348 = vmatprep.subr.mxu0 0.0
    %3349 = vmatpush1.msra.mxu0 %v2275
    %3350 = vmatprep.subr.mxu0 0.0
    %3351 = vmatpush1.msra.mxu0 %v2278
    %3352 = vmatprep.subr.mxu0 0.0
    %3353 = vmatpush1.msra.mxu0 %v2281
    %3354 = vmatprep.subr.mxu0 0.0
    %3355 = vmatpush1.msra.mxu0 %v2284
    %3356 = vmatprep.subr.mxu0 0.0
    %3357 = vmatpush1.msra.mxu0 %v2287
    %3358 = vmatprep.subr.mxu0 0.0
    %3359 = vmatpush1.msra.mxu0 %v2290
    %3360 = vmatprep.subr.mxu0 0.0
    %3361 = vmatpush1.msra.mxu0 %v2293
    %3362 = vmatprep.subr.mxu0 0.0
    %3363 = vmatpush1.msra.mxu0 %v2296
    %3364 = vmatprep.subr.mxu0 0.0
    %3365 = vmatpush1.msra.mxu0 %v2299
    %3366 = vmatprep.subr.mxu0 0.0
    %3367 = vmatpush1.msra.mxu0 %v2302
    %3368 = vmatprep.subr.mxu0 0.0
    %3369 = vmatpush1.msra.mxu0 0.0
    %3370 = vmatprep.subr.mxu0 0.0
    %3371 = vmatpush1.msra.mxu0 0.0
    %3372 = vmatprep.subr.mxu0 0.0
    %3373 = vmatpush1.msra.mxu0 0.0
    %3374 = vmatprep.subr.mxu0 0.0
    %3375 = vmatpush1.msra.mxu0 0.0
    %3376 = vmatprep.subr.mxu0 0.0
    %3377 = vmatpush1.msra.mxu0 0.0
    %3378 = vmatprep.subr.mxu0 0.0
    %3379 = vmatpush1.msra.mxu0 0.0
    %3380 = vmatprep.subr.mxu0 0.0
    %3381 = vmatpush1.msra.mxu0 0.0
    %3382 = vmatprep.subr.mxu0 0.0
    %3383 = vmatpush1.msra.mxu0 0.0
    %3384 = vmatprep.subr.mxu0 0.0
    %3385 = vmatpush1.msra.mxu0 0.0
    %3386 = vmatprep.subr.mxu0 0.0
    %3387 = vmatpush1.msra.mxu0 0.0
    %3388 = vmatprep.subr.mxu0 0.0
    %3389 = vmatpush1.msra.mxu0 0.0
    %3390 = vmatprep.subr.mxu0 0.0
    %3391 = vmatpush1.msra.mxu0 0.0
    %3392 = vmatprep.subr.mxu0 0.0
    %3393 = vmatpush1.msra.mxu0 0.0
    %3394 = vmatprep.subr.mxu0 0.0
    %3395 = vmatpush1.msra.mxu0 0.0
    %3396 = vmatprep.subr.mxu0 0.0
    %3397 = vmatpush1.msra.mxu0 0.0
    %3398 = vmatprep.subr.mxu0 0.0
    %3399 = vmatpush1.msra.mxu0 0.0
    %3400 = vmatprep.mubr.f32.mxu0 0.0
    %3401 = vmatmul.mubr.f32.gmra.mrb[0].mxu0 %v3237
    %v3402 = vpop.f32.mrb[0].mxu0
    %v3403 = vadd.f32 %v2316, %v3402
    %v3404 = vpop.f32.mrb[0].mxu0
    %3405 = vdwg.mxu0
    %v3406 = vadd.f32 %v2181, %v3332
    %v3407 = vxor.u32 %v3406, 2147483648
    %v3408 = vmul.f32 %v3407, 1.442695
    %v3409 = vpow.pop %v3408
    %v3410 = vadd.f32 %v3409, 1.0
    %v3411 = vrcp.pop %v3410
    %v3412 = vmul.f32 1.0, %v3411
    %v3413 = vadd.f32 %v2183, %v3334
    %v3414 = vxor.u32 %v3413, 2147483648
    %v3415 = vmul.f32 %v3414, 1.442695
    %v3416 = vpow.pop %v3415
    %v3417 = vadd.f32 %v3416, 1.0
    %v3418 = vrcp.pop %v3417
    %v3419 = vmul.f32 1.0, %v3418
    %v3420 = vmul.f32 %v3412, %v3403
    %v3421 = vadd.f32 %v2252, %v3420
    %v3422 = vtanh.pop %v3421
    %v3423 = vsub.f32 1.0, %v3419
    %v3424 = vmul.f32 %v3423, %v3422
    %v3425 = vmul.f32 %v3419, %v3237
    %v3426 = vadd.f32 %v3424, %v3425
    %v3429 = vunpack.c.l.s4 1966171168
    %v3430 = vunpack.c.0.s8 %v3429
    %v3431 = vlaneseq
    %v3432 = vshrl.u32 %v3431, 7
    %v3433 = vsub.s32 %v3430, %v3432
    %v3434 = vrot.slane %v3426, %v3433
    %v3435 = vcombine.high %v3434, %v3434
    %v3437 = vunpack.c.l.s4 1966171168
    %v3438 = vunpack.c.0.s8 %v3437
    %v3439 = vlaneseq
    %v3440 = vshrl.u32 %v3439, 7
    %v3441 = vsub.s32 %v3438, %v3440
    %v3442 = vrot.slane %v3434, %v3441
    %v3444 = vunpack.c.l.s4 1966171168
    %v3445 = vunpack.c.0.s8 %v3444
    %v3446 = vlaneseq
    %v3447 = vshrl.u32 %v3446, 7
    %v3448 = vsub.s32 %v3445, %v3447
    %v3449 = vrot.slane %v3435, %v3448
    %3452 = vst [vmem:[#allocation2 + $0x5] sm:$0x1] %v3442
    %3453 = vst [vmem:[#allocation2 + $0xd] sm:$0x1] %v3449
    %3454 = vmatprep.subr.mxu0 %v2256
    %3455 = vmatpush1.msra.mxu0 %v2255
    %3456 = vmatprep.subr.mxu0 %v2259
    %3457 = vmatpush1.msra.mxu0 %v2258
    %3458 = vmatprep.subr.mxu0 %v2262
    %3459 = vmatpush1.msra.mxu0 %v2261
    %3460 = vmatprep.subr.mxu0 %v2265
    %3461 = vmatpush1.msra.mxu0 %v2264
    %3462 = vmatprep.subr.mxu0 %v2268
    %3463 = vmatpush1.msra.mxu0 %v2267
    %3464 = vmatprep.subr.mxu0 %v2271
    %3465 = vmatpush1.msra.mxu0 %v2270
    %3466 = vmatprep.subr.mxu0 %v2274
    %3467 = vmatpush1.msra.mxu0 %v2273
    %3468 = vmatprep.subr.mxu0 %v2277
    %3469 = vmatpush1.msra.mxu0 %v2276
    %3470 = vmatprep.subr.mxu0 %v2280
    %3471 = vmatpush1.msra.mxu0 %v2279
    %3472 = vmatprep.subr.mxu0 %v2283
    %3473 = vmatpush1.msra.mxu0 %v2282
    %3474 = vmatprep.subr.mxu0 %v2286
    %3475 = vmatpush1.msra.mxu0 %v2285
    %3476 = vmatprep.subr.mxu0 %v2289
    %3477 = vmatpush1.msra.mxu0 %v2288
    %3478 = vmatprep.subr.mxu0 %v2292
    %3479 = vmatpush1.msra.mxu0 %v2291
    %3480 = vmatprep.subr.mxu0 %v2295
    %3481 = vmatpush1.msra.mxu0 %v2294
    %3482 = vmatprep.subr.mxu0 %v2298
    %3483 = vmatpush1.msra.mxu0 %v2297
    %3484 = vmatprep.subr.mxu0 %v2301
    %3485 = vmatpush1.msra.mxu0 %v2300
    %3486 = vmatprep.subr.mxu0 0.0
    %3487 = vmatpush1.msra.mxu0 0.0
    %3488 = vmatprep.subr.mxu0 0.0
    %3489 = vmatpush1.msra.mxu0 0.0
    %3490 = vmatprep.subr.mxu0 0.0
    %3491 = vmatpush1.msra.mxu0 0.0
    %3492 = vmatprep.subr.mxu0 0.0
    %3493 = vmatpush1.msra.mxu0 0.0
    %3494 = vmatprep.subr.mxu0 0.0
    %3495 = vmatpush1.msra.mxu0 0.0
    %3496 = vmatprep.subr.mxu0 0.0
    %3497 = vmatpush1.msra.mxu0 0.0
    %3498 = vmatprep.subr.mxu0 0.0
    %3499 = vmatpush1.msra.mxu0 0.0
    %3500 = vmatprep.subr.mxu0 0.0
    %3501 = vmatpush1.msra.mxu0 0.0
    %3502 = vmatprep.subr.mxu0 0.0
    %3503 = vmatpush1.msra.mxu0 0.0
    %3504 = vmatprep.subr.mxu0 0.0
    %3505 = vmatpush1.msra.mxu0 0.0
    %3506 = vmatprep.subr.mxu0 0.0
    %3507 = vmatpush1.msra.mxu0 0.0
    %3508 = vmatprep.subr.mxu0 0.0
    %3509 = vmatpush1.msra.mxu0 0.0
    %3510 = vmatprep.subr.mxu0 0.0
    %3511 = vmatpush1.msra.mxu0 0.0
    %3512 = vmatprep.subr.mxu0 0.0
    %3513 = vmatpush1.msra.mxu0 0.0
    %3514 = vmatprep.subr.mxu0 0.0
    %3515 = vmatpush1.msra.mxu0 0.0
    %3516 = vmatprep.subr.mxu0 0.0
    %3517 = vmatpush1.msra.mxu0 0.0
    %3518 = vmatprep.mubr.f32.mxu0 0.0
    %3519 = vmatmul.mubr.f32.gmra.mrb[0].mxu0 %v3426
    %v3520 = vpop.f32.mrb[0].mxu0
    %v3521 = vadd.f32 %v2308, %v3520
    %v3522 = vpop.f32.mrb[0].mxu0
    %v3523 = vadd.f32 %v2312, %v3522
    %3524 = vdwg.mxu0
    %3525 = vmatprep.subr.mxu0 0.0
    %3526 = vmatpush1.msra.mxu0 %v2257
    %3527 = vmatprep.subr.mxu0 0.0
    %3528 = vmatpush1.msra.mxu0 %v2260
    %3529 = vmatprep.subr.mxu0 0.0
    %3530 = vmatpush1.msra.mxu0 %v2263
    %3531 = vmatprep.subr.mxu0 0.0
    %3532 = vmatpush1.msra.mxu0 %v2266
    %3533 = vmatprep.subr.mxu0 0.0
    %3534 = vmatpush1.msra.mxu0 %v2269
    %3535 = vmatprep.subr.mxu0 0.0
    %3536 = vmatpush1.msra.mxu0 %v2272
    %3537 = vmatprep.subr.mxu0 0.0
    %3538 = vmatpush1.msra.mxu0 %v2275
    %3539 = vmatprep.subr.mxu0 0.0
    %3540 = vmatpush1.msra.mxu0 %v2278
    %3541 = vmatprep.subr.mxu0 0.0
    %3542 = vmatpush1.msra.mxu0 %v2281
    %3543 = vmatprep.subr.mxu0 0.0
    %3544 = vmatpush1.msra.mxu0 %v2284
    %3545 = vmatprep.subr.mxu0 0.0
    %3546 = vmatpush1.msra.mxu0 %v2287
    %3547 = vmatprep.subr.mxu0 0.0
    %3548 = vmatpush1.msra.mxu0 %v2290
    %3549 = vmatprep.subr.mxu0 0.0
    %3550 = vmatpush1.msra.mxu0 %v2293
    %3551 = vmatprep.subr.mxu0 0.0
    %3552 = vmatpush1.msra.mxu0 %v2296
    %3553 = vmatprep.subr.mxu0 0.0
    %3554 = vmatpush1.msra.mxu0 %v2299
    %3555 = vmatprep.subr.mxu0 0.0
    %3556 = vmatpush1.msra.mxu0 %v2302
    %3557 = vmatprep.subr.mxu0 0.0
    %3558 = vmatpush1.msra.mxu0 0.0
    %3559 = vmatprep.subr.mxu0 0.0
    %3560 = vmatpush1.msra.mxu0 0.0
    %3561 = vmatprep.subr.mxu0 0.0
    %3562 = vmatpush1.msra.mxu0 0.0
    %3563 = vmatprep.subr.mxu0 0.0
    %3564 = vmatpush1.msra.mxu0 0.0
    %3565 = vmatprep.subr.mxu0 0.0
    %3566 = vmatpush1.msra.mxu0 0.0
    %3567 = vmatprep.subr.mxu0 0.0
    %3568 = vmatpush1.msra.mxu0 0.0
    %3569 = vmatprep.subr.mxu0 0.0
    %3570 = vmatpush1.msra.mxu0 0.0
    %3571 = vmatprep.subr.mxu0 0.0
    %3572 = vmatpush1.msra.mxu0 0.0
    %3573 = vmatprep.subr.mxu0 0.0
    %3574 = vmatpush1.msra.mxu0 0.0
    %3575 = vmatprep.subr.mxu0 0.0
    %3576 = vmatpush1.msra.mxu0 0.0
    %3577 = vmatprep.subr.mxu0 0.0
    %3578 = vmatpush1.msra.mxu0 0.0
    %3579 = vmatprep.subr.mxu0 0.0
    %3580 = vmatpush1.msra.mxu0 0.0
    %3581 = vmatprep.subr.mxu0 0.0
    %3582 = vmatpush1.msra.mxu0 0.0
    %3583 = vmatprep.subr.mxu0 0.0
    %3584 = vmatpush1.msra.mxu0 0.0
    %3585 = vmatprep.subr.mxu0 0.0
    %3586 = vmatpush1.msra.mxu0 0.0
    %3587 = vmatprep.subr.mxu0 0.0
    %3588 = vmatpush1.msra.mxu0 0.0
    %3589 = vmatprep.mubr.f32.mxu0 0.0
    %3590 = vmatmul.mubr.f32.gmra.mrb[0].mxu0 %v3426
    %v3591 = vpop.f32.mrb[0].mxu0
    %v3592 = vadd.f32 %v2316, %v3591
    %v3593 = vpop.f32.mrb[0].mxu0
    %3594 = vdwg.mxu0
    %v3595 = vadd.f32 %v2181, %v3521
    %v3596 = vxor.u32 %v3595, 2147483648
    %v3597 = vmul.f32 %v3596, 1.442695
    %v3598 = vpow.pop %v3597
    %v3599 = vadd.f32 %v3598, 1.0
    %v3600 = vrcp.pop %v3599
    %v3601 = vmul.f32 1.0, %v3600
    %v3602 = vadd.f32 %v2183, %v3523
    %v3603 = vxor.u32 %v3602, 2147483648
    %v3604 = vmul.f32 %v3603, 1.442695
    %v3605 = vpow.pop %v3604
    %v3606 = vadd.f32 %v3605, 1.0
    %v3607 = vrcp.pop %v3606
    %v3608 = vmul.f32 1.0, %v3607
    %v3609 = vmul.f32 %v3601, %v3592
    %v3610 = vadd.f32 %v2252, %v3609
    %v3611 = vtanh.pop %v3610
    %v3612 = vsub.f32 1.0, %v3608
    %v3613 = vmul.f32 %v3612, %v3611
    %v3614 = vmul.f32 %v3608, %v3426
    %v3615 = vadd.f32 %v3613, %v3614
    %v3618 = vunpack.c.l.s4 1966171168
    %v3619 = vunpack.c.0.s8 %v3618
    %v3620 = vlaneseq
    %v3621 = vshrl.u32 %v3620, 7
    %v3622 = vsub.s32 %v3619, %v3621
    %v3623 = vrot.slane %v3615, %v3622
    %v3624 = vcombine.high %v3623, %v3623
    %v3626 = vunpack.c.l.s4 1966171168
    %v3627 = vunpack.c.0.s8 %v3626
    %v3628 = vlaneseq
    %v3629 = vshrl.u32 %v3628, 7
    %v3630 = vsub.s32 %v3627, %v3629
    %v3631 = vrot.slane %v3623, %v3630
    %v3633 = vunpack.c.l.s4 1966171168
    %v3634 = vunpack.c.0.s8 %v3633
    %v3635 = vlaneseq
    %v3636 = vshrl.u32 %v3635, 7
    %v3637 = vsub.s32 %v3634, %v3636
    %v3638 = vrot.slane %v3624, %v3637
    %3641 = vst [vmem:[#allocation2 + $0x6] sm:$0x1] %v3631
    %3642 = vst [vmem:[#allocation2 + $0xe] sm:$0x1] %v3638
    %3643 = vmatprep.subr.mxu0 %v2256
    %3644 = vmatpush1.msra.mxu0 %v2255
    %3645 = vmatprep.subr.mxu0 %v2259
    %3646 = vmatpush1.msra.mxu0 %v2258
    %3647 = vmatprep.subr.mxu0 %v2262
    %3648 = vmatpush1.msra.mxu0 %v2261
    %3649 = vmatprep.subr.mxu0 %v2265
    %3650 = vmatpush1.msra.mxu0 %v2264
    %3651 = vmatprep.subr.mxu0 %v2268
    %3652 = vmatpush1.msra.mxu0 %v2267
    %3653 = vmatprep.subr.mxu0 %v2271
    %3654 = vmatpush1.msra.mxu0 %v2270
    %3655 = vmatprep.subr.mxu0 %v2274
    %3656 = vmatpush1.msra.mxu0 %v2273
    %3657 = vmatprep.subr.mxu0 %v2277
    %3658 = vmatpush1.msra.mxu0 %v2276
    %3659 = vmatprep.subr.mxu0 %v2280
    %3660 = vmatpush1.msra.mxu0 %v2279
    %3661 = vmatprep.subr.mxu0 %v2283
    %3662 = vmatpush1.msra.mxu0 %v2282
    %3663 = vmatprep.subr.mxu0 %v2286
    %3664 = vmatpush1.msra.mxu0 %v2285
    %3665 = vmatprep.subr.mxu0 %v2289
    %3666 = vmatpush1.msra.mxu0 %v2288
    %3667 = vmatprep.subr.mxu0 %v2292
    %3668 = vmatpush1.msra.mxu0 %v2291
    %3669 = vmatprep.subr.mxu0 %v2295
    %3670 = vmatpush1.msra.mxu0 %v2294
    %3671 = vmatprep.subr.mxu0 %v2298
    %3672 = vmatpush1.msra.mxu0 %v2297
    %3673 = vmatprep.subr.mxu0 %v2301
    %3674 = vmatpush1.msra.mxu0 %v2300
    %3675 = vmatprep.subr.mxu0 0.0
    %3676 = vmatpush1.msra.mxu0 0.0
    %3677 = vmatprep.subr.mxu0 0.0
    %3678 = vmatpush1.msra.mxu0 0.0
    %3679 = vmatprep.subr.mxu0 0.0
    %3680 = vmatpush1.msra.mxu0 0.0
    %3681 = vmatprep.subr.mxu0 0.0
    %3682 = vmatpush1.msra.mxu0 0.0
    %3683 = vmatprep.subr.mxu0 0.0
    %3684 = vmatpush1.msra.mxu0 0.0
    %3685 = vmatprep.subr.mxu0 0.0
    %3686 = vmatpush1.msra.mxu0 0.0
    %3687 = vmatprep.subr.mxu0 0.0
    %3688 = vmatpush1.msra.mxu0 0.0
    %3689 = vmatprep.subr.mxu0 0.0
    %3690 = vmatpush1.msra.mxu0 0.0
    %3691 = vmatprep.subr.mxu0 0.0
    %3692 = vmatpush1.msra.mxu0 0.0
    %3693 = vmatprep.subr.mxu0 0.0
    %3694 = vmatpush1.msra.mxu0 0.0
    %3695 = vmatprep.subr.mxu0 0.0
    %3696 = vmatpush1.msra.mxu0 0.0
    %3697 = vmatprep.subr.mxu0 0.0
    %3698 = vmatpush1.msra.mxu0 0.0
    %3699 = vmatprep.subr.mxu0 0.0
    %3700 = vmatpush1.msra.mxu0 0.0
    %3701 = vmatprep.subr.mxu0 0.0
    %3702 = vmatpush1.msra.mxu0 0.0
    %3703 = vmatprep.subr.mxu0 0.0
    %3704 = vmatpush1.msra.mxu0 0.0
    %3705 = vmatprep.subr.mxu0 0.0
    %3706 = vmatpush1.msra.mxu0 0.0
    %3707 = vmatprep.mubr.f32.mxu0 0.0
    %3708 = vmatmul.mubr.f32.gmra.mrb[0].mxu0 %v3615
    %v3709 = vpop.f32.mrb[0].mxu0
    %v3710 = vadd.f32 %v2308, %v3709
    %v3711 = vpop.f32.mrb[0].mxu0
    %v3712 = vadd.f32 %v2312, %v3711
    %3713 = vdwg.mxu0
    %3714 = vmatprep.subr.mxu0 0.0
    %3715 = vmatpush1.msra.mxu0 %v2257
    %3716 = vmatprep.subr.mxu0 0.0
    %3717 = vmatpush1.msra.mxu0 %v2260
    %3718 = vmatprep.subr.mxu0 0.0
    %3719 = vmatpush1.msra.mxu0 %v2263
    %3720 = vmatprep.subr.mxu0 0.0
    %3721 = vmatpush1.msra.mxu0 %v2266
    %3722 = vmatprep.subr.mxu0 0.0
    %3723 = vmatpush1.msra.mxu0 %v2269
    %3724 = vmatprep.subr.mxu0 0.0
    %3725 = vmatpush1.msra.mxu0 %v2272
    %3726 = vmatprep.subr.mxu0 0.0
    %3727 = vmatpush1.msra.mxu0 %v2275
    %3728 = vmatprep.subr.mxu0 0.0
    %3729 = vmatpush1.msra.mxu0 %v2278
    %3730 = vmatprep.subr.mxu0 0.0
    %3731 = vmatpush1.msra.mxu0 %v2281
    %3732 = vmatprep.subr.mxu0 0.0
    %3733 = vmatpush1.msra.mxu0 %v2284
    %3734 = vmatprep.subr.mxu0 0.0
    %3735 = vmatpush1.msra.mxu0 %v2287
    %3736 = vmatprep.subr.mxu0 0.0
    %3737 = vmatpush1.msra.mxu0 %v2290
    %3738 = vmatprep.subr.mxu0 0.0
    %3739 = vmatpush1.msra.mxu0 %v2293
    %3740 = vmatprep.subr.mxu0 0.0
    %3741 = vmatpush1.msra.mxu0 %v2296
    %3742 = vmatprep.subr.mxu0 0.0
    %3743 = vmatpush1.msra.mxu0 %v2299
    %3744 = vmatprep.subr.mxu0 0.0
    %3745 = vmatpush1.msra.mxu0 %v2302
    %3746 = vmatprep.subr.mxu0 0.0
    %3747 = vmatpush1.msra.mxu0 0.0
    %3748 = vmatprep.subr.mxu0 0.0
    %3749 = vmatpush1.msra.mxu0 0.0
    %3750 = vmatprep.subr.mxu0 0.0
    %3751 = vmatpush1.msra.mxu0 0.0
    %3752 = vmatprep.subr.mxu0 0.0
    %3753 = vmatpush1.msra.mxu0 0.0
    %3754 = vmatprep.subr.mxu0 0.0
    %3755 = vmatpush1.msra.mxu0 0.0
    %3756 = vmatprep.subr.mxu0 0.0
    %3757 = vmatpush1.msra.mxu0 0.0
    %3758 = vmatprep.subr.mxu0 0.0
    %3759 = vmatpush1.msra.mxu0 0.0
    %3760 = vmatprep.subr.mxu0 0.0
    %3761 = vmatpush1.msra.mxu0 0.0
    %3762 = vmatprep.subr.mxu0 0.0
    %3763 = vmatpush1.msra.mxu0 0.0
    %3764 = vmatprep.subr.mxu0 0.0
    %3765 = vmatpush1.msra.mxu0 0.0
    %3766 = vmatprep.subr.mxu0 0.0
    %3767 = vmatpush1.msra.mxu0 0.0
    %3768 = vmatprep.subr.mxu0 0.0
    %3769 = vmatpush1.msra.mxu0 0.0
    %3770 = vmatprep.subr.mxu0 0.0
    %3771 = vmatpush1.msra.mxu0 0.0
    %3772 = vmatprep.subr.mxu0 0.0
    %3773 = vmatpush1.msra.mxu0 0.0
    %3774 = vmatprep.subr.mxu0 0.0
    %3775 = vmatpush1.msra.mxu0 0.0
    %3776 = vmatprep.subr.mxu0 0.0
    %3777 = vmatpush1.msra.mxu0 0.0
    %3778 = vmatprep.mubr.f32.mxu0 0.0
    %3779 = vmatmul.mubr.f32.gmra.mrb[0].mxu0 %v3615
    %v3780 = vpop.f32.mrb[0].mxu0
    %v3781 = vadd.f32 %v2316, %v3780
    %v3782 = vpop.f32.mrb[0].mxu0
    %3783 = vdwg.mxu0
    %v3784 = vadd.f32 %v2181, %v3710
    %v3785 = vxor.u32 %v3784, 2147483648
    %v3786 = vmul.f32 %v3785, 1.442695
    %v3787 = vpow.pop %v3786
    %v3788 = vadd.f32 %v3787, 1.0
    %v3789 = vrcp.pop %v3788
    %v3790 = vmul.f32 1.0, %v3789
    %v3791 = vadd.f32 %v2183, %v3712
    %v3792 = vxor.u32 %v3791, 2147483648
    %v3793 = vmul.f32 %v3792, 1.442695
    %v3794 = vpow.pop %v3793
    %v3795 = vadd.f32 %v3794, 1.0
    %v3796 = vrcp.pop %v3795
    %v3797 = vmul.f32 1.0, %v3796
    %v3798 = vmul.f32 %v3790, %v3781
    %v3799 = vadd.f32 %v2252, %v3798
    %v3800 = vtanh.pop %v3799
    %v3801 = vsub.f32 1.0, %v3797
    %v3802 = vmul.f32 %v3801, %v3800
    %v3803 = vmul.f32 %v3797, %v3615
    %v3804 = vadd.f32 %v3802, %v3803
    %v3807 = vunpack.c.l.s4 1966171168
    %v3808 = vunpack.c.0.s8 %v3807
    %v3809 = vlaneseq
    %v3810 = vshrl.u32 %v3809, 7
    %v3811 = vsub.s32 %v3808, %v3810
    %v3812 = vrot.slane %v3804, %v3811
    %v3813 = vcombine.high %v3812, %v3812
    %v3815 = vunpack.c.l.s4 1966171168
    %v3816 = vunpack.c.0.s8 %v3815
    %v3817 = vlaneseq
    %v3818 = vshrl.u32 %v3817, 7
    %v3819 = vsub.s32 %v3816, %v3818
    %v3820 = vrot.slane %v3812, %v3819
    %v3822 = vunpack.c.l.s4 1966171168
    %v3823 = vunpack.c.0.s8 %v3822
    %v3824 = vlaneseq
    %v3825 = vshrl.u32 %v3824, 7
    %v3826 = vsub.s32 %v3823, %v3825
    %v3827 = vrot.slane %v3813, %v3826
    %3830 = vst [vmem:[#allocation2 + $0x7] sm:$0x1] %v3820
    %3831 = vst [vmem:[#allocation2 + $0xf] sm:$0x1] %v3827
    %v3832 = vld [vmem:[#allocation2] sm:$0xff]
    %v3833 = vld [vmem:[#allocation2 + $0x8] sm:$0xff]
    %v3834 = vld [vmem:[#allocation14] sm:$0xff]
    %v3835 = vld [vmem:[#allocation14 + $0x8] sm:$0xff]
    %v3836 = vld [vmem:[#allocation14 + $0x10] sm:$0xff]
    %v3837 = vld [vmem:[#allocation14 + $0x18] sm:$0xff]
    %v3838 = vld [vmem:[#allocation14 + $0x20] sm:$0xff]
    %v3839 = vld [vmem:[#allocation14 + $0x28] sm:$0xff]
    %v3840 = vld [vmem:[#allocation14 + $0x30] sm:$0xff]
    %v3841 = vld [vmem:[#allocation14 + $0x38] sm:$0xff]
    %v3842 = vld [vmem:[#allocation14 + $0x40] sm:$0xff]
    %v3843 = vld [vmem:[#allocation14 + $0x48] sm:$0xff]
    %v3844 = vld [vmem:[#allocation14 + $0x50] sm:$0xff]
    %v3845 = vld [vmem:[#allocation14 + $0x58] sm:$0xff]
    %v3846 = vld [vmem:[#allocation14 + $0x60] sm:$0xff]
    %v3847 = vld [vmem:[#allocation14 + $0x68] sm:$0xff]
    %v3848 = vld [vmem:[#allocation14 + $0x70] sm:$0xff]
    %v3849 = vld [vmem:[#allocation14 + $0x78] sm:$0xff]
    %v3850 = vld [vmem:[%s10] sm:$0x1]
    %v3852 = vlaneseq
    %v3853 = vshrl.u32 %v3852, 7
    %v3854 = vsub.s32 0, %v3853
    %v3855 = vrot.slane %v3850, %v3854
    %3857 = vmatprep.subr.mxu0 0.0
    %3858 = vmatpush1.msra.mxu0 %v3834
    %3859 = vmatprep.subr.mxu0 0.0
    %3860 = vmatpush1.msra.mxu0 %v3835
    %3861 = vmatprep.subr.mxu0 0.0
    %3862 = vmatpush1.msra.mxu0 %v3836
    %3863 = vmatprep.subr.mxu0 0.0
    %3864 = vmatpush1.msra.mxu0 %v3837
    %3865 = vmatprep.subr.mxu0 0.0
    %3866 = vmatpush1.msra.mxu0 %v3838
    %3867 = vmatprep.subr.mxu0 0.0
    %3868 = vmatpush1.msra.mxu0 %v3839
    %3869 = vmatprep.subr.mxu0 0.0
    %3870 = vmatpush1.msra.mxu0 %v3840
    %3871 = vmatprep.subr.mxu0 0.0
    %3872 = vmatpush1.msra.mxu0 %v3841
    %3873 = vmatprep.subr.mxu0 0.0
    %3874 = vmatpush1.msra.mxu0 %v3842
    %3875 = vmatprep.subr.mxu0 0.0
    %3876 = vmatpush1.msra.mxu0 %v3843
    %3877 = vmatprep.subr.mxu0 0.0
    %3878 = vmatpush1.msra.mxu0 %v3844
    %3879 = vmatprep.subr.mxu0 0.0
    %3880 = vmatpush1.msra.mxu0 %v3845
    %3881 = vmatprep.subr.mxu0 0.0
    %3882 = vmatpush1.msra.mxu0 %v3846
    %3883 = vmatprep.subr.mxu0 0.0
    %3884 = vmatpush1.msra.mxu0 %v3847
    %3885 = vmatprep.subr.mxu0 0.0
    %3886 = vmatpush1.msra.mxu0 %v3848
    %3887 = vmatprep.subr.mxu0 0.0
    %3888 = vmatpush1.msra.mxu0 %v3849
    %3889 = vmatprep.subr.mxu0 0.0
    %3890 = vmatpush1.msra.mxu0 0.0
    %3891 = vmatprep.subr.mxu0 0.0
    %3892 = vmatpush1.msra.mxu0 0.0
    %3893 = vmatprep.subr.mxu0 0.0
    %3894 = vmatpush1.msra.mxu0 0.0
    %3895 = vmatprep.subr.mxu0 0.0
    %3896 = vmatpush1.msra.mxu0 0.0
    %3897 = vmatprep.subr.mxu0 0.0
    %3898 = vmatpush1.msra.mxu0 0.0
    %3899 = vmatprep.subr.mxu0 0.0
    %3900 = vmatpush1.msra.mxu0 0.0
    %3901 = vmatprep.subr.mxu0 0.0
    %3902 = vmatpush1.msra.mxu0 0.0
    %3903 = vmatprep.subr.mxu0 0.0
    %3904 = vmatpush1.msra.mxu0 0.0
    %3905 = vmatprep.subr.mxu0 0.0
    %3906 = vmatpush1.msra.mxu0 0.0
    %3907 = vmatprep.subr.mxu0 0.0
    %3908 = vmatpush1.msra.mxu0 0.0
    %3909 = vmatprep.subr.mxu0 0.0
    %3910 = vmatpush1.msra.mxu0 0.0
    %3911 = vmatprep.subr.mxu0 0.0
    %3912 = vmatpush1.msra.mxu0 0.0
    %3913 = vmatprep.subr.mxu0 0.0
    %3914 = vmatpush1.msra.mxu0 0.0
    %3915 = vmatprep.subr.mxu0 0.0
    %3916 = vmatpush1.msra.mxu0 0.0
    %3917 = vmatprep.subr.mxu0 0.0
    %3918 = vmatpush1.msra.mxu0 0.0
    %3919 = vmatprep.subr.mxu0 0.0
    %3920 = vmatpush1.msra.mxu0 0.0
    %3921 = vmatprep.mubr.f32.mxu0 0.0
    %3922 = vmatmul.mubr.f32.gmra.mrb[0].mxu0 %v3832
    %v3923 = vpop.f32.mrb[0].mxu0
    %v3924 = vadd.f32 %v3855, %v3923
    %v3925 = vpop.f32.mrb[0].mxu0
    %3926 = vmatprep.mubr.f32.mxu0 0.0
    %3927 = vmatmul.mubr.f32.gmra.mrb[0].mxu0 %v3833
    %v3928 = vpop.f32.mrb[0].mxu0
    %v3929 = vadd.f32 %v3855, %v3928
    %v3930 = vpop.f32.mrb[0].mxu0
    %3931 = vdwg.mxu0
    %3932 = vst.msk [vmem:[#allocation15] sm:$0xff] %vm163, %v3924
    %3933 = vst.msk [vmem:[#allocation15 + $0x8] sm:$0xff] %vm163, %v3929
    // Predicated region
    $region74: #{_lambda_.1} parent=1 // pred_check
      _
    $region75: #{_lambda_.1} parent=1 // pred_check_branch
      %3935 = sbr.rel (0) target = $region77
    $region76: #{_lambda_.1} parent=1 // pred_region
      %s3937 = ssub.s32 256, 256
      %3938 = vsyncadd [#allocation5], %s3937
      %s3939 = sshll.u32 [#allocation15], 4
      %s3940 = int_to_ptr.vmem [resolvable:$true] %s3939
      %3945 = dma.vmem_to_hbm [thread:$0]  %s3940, 256, %s11, [#allocation5], 128, 128, 8
    $region77: #{_lambda_.1} parent=1 // pred_fallthru
      _
    // Predicated region
    $region78: #{_lambda_.1} parent=1 // pred_check
      _
    $region79: #{_lambda_.1} parent=1 // pred_check_branch
      %3947 = sbr.rel (0) target = $region81
    $region80: #{_lambda_.1} parent=1 // pred_region
      %3948 = dma.done [#allocation5], 256
    $region81: #{_lambda_.1} parent=1 // pred_fallthru
      _
    %3949 = vsyncpa [#allocation4], 1
    %3950 = vsyncpa [#allocation7], 1
    %3951 = vsyncpa [#allocation10], 1
    %3952 = vsyncpa [#allocation13], 1
    %3953 = vsyncpa [#allocation5], 1

</llo_original>
